<compile_context>
chip_gen: v7x
topology: tpu7x:2x2x1
jax: 0.10.0
libtpu: 0.0.40
codegen_flags: <defaults>
</compile_context>

<pallas_src>
import functools

import jax
import jax.numpy as jnp
from jax.experimental import pallas as pl
from jax.experimental.pallas import tpu as pltpu

_LANES = 128


def _choose_row_tile(H):
    # TH=8 keeps the f32 accumulator chunk register-resident (8 x WC x 128).
    for th in (8, 16, 4, 32, 2):
        if H % th == 0:
            return th
    return H


def _choose_w_chunk(W):
    # Chunk W so the acc chunk is <= ~16 vregs (TH=8, WC<=16).
    for wc in (16, 8):
        if W % wc == 0:
            return wc
    for wc in range(min(W, 16), 0, -1):
        if W % wc == 0:
            return wc
    return W


def _physical_vmem_bytes():
    try:
        info = pltpu.get_tpu_info()
        for attr in ("vmem_capacity_bytes", "vmem_bytes", "vmem_size_bytes"):
            v = getattr(info, attr, None)
            if v:
                return int(v)
    except Exception:
        pass
    return 64 * 1024 * 1024  # conservative fallback: v7x per-TensorCore VMEM


def _make_fused_dw_kernel(K, TH, W, WC, blocks_for_k):
    """Depthwise conv for one (batch, channel-block, row-tile) grid step.

    xp_ref: (Hp, Wp, CB)  spatially padded input slab (resident across row tiles)
    w_ref : (K, K, CB)    zero-embedded centered taps for this channel block
    b_ref : (1, CB)       bias
    o_ref : (TH, W, CB)   output row tile
    """
    nwc = W // WC

    def kernel(xp_ref, w_ref, b_ref, o_ref):
        CB = o_ref.shape[-1]
        cb = pl.program_id(1)
        row0 = pl.multiple_of(pl.program_id(2) * TH, TH)
        bias = b_ref[0].astype(jnp.float32)

        def compute_for_k(k):
            off = (K - k) // 2
            w = w_ref[off:off + k, off:off + k, :].astype(jnp.float32)   # (k, k, CB)
            for ci in range(nwc):
                wc = ci * WC
                acc = jnp.zeros((TH, WC, CB), jnp.float32)
                for kh in range(k):
                    # One tap-row window load (and one cast) per kh; kw shifts
                    # are static in-register sublane slices of that window.
                    xrow = xp_ref[pl.ds(row0 + off + kh, TH),
                                  pl.ds(wc + off, WC + k - 1), :].astype(jnp.float32)
                    for kw in range(k):
                        acc = acc + xrow[:, kw:kw + WC, :] * w[kh, kw, :]
                o_ref[:, wc:wc + WC, :] = (acc + bias).astype(o_ref.dtype)

        ks = sorted(blocks_for_k)
        if len(ks) == 1:
            compute_for_k(ks[0])
        else:
            # Static dispatch over the <=4 distinct kernel sizes; exactly one
            # branch is taken per channel block.
            for k in ks:
                idxs = blocks_for_k[k]
                cond = cb == idxs[0]
                for i in idxs[1:]:
                    cond = jnp.logical_or(cond, cb == i)
                pl.when(cond)(functools.partial(compute_for_k, k))

    return kernel


def fused_multiscale_dwconv(x_nhwc, w_fused, b_fused, K, block_ks):
    """One fused lane-dense depthwise pass over all scales.

    x_nhwc : (B, H, W, Cin)
    w_fused: (K, K, Cpad)  centered, zero-embedded per-channel taps
    b_fused: (Cpad,)
    block_ks: per-128-lane-block effective kernel size (static python ints)
    """
    B, H, W, Cin = x_nhwc.shape
    Cpad = w_fused.shape[-1]
    CB = _LANES
    NCB = Cpad // CB
    p = K // 2
    # Single HBM pad: spatial halo + channel pad up to a 128-lane multiple.
    # TODO(synk): for dim << 128 the channel pad multiplies HBM traffic; move it
    # on-chip (DMA a Cin-wide slab into a Cpad-wide VMEM scratch) if that case
    # matters, and handle the spatial halo in-kernel (clamped pl.ds) to drop
    # this extra full-tensor HBM pass.
    xp = jnp.pad(x_nhwc, ((0, 0), (p, p), (p, p), (0, Cpad - Cin)))
    Hp, Wp = H + 2 * p, W + 2 * p

    TH = _choose_row_tile(H)
    WC = _choose_w_chunk(W)
    nrt = H // TH
    itemsize = x_nhwc.dtype.itemsize

    blocks_for_k = {}
    for i, k in enumerate(block_ks):
        blocks_for_k.setdefault(int(k), []).append(i)

    taps_per_pixel = sum(k * k for k in block_ks) * CB
    flops = 2 * B * H * W * taps_per_pixel
    bytes_accessed = ((B * NCB * Hp * Wp * CB + B * H * W * Cpad) * itemsize
                      + (K * K * Cpad + Cpad) * 4)

    # VMEM footprint per grid step: double-buffered resident input slab +
    # output tiles + weights/bias, plus a live-value margin for the acc chunk.
    vmem_est = (2 * Hp * Wp * CB * itemsize
                + 2 * TH * W * CB * itemsize
                + 2 * (K * K + 1) * CB * 4
                + (TH * (WC + K) * CB + TH * WC * CB + K * K * CB) * 4)

    cp = {"dimension_semantics": ("parallel", "parallel", "arbitrary")}
    if vmem_est > 12 * 1024 * 1024:
        # Generation-aware budget: ~3/4 of physical VMEM (v5e/v6e: 128 MiB,
        # v7x: 64 MiB per core) instead of a hard-coded clamp.
        budget = _physical_vmem_bytes() * 3 // 4
        cp["vmem_limit_bytes"] = int(min(max(2 * vmem_est, 32 * 1024 * 1024), budget))

    out = pl.pallas_call(
        _make_fused_dw_kernel(K, TH, W, WC, blocks_for_k),
        out_shape=jax.ShapeDtypeStruct((B, H, W, Cpad), x_nhwc.dtype),
        grid=(B, NCB, nrt),
        in_specs=[
            # Padded input slab: block index constant across the inner row-tile
            # axis -> one DMA per (batch, channel-block), resident in VMEM.
            pl.BlockSpec((pl.Squeezed(), Hp, Wp, CB), lambda b, c, r: (b, 0, 0, c)),
            pl.BlockSpec((K, K, CB), lambda b, c, r: (0, 0, c)),
            pl.BlockSpec((1, CB), lambda b, c, r: (0, c)),
        ],
        out_specs=pl.BlockSpec((pl.Squeezed(), TH, W, CB), lambda b, c, r: (b, r, 0, c)),
        compiler_params=pltpu.CompilerParams(**cp),
        cost_estimate=pl.CostEstimate(flops=flops, transcendentals=0,
                                      bytes_accessed=bytes_accessed),
    )(xp, w_fused, b_fused.reshape(1, Cpad))
    # TODO(synk): keep the Cpad-wide output and fuse this slice (plus the NCHW
    # transpose and the host MLP's 1x1 pointwise conv) into the consumer.
    return out[..., :Cin]


class MultiScaleDWConvPallas:
    """JAX/Pallas port of MultiScaleDWConv(dim, scale=(1,3,5,7)) — single fused kernel."""

    def __init__(self, dim, scale=(1, 3, 5, 7), key=None):
        if key is None:
            key = jax.random.PRNGKey(0)
        self.dim = dim
        self.scale = scale
        n = len(scale)
        self.channels = []
        self.weights = []
        self.biases = []
        keys = jax.random.split(key, 2 * n)
        for i, k in enumerate(scale):
            ch = dim - dim // n * (n - 1) if i == 0 else dim // n
            self.channels.append(ch)
            # PyTorch depthwise Conv2d default init: U(±1/sqrt(fan_in)), fan_in = k*k.
            bound = 1.0 / float(k * k) ** 0.5
            self.weights.append(
                jax.random.uniform(keys[2 * i], (k, k, ch), jnp.float32, -bound, bound))
            self.biases.append(
                jax.random.uniform(keys[2 * i + 1], (ch,), jnp.float32, -bound, bound))

        # Fuse all scales into one (K, K, Cpad) weight slab: each group's k×k
        # taps sit centered in the K×K window (zeros elsewhere), so one
        # depthwise pass with padding K//2 reproduces all per-scale convs.
        self.K = max(scale)
        self.Cpad = -(-dim // _LANES) * _LANES
        wf = jnp.zeros((self.K, self.K, self.Cpad), jnp.float32)
        bf = jnp.zeros((self.Cpad,), jnp.float32)
        bounds = []
        start = 0
        for ch, k, w, b in zip(self.channels, self.scale, self.weights, self.biases):
            o = (self.K - k) // 2
            wf = wf.at[o:o + k, o:o + k, start:start + ch].set(w)
            bf = bf.at[start:start + ch].set(b)
            bounds.append((start, start + ch))
            start += ch
        self.w_fused = wf
        self.b_fused = bf

        # Per-128-lane channel block: largest scale present in that block.  For
        # dim divisible by 4*128 each block holds a single scale, so small
        # scales only pay their own k*k taps (the main VALU win).
        block_ks = []
        for i in range(self.Cpad // _LANES):
            lo, hi = i * _LANES, (i + 1) * _LANES
            ks = [k for k, (a, b) in zip(self.scale, bounds) if a < hi and b > lo]
            block_ks.append(max(ks) if ks else 1)
        self.block_ks = tuple(block_ks)

    def forward_nhwc(self, x_nhwc):
        """NHWC fast path (no transposes) for callers already carrying NHWC."""
        return fused_multiscale_dwconv(x_nhwc, self.w_fused, self.b_fused,
                                       self.K, self.block_ks)

    def __call__(self, x_nchw):
        x = jnp.transpose(x_nchw, (0, 2, 3, 1))      # NCHW -> NHWC (lane = channel)
        y = self.forward_nhwc(x)
        return jnp.transpose(y, (0, 3, 1, 2))        # NHWC -> NCHW


def _ref_forward(model, x_nchw):
    """Pure-JAX reference via lax.conv_general_dilated (per-scale depthwise)."""
    x = jnp.transpose(x_nchw, (0, 2, 3, 1))
    outs = []
    start = 0
    for ch, k, w, b in zip(model.channels, model.scale, model.weights, model.biases):
        feat = x[..., start:start + ch]
        start += ch
        wh = w.reshape(k, k, 1, ch)  # HWIO, 1 input channel per group
        o = jax.lax.conv_general_dilated(
            feat, wh, window_strides=(1, 1),
            padding=[(k // 2, k // 2), (k // 2, k // 2)],
            dimension_numbers=("NHWC", "HWIO", "NHWC"),
            feature_group_count=ch) + b
        outs.append(o)
    y = jnp.concatenate(outs, axis=-1)
    return jnp.transpose(y, (0, 3, 1, 2))


if __name__ == "__main__":
    key = jax.random.PRNGKey(0)

    # Case 1: small, misaligned dim (channel split [4,2,2,2] -> one 128-lane block).
    k1, k2 = jax.random.split(key)
    dim, B, H, W = 10, 2, 16, 16
    x = jax.random.normal(k1, (B, dim, H, W), jnp.float32)
    model = MultiScaleDWConvPallas(dim, scale=(1, 3, 5, 7), key=k2)
    y = jax.block_until_ready(model(x))
    assert y.shape == (B, dim, H, W), y.shape
    assert jnp.allclose(y, _ref_forward(model, x), atol=1e-4, rtol=1e-4), "mismatch (dim=10)"

    # Case 2: aligned dim=512 (channel split [128]*4) -> one channel block per
    # scale, exercising the k in {1,3,5,7} per-block dispatch.
    k3, k4 = jax.random.split(k2)
    dim2, B2, H2, W2 = 512, 1, 16, 16
    x2 = jax.random.normal(k3, (B2, dim2, H2, W2), jnp.float32)
    model2 = MultiScaleDWConvPallas(dim2, scale=(1, 3, 5, 7), key=k4)
    y2 = jax.block_until_ready(model2(x2))
    assert y2.shape == (B2, dim2, H2, W2), y2.shape
    assert jnp.allclose(y2, _ref_forward(model2, x2), atol=1e-4, rtol=1e-4), "mismatch (dim=512)"

    print("KERNEL_OK")
</pallas_src>

<mosaic_0001>
module attributes {stable_mosaic.version = 11 : i64} {
  func.func @kernel(%arg0: i32, %arg1: i32, %arg2: i32, %arg3: memref<1x22x22x128xf32, #tpu.memory_space<vmem>>, %arg4: memref<7x7x128xf32, #tpu.memory_space<vmem>>, %arg5: memref<1x128xf32, #tpu.memory_space<vmem>>, %arg6: memref<1x8x16x128xf32, #tpu.memory_space<vmem>>) attributes {dimension_semantics = [#tpu.dimension_semantics<parallel>, #tpu.dimension_semantics<parallel>, #tpu.dimension_semantics<arbitrary>], iteration_bounds = array<i64: 2, 1, 2>, scalar_prefetch = 0 : i64, scratch_operands = 0 : i64, tpu.core_type = #tpu.core_type<tc>, window_params = [{transform_indices = @transform_0, window_bounds = array<i64: 1, 22, 22, 128>}, {transform_indices = @transform_1, window_bounds = array<i64: 7, 7, 128>}, {transform_indices = @transform_2, window_bounds = array<i64: 1, 128>}, {transform_indices = @transform_3, window_bounds = array<i64: 1, 8, 16, 128>}]} {
    %c8_i32 = arith.constant 8 : i32
    %0 = arith.muli %arg2, %c8_i32 : i32
    %1 = tpu.assume_multiple %0, 8 : i32
    %c0 = arith.constant 0 : index
    %c0_0 = arith.constant 0 : index
    %2 = vector.load %arg5[%c0, %c0_0] : memref<1x128xf32, #tpu.memory_space<vmem>>, vector<1x128xf32>
    %3 = vector.shape_cast %2 : vector<1x128xf32> to vector<128xf32>
    %c0_1 = arith.constant 0 : index
    %c0_2 = arith.constant 0 : index
    %c0_3 = arith.constant 0 : index
    %4 = vector.load %arg4[%c0_1, %c0_2, %c0_3] : memref<7x7x128xf32, #tpu.memory_space<vmem>>, vector<7x7x128xf32>
    %cst = arith.constant 0.000000e+00 : f32
    %5 = vector.broadcast %cst : f32 to vector<8x16x128xf32>
    %c0_i32 = arith.constant 0 : i32
    %6 = arith.addi %1, %c0_i32 : i32
    %c0_i32_4 = arith.constant 0 : i32
    %7 = arith.addi %6, %c0_i32_4 : i32
    %c0_5 = arith.constant 0 : index
    %8 = arith.index_cast %7 : i32 to index
    %c0_6 = arith.constant 0 : index
    %c0_7 = arith.constant 0 : index
    %9 = vector.load %arg3[%c0_5, %8, %c0_6, %c0_7] : memref<1x22x22x128xf32, #tpu.memory_space<vmem>>, vector<1x8x22x128xf32>
    %10 = vector.shape_cast %9 : vector<1x8x22x128xf32> to vector<8x22x128xf32>
    %11 = vector.extract_strided_slice %10 {offsets = [0, 0, 0], sizes = [8, 16, 128], strides = [1, 1, 1]} : vector<8x22x128xf32> to vector<8x16x128xf32>
    %12 = vector.extract_strided_slice %4 {offsets = [0, 0, 0], sizes = [1, 1, 128], strides = [1, 1, 1]} : vector<7x7x128xf32> to vector<1x1x128xf32>
    %13 = vector.shape_cast %12 : vector<1x1x128xf32> to vector<128xf32>
    %14 = vector.shape_cast %13 : vector<128xf32> to vector<1x1x128xf32>
    %15 = vector.broadcast %14 : vector<1x1x128xf32> to vector<8x16x128xf32>
    %16 = arith.mulf %11, %15 : vector<8x16x128xf32>
    %17 = arith.addf %5, %16 : vector<8x16x128xf32>
    %18 = vector.extract_strided_slice %10 {offsets = [0, 1, 0], sizes = [8, 16, 128], strides = [1, 1, 1]} : vector<8x22x128xf32> to vector<8x16x128xf32>
    %19 = vector.extract_strided_slice %4 {offsets = [0, 1, 0], sizes = [1, 1, 128], strides = [1, 1, 1]} : vector<7x7x128xf32> to vector<1x1x128xf32>
    %20 = vector.shape_cast %19 : vector<1x1x128xf32> to vector<128xf32>
    %21 = vector.shape_cast %20 : vector<128xf32> to vector<1x1x128xf32>
    %22 = vector.broadcast %21 : vector<1x1x128xf32> to vector<8x16x128xf32>
    %23 = arith.mulf %18, %22 : vector<8x16x128xf32>
    %24 = arith.addf %17, %23 : vector<8x16x128xf32>
    %25 = vector.extract_strided_slice %10 {offsets = [0, 2, 0], sizes = [8, 16, 128], strides = [1, 1, 1]} : vector<8x22x128xf32> to vector<8x16x128xf32>
    %26 = vector.extract_strided_slice %4 {offsets = [0, 2, 0], sizes = [1, 1, 128], strides = [1, 1, 1]} : vector<7x7x128xf32> to vector<1x1x128xf32>
    %27 = vector.shape_cast %26 : vector<1x1x128xf32> to vector<128xf32>
    %28 = vector.shape_cast %27 : vector<128xf32> to vector<1x1x128xf32>
    %29 = vector.broadcast %28 : vector<1x1x128xf32> to vector<8x16x128xf32>
    %30 = arith.mulf %25, %29 : vector<8x16x128xf32>
    %31 = arith.addf %24, %30 : vector<8x16x128xf32>
    %32 = vector.extract_strided_slice %10 {offsets = [0, 3, 0], sizes = [8, 16, 128], strides = [1, 1, 1]} : vector<8x22x128xf32> to vector<8x16x128xf32>
    %33 = vector.extract_strided_slice %4 {offsets = [0, 3, 0], sizes = [1, 1, 128], strides = [1, 1, 1]} : vector<7x7x128xf32> to vector<1x1x128xf32>
    %34 = vector.shape_cast %33 : vector<1x1x128xf32> to vector<128xf32>
    %35 = vector.shape_cast %34 : vector<128xf32> to vector<1x1x128xf32>
    %36 = vector.broadcast %35 : vector<1x1x128xf32> to vector<8x16x128xf32>
    %37 = arith.mulf %32, %36 : vector<8x16x128xf32>
    %38 = arith.addf %31, %37 : vector<8x16x128xf32>
    %39 = vector.extract_strided_slice %10 {offsets = [0, 4, 0], sizes = [8, 16, 128], strides = [1, 1, 1]} : vector<8x22x128xf32> to vector<8x16x128xf32>
    %40 = vector.extract_strided_slice %4 {offsets = [0, 4, 0], sizes = [1, 1, 128], strides = [1, 1, 1]} : vector<7x7x128xf32> to vector<1x1x128xf32>
    %41 = vector.shape_cast %40 : vector<1x1x128xf32> to vector<128xf32>
    %42 = vector.shape_cast %41 : vector<128xf32> to vector<1x1x128xf32>
    %43 = vector.broadcast %42 : vector<1x1x128xf32> to vector<8x16x128xf32>
    %44 = arith.mulf %39, %43 : vector<8x16x128xf32>
    %45 = arith.addf %38, %44 : vector<8x16x128xf32>
    %46 = vector.extract_strided_slice %10 {offsets = [0, 5, 0], sizes = [8, 16, 128], strides = [1, 1, 1]} : vector<8x22x128xf32> to vector<8x16x128xf32>
    %47 = vector.extract_strided_slice %4 {offsets = [0, 5, 0], sizes = [1, 1, 128], strides = [1, 1, 1]} : vector<7x7x128xf32> to vector<1x1x128xf32>
    %48 = vector.shape_cast %47 : vector<1x1x128xf32> to vector<128xf32>
    %49 = vector.shape_cast %48 : vector<128xf32> to vector<1x1x128xf32>
    %50 = vector.broadcast %49 : vector<1x1x128xf32> to vector<8x16x128xf32>
    %51 = arith.mulf %46, %50 : vector<8x16x128xf32>
    %52 = arith.addf %45, %51 : vector<8x16x128xf32>
    %53 = vector.extract_strided_slice %10 {offsets = [0, 6, 0], sizes = [8, 16, 128], strides = [1, 1, 1]} : vector<8x22x128xf32> to vector<8x16x128xf32>
    %54 = vector.extract_strided_slice %4 {offsets = [0, 6, 0], sizes = [1, 1, 128], strides = [1, 1, 1]} : vector<7x7x128xf32> to vector<1x1x128xf32>
    %55 = vector.shape_cast %54 : vector<1x1x128xf32> to vector<128xf32>
    %56 = vector.shape_cast %55 : vector<128xf32> to vector<1x1x128xf32>
    %57 = vector.broadcast %56 : vector<1x1x128xf32> to vector<8x16x128xf32>
    %58 = arith.mulf %53, %57 : vector<8x16x128xf32>
    %59 = arith.addf %52, %58 : vector<8x16x128xf32>
    %c0_i32_8 = arith.constant 0 : i32
    %60 = arith.addi %1, %c0_i32_8 : i32
    %c1_i32 = arith.constant 1 : i32
    %61 = arith.addi %60, %c1_i32 : i32
    %c0_9 = arith.constant 0 : index
    %62 = arith.index_cast %61 : i32 to index
    %c0_10 = arith.constant 0 : index
    %c0_11 = arith.constant 0 : index
    %63 = vector.load %arg3[%c0_9, %62, %c0_10, %c0_11] : memref<1x22x22x128xf32, #tpu.memory_space<vmem>>, vector<1x8x22x128xf32>
    %64 = vector.shape_cast %63 : vector<1x8x22x128xf32> to vector<8x22x128xf32>
    %65 = vector.extract_strided_slice %64 {offsets = [0, 0, 0], sizes = [8, 16, 128], strides = [1, 1, 1]} : vector<8x22x128xf32> to vector<8x16x128xf32>
    %66 = vector.extract_strided_slice %4 {offsets = [1, 0, 0], sizes = [1, 1, 128], strides = [1, 1, 1]} : vector<7x7x128xf32> to vector<1x1x128xf32>
    %67 = vector.shape_cast %66 : vector<1x1x128xf32> to vector<128xf32>
    %68 = vector.shape_cast %67 : vector<128xf32> to vector<1x1x128xf32>
    %69 = vector.broadcast %68 : vector<1x1x128xf32> to vector<8x16x128xf32>
    %70 = arith.mulf %65, %69 : vector<8x16x128xf32>
    %71 = arith.addf %59, %70 : vector<8x16x128xf32>
    %72 = vector.extract_strided_slice %64 {offsets = [0, 1, 0], sizes = [8, 16, 128], strides = [1, 1, 1]} : vector<8x22x128xf32> to vector<8x16x128xf32>
    %73 = vector.extract_strided_slice %4 {offsets = [1, 1, 0], sizes = [1, 1, 128], strides = [1, 1, 1]} : vector<7x7x128xf32> to vector<1x1x128xf32>
    %74 = vector.shape_cast %73 : vector<1x1x128xf32> to vector<128xf32>
    %75 = vector.shape_cast %74 : vector<128xf32> to vector<1x1x128xf32>
    %76 = vector.broadcast %75 : vector<1x1x128xf32> to vector<8x16x128xf32>
    %77 = arith.mulf %72, %76 : vector<8x16x128xf32>
    %78 = arith.addf %71, %77 : vector<8x16x128xf32>
    %79 = vector.extract_strided_slice %64 {offsets = [0, 2, 0], sizes = [8, 16, 128], strides = [1, 1, 1]} : vector<8x22x128xf32> to vector<8x16x128xf32>
    %80 = vector.extract_strided_slice %4 {offsets = [1, 2, 0], sizes = [1, 1, 128], strides = [1, 1, 1]} : vector<7x7x128xf32> to vector<1x1x128xf32>
    %81 = vector.shape_cast %80 : vector<1x1x128xf32> to vector<128xf32>
    %82 = vector.shape_cast %81 : vector<128xf32> to vector<1x1x128xf32>
    %83 = vector.broadcast %82 : vector<1x1x128xf32> to vector<8x16x128xf32>
    %84 = arith.mulf %79, %83 : vector<8x16x128xf32>
    %85 = arith.addf %78, %84 : vector<8x16x128xf32>
    %86 = vector.extract_strided_slice %64 {offsets = [0, 3, 0], sizes = [8, 16, 128], strides = [1, 1, 1]} : vector<8x22x128xf32> to vector<8x16x128xf32>
    %87 = vector.extract_strided_slice %4 {offsets = [1, 3, 0], sizes = [1, 1, 128], strides = [1, 1, 1]} : vector<7x7x128xf32> to vector<1x1x128xf32>
    %88 = vector.shape_cast %87 : vector<1x1x128xf32> to vector<128xf32>
    %89 = vector.shape_cast %88 : vector<128xf32> to vector<1x1x128xf32>
    %90 = vector.broadcast %89 : vector<1x1x128xf32> to vector<8x16x128xf32>
    %91 = arith.mulf %86, %90 : vector<8x16x128xf32>
    %92 = arith.addf %85, %91 : vector<8x16x128xf32>
    %93 = vector.extract_strided_slice %64 {offsets = [0, 4, 0], sizes = [8, 16, 128], strides = [1, 1, 1]} : vector<8x22x128xf32> to vector<8x16x128xf32>
    %94 = vector.extract_strided_slice %4 {offsets = [1, 4, 0], sizes = [1, 1, 128], strides = [1, 1, 1]} : vector<7x7x128xf32> to vector<1x1x128xf32>
    %95 = vector.shape_cast %94 : vector<1x1x128xf32> to vector<128xf32>
    %96 = vector.shape_cast %95 : vector<128xf32> to vector<1x1x128xf32>
    %97 = vector.broadcast %96 : vector<1x1x128xf32> to vector<8x16x128xf32>
    %98 = arith.mulf %93, %97 : vector<8x16x128xf32>
    %99 = arith.addf %92, %98 : vector<8x16x128xf32>
    %100 = vector.extract_strided_slice %64 {offsets = [0, 5, 0], sizes = [8, 16, 128], strides = [1, 1, 1]} : vector<8x22x128xf32> to vector<8x16x128xf32>
    %101 = vector.extract_strided_slice %4 {offsets = [1, 5, 0], sizes = [1, 1, 128], strides = [1, 1, 1]} : vector<7x7x128xf32> to vector<1x1x128xf32>
    %102 = vector.shape_cast %101 : vector<1x1x128xf32> to vector<128xf32>
    %103 = vector.shape_cast %102 : vector<128xf32> to vector<1x1x128xf32>
    %104 = vector.broadcast %103 : vector<1x1x128xf32> to vector<8x16x128xf32>
    %105 = arith.mulf %100, %104 : vector<8x16x128xf32>
    %106 = arith.addf %99, %105 : vector<8x16x128xf32>
    %107 = vector.extract_strided_slice %64 {offsets = [0, 6, 0], sizes = [8, 16, 128], strides = [1, 1, 1]} : vector<8x22x128xf32> to vector<8x16x128xf32>
    %108 = vector.extract_strided_slice %4 {offsets = [1, 6, 0], sizes = [1, 1, 128], strides = [1, 1, 1]} : vector<7x7x128xf32> to vector<1x1x128xf32>
    %109 = vector.shape_cast %108 : vector<1x1x128xf32> to vector<128xf32>
    %110 = vector.shape_cast %109 : vector<128xf32> to vector<1x1x128xf32>
    %111 = vector.broadcast %110 : vector<1x1x128xf32> to vector<8x16x128xf32>
    %112 = arith.mulf %107, %111 : vector<8x16x128xf32>
    %113 = arith.addf %106, %112 : vector<8x16x128xf32>
    %c0_i32_12 = arith.constant 0 : i32
    %114 = arith.addi %1, %c0_i32_12 : i32
    %c2_i32 = arith.constant 2 : i32
    %115 = arith.addi %114, %c2_i32 : i32
    %c0_13 = arith.constant 0 : index
    %116 = arith.index_cast %115 : i32 to index
    %c0_14 = arith.constant 0 : index
    %c0_15 = arith.constant 0 : index
    %117 = vector.load %arg3[%c0_13, %116, %c0_14, %c0_15] : memref<1x22x22x128xf32, #tpu.memory_space<vmem>>, vector<1x8x22x128xf32>
    %118 = vector.shape_cast %117 : vector<1x8x22x128xf32> to vector<8x22x128xf32>
    %119 = vector.extract_strided_slice %118 {offsets = [0, 0, 0], sizes = [8, 16, 128], strides = [1, 1, 1]} : vector<8x22x128xf32> to vector<8x16x128xf32>
    %120 = vector.extract_strided_slice %4 {offsets = [2, 0, 0], sizes = [1, 1, 128], strides = [1, 1, 1]} : vector<7x7x128xf32> to vector<1x1x128xf32>
    %121 = vector.shape_cast %120 : vector<1x1x128xf32> to vector<128xf32>
    %122 = vector.shape_cast %121 : vector<128xf32> to vector<1x1x128xf32>
    %123 = vector.broadcast %122 : vector<1x1x128xf32> to vector<8x16x128xf32>
    %124 = arith.mulf %119, %123 : vector<8x16x128xf32>
    %125 = arith.addf %113, %124 : vector<8x16x128xf32>
    %126 = vector.extract_strided_slice %118 {offsets = [0, 1, 0], sizes = [8, 16, 128], strides = [1, 1, 1]} : vector<8x22x128xf32> to vector<8x16x128xf32>
    %127 = vector.extract_strided_slice %4 {offsets = [2, 1, 0], sizes = [1, 1, 128], strides = [1, 1, 1]} : vector<7x7x128xf32> to vector<1x1x128xf32>
    %128 = vector.shape_cast %127 : vector<1x1x128xf32> to vector<128xf32>
    %129 = vector.shape_cast %128 : vector<128xf32> to vector<1x1x128xf32>
    %130 = vector.broadcast %129 : vector<1x1x128xf32> to vector<8x16x128xf32>
    %131 = arith.mulf %126, %130 : vector<8x16x128xf32>
    %132 = arith.addf %125, %131 : vector<8x16x128xf32>
    %133 = vector.extract_strided_slice %118 {offsets = [0, 2, 0], sizes = [8, 16, 128], strides = [1, 1, 1]} : vector<8x22x128xf32> to vector<8x16x128xf32>
    %134 = vector.extract_strided_slice %4 {offsets = [2, 2, 0], sizes = [1, 1, 128], strides = [1, 1, 1]} : vector<7x7x128xf32> to vector<1x1x128xf32>
    %135 = vector.shape_cast %134 : vector<1x1x128xf32> to vector<128xf32>
    %136 = vector.shape_cast %135 : vector<128xf32> to vector<1x1x128xf32>
    %137 = vector.broadcast %136 : vector<1x1x128xf32> to vector<8x16x128xf32>
    %138 = arith.mulf %133, %137 : vector<8x16x128xf32>
    %139 = arith.addf %132, %138 : vector<8x16x128xf32>
    %140 = vector.extract_strided_slice %118 {offsets = [0, 3, 0], sizes = [8, 16, 128], strides = [1, 1, 1]} : vector<8x22x128xf32> to vector<8x16x128xf32>
    %141 = vector.extract_strided_slice %4 {offsets = [2, 3, 0], sizes = [1, 1, 128], strides = [1, 1, 1]} : vector<7x7x128xf32> to vector<1x1x128xf32>
    %142 = vector.shape_cast %141 : vector<1x1x128xf32> to vector<128xf32>
    %143 = vector.shape_cast %142 : vector<128xf32> to vector<1x1x128xf32>
    %144 = vector.broadcast %143 : vector<1x1x128xf32> to vector<8x16x128xf32>
    %145 = arith.mulf %140, %144 : vector<8x16x128xf32>
    %146 = arith.addf %139, %145 : vector<8x16x128xf32>
    %147 = vector.extract_strided_slice %118 {offsets = [0, 4, 0], sizes = [8, 16, 128], strides = [1, 1, 1]} : vector<8x22x128xf32> to vector<8x16x128xf32>
    %148 = vector.extract_strided_slice %4 {offsets = [2, 4, 0], sizes = [1, 1, 128], strides = [1, 1, 1]} : vector<7x7x128xf32> to vector<1x1x128xf32>
    %149 = vector.shape_cast %148 : vector<1x1x128xf32> to vector<128xf32>
    %150 = vector.shape_cast %149 : vector<128xf32> to vector<1x1x128xf32>
    %151 = vector.broadcast %150 : vector<1x1x128xf32> to vector<8x16x128xf32>
    %152 = arith.mulf %147, %151 : vector<8x16x128xf32>
    %153 = arith.addf %146, %152 : vector<8x16x128xf32>
    %154 = vector.extract_strided_slice %118 {offsets = [0, 5, 0], sizes = [8, 16, 128], strides = [1, 1, 1]} : vector<8x22x128xf32> to vector<8x16x128xf32>
    %155 = vector.extract_strided_slice %4 {offsets = [2, 5, 0], sizes = [1, 1, 128], strides = [1, 1, 1]} : vector<7x7x128xf32> to vector<1x1x128xf32>
    %156 = vector.shape_cast %155 : vector<1x1x128xf32> to vector<128xf32>
    %157 = vector.shape_cast %156 : vector<128xf32> to vector<1x1x128xf32>
    %158 = vector.broadcast %157 : vector<1x1x128xf32> to vector<8x16x128xf32>
    %159 = arith.mulf %154, %158 : vector<8x16x128xf32>
    %160 = arith.addf %153, %159 : vector<8x16x128xf32>
    %161 = vector.extract_strided_slice %118 {offsets = [0, 6, 0], sizes = [8, 16, 128], strides = [1, 1, 1]} : vector<8x22x128xf32> to vector<8x16x128xf32>
    %162 = vector.extract_strided_slice %4 {offsets = [2, 6, 0], sizes = [1, 1, 128], strides = [1, 1, 1]} : vector<7x7x128xf32> to vector<1x1x128xf32>
    %163 = vector.shape_cast %162 : vector<1x1x128xf32> to vector<128xf32>
    %164 = vector.shape_cast %163 : vector<128xf32> to vector<1x1x128xf32>
    %165 = vector.broadcast %164 : vector<1x1x128xf32> to vector<8x16x128xf32>
    %166 = arith.mulf %161, %165 : vector<8x16x128xf32>
    %167 = arith.addf %160, %166 : vector<8x16x128xf32>
    %c0_i32_16 = arith.constant 0 : i32
    %168 = arith.addi %1, %c0_i32_16 : i32
    %c3_i32 = arith.constant 3 : i32
    %169 = arith.addi %168, %c3_i32 : i32
    %c0_17 = arith.constant 0 : index
    %170 = arith.index_cast %169 : i32 to index
    %c0_18 = arith.constant 0 : index
    %c0_19 = arith.constant 0 : index
    %171 = vector.load %arg3[%c0_17, %170, %c0_18, %c0_19] : memref<1x22x22x128xf32, #tpu.memory_space<vmem>>, vector<1x8x22x128xf32>
    %172 = vector.shape_cast %171 : vector<1x8x22x128xf32> to vector<8x22x128xf32>
    %173 = vector.extract_strided_slice %172 {offsets = [0, 0, 0], sizes = [8, 16, 128], strides = [1, 1, 1]} : vector<8x22x128xf32> to vector<8x16x128xf32>
    %174 = vector.extract_strided_slice %4 {offsets = [3, 0, 0], sizes = [1, 1, 128], strides = [1, 1, 1]} : vector<7x7x128xf32> to vector<1x1x128xf32>
    %175 = vector.shape_cast %174 : vector<1x1x128xf32> to vector<128xf32>
    %176 = vector.shape_cast %175 : vector<128xf32> to vector<1x1x128xf32>
    %177 = vector.broadcast %176 : vector<1x1x128xf32> to vector<8x16x128xf32>
    %178 = arith.mulf %173, %177 : vector<8x16x128xf32>
    %179 = arith.addf %167, %178 : vector<8x16x128xf32>
    %180 = vector.extract_strided_slice %172 {offsets = [0, 1, 0], sizes = [8, 16, 128], strides = [1, 1, 1]} : vector<8x22x128xf32> to vector<8x16x128xf32>
    %181 = vector.extract_strided_slice %4 {offsets = [3, 1, 0], sizes = [1, 1, 128], strides = [1, 1, 1]} : vector<7x7x128xf32> to vector<1x1x128xf32>
    %182 = vector.shape_cast %181 : vector<1x1x128xf32> to vector<128xf32>
    %183 = vector.shape_cast %182 : vector<128xf32> to vector<1x1x128xf32>
    %184 = vector.broadcast %183 : vector<1x1x128xf32> to vector<8x16x128xf32>
    %185 = arith.mulf %180, %184 : vector<8x16x128xf32>
    %186 = arith.addf %179, %185 : vector<8x16x128xf32>
    %187 = vector.extract_strided_slice %172 {offsets = [0, 2, 0], sizes = [8, 16, 128], strides = [1, 1, 1]} : vector<8x22x128xf32> to vector<8x16x128xf32>
    %188 = vector.extract_strided_slice %4 {offsets = [3, 2, 0], sizes = [1, 1, 128], strides = [1, 1, 1]} : vector<7x7x128xf32> to vector<1x1x128xf32>
    %189 = vector.shape_cast %188 : vector<1x1x128xf32> to vector<128xf32>
    %190 = vector.shape_cast %189 : vector<128xf32> to vector<1x1x128xf32>
    %191 = vector.broadcast %190 : vector<1x1x128xf32> to vector<8x16x128xf32>
    %192 = arith.mulf %187, %191 : vector<8x16x128xf32>
    %193 = arith.addf %186, %192 : vector<8x16x128xf32>
    %194 = vector.extract_strided_slice %172 {offsets = [0, 3, 0], sizes = [8, 16, 128], strides = [1, 1, 1]} : vector<8x22x128xf32> to vector<8x16x128xf32>
    %195 = vector.extract_strided_slice %4 {offsets = [3, 3, 0], sizes = [1, 1, 128], strides = [1, 1, 1]} : vector<7x7x128xf32> to vector<1x1x128xf32>
    %196 = vector.shape_cast %195 : vector<1x1x128xf32> to vector<128xf32>
    %197 = vector.shape_cast %196 : vector<128xf32> to vector<1x1x128xf32>
    %198 = vector.broadcast %197 : vector<1x1x128xf32> to vector<8x16x128xf32>
    %199 = arith.mulf %194, %198 : vector<8x16x128xf32>
    %200 = arith.addf %193, %199 : vector<8x16x128xf32>
    %201 = vector.extract_strided_slice %172 {offsets = [0, 4, 0], sizes = [8, 16, 128], strides = [1, 1, 1]} : vector<8x22x128xf32> to vector<8x16x128xf32>
    %202 = vector.extract_strided_slice %4 {offsets = [3, 4, 0], sizes = [1, 1, 128], strides = [1, 1, 1]} : vector<7x7x128xf32> to vector<1x1x128xf32>
    %203 = vector.shape_cast %202 : vector<1x1x128xf32> to vector<128xf32>
    %204 = vector.shape_cast %203 : vector<128xf32> to vector<1x1x128xf32>
    %205 = vector.broadcast %204 : vector<1x1x128xf32> to vector<8x16x128xf32>
    %206 = arith.mulf %201, %205 : vector<8x16x128xf32>
    %207 = arith.addf %200, %206 : vector<8x16x128xf32>
    %208 = vector.extract_strided_slice %172 {offsets = [0, 5, 0], sizes = [8, 16, 128], strides = [1, 1, 1]} : vector<8x22x128xf32> to vector<8x16x128xf32>
    %209 = vector.extract_strided_slice %4 {offsets = [3, 5, 0], sizes = [1, 1, 128], strides = [1, 1, 1]} : vector<7x7x128xf32> to vector<1x1x128xf32>
    %210 = vector.shape_cast %209 : vector<1x1x128xf32> to vector<128xf32>
    %211 = vector.shape_cast %210 : vector<128xf32> to vector<1x1x128xf32>
    %212 = vector.broadcast %211 : vector<1x1x128xf32> to vector<8x16x128xf32>
    %213 = arith.mulf %208, %212 : vector<8x16x128xf32>
    %214 = arith.addf %207, %213 : vector<8x16x128xf32>
    %215 = vector.extract_strided_slice %172 {offsets = [0, 6, 0], sizes = [8, 16, 128], strides = [1, 1, 1]} : vector<8x22x128xf32> to vector<8x16x128xf32>
    %216 = vector.extract_strided_slice %4 {offsets = [3, 6, 0], sizes = [1, 1, 128], strides = [1, 1, 1]} : vector<7x7x128xf32> to vector<1x1x128xf32>
    %217 = vector.shape_cast %216 : vector<1x1x128xf32> to vector<128xf32>
    %218 = vector.shape_cast %217 : vector<128xf32> to vector<1x1x128xf32>
    %219 = vector.broadcast %218 : vector<1x1x128xf32> to vector<8x16x128xf32>
    %220 = arith.mulf %215, %219 : vector<8x16x128xf32>
    %221 = arith.addf %214, %220 : vector<8x16x128xf32>
    %c0_i32_20 = arith.constant 0 : i32
    %222 = arith.addi %1, %c0_i32_20 : i32
    %c4_i32 = arith.constant 4 : i32
    %223 = arith.addi %222, %c4_i32 : i32
    %c0_21 = arith.constant 0 : index
    %224 = arith.index_cast %223 : i32 to index
    %c0_22 = arith.constant 0 : index
    %c0_23 = arith.constant 0 : index
    %225 = vector.load %arg3[%c0_21, %224, %c0_22, %c0_23] : memref<1x22x22x128xf32, #tpu.memory_space<vmem>>, vector<1x8x22x128xf32>
    %226 = vector.shape_cast %225 : vector<1x8x22x128xf32> to vector<8x22x128xf32>
    %227 = vector.extract_strided_slice %226 {offsets = [0, 0, 0], sizes = [8, 16, 128], strides = [1, 1, 1]} : vector<8x22x128xf32> to vector<8x16x128xf32>
    %228 = vector.extract_strided_slice %4 {offsets = [4, 0, 0], sizes = [1, 1, 128], strides = [1, 1, 1]} : vector<7x7x128xf32> to vector<1x1x128xf32>
    %229 = vector.shape_cast %228 : vector<1x1x128xf32> to vector<128xf32>
    %230 = vector.shape_cast %229 : vector<128xf32> to vector<1x1x128xf32>
    %231 = vector.broadcast %230 : vector<1x1x128xf32> to vector<8x16x128xf32>
    %232 = arith.mulf %227, %231 : vector<8x16x128xf32>
    %233 = arith.addf %221, %232 : vector<8x16x128xf32>
    %234 = vector.extract_strided_slice %226 {offsets = [0, 1, 0], sizes = [8, 16, 128], strides = [1, 1, 1]} : vector<8x22x128xf32> to vector<8x16x128xf32>
    %235 = vector.extract_strided_slice %4 {offsets = [4, 1, 0], sizes = [1, 1, 128], strides = [1, 1, 1]} : vector<7x7x128xf32> to vector<1x1x128xf32>
    %236 = vector.shape_cast %235 : vector<1x1x128xf32> to vector<128xf32>
    %237 = vector.shape_cast %236 : vector<128xf32> to vector<1x1x128xf32>
    %238 = vector.broadcast %237 : vector<1x1x128xf32> to vector<8x16x128xf32>
    %239 = arith.mulf %234, %238 : vector<8x16x128xf32>
    %240 = arith.addf %233, %239 : vector<8x16x128xf32>
    %241 = vector.extract_strided_slice %226 {offsets = [0, 2, 0], sizes = [8, 16, 128], strides = [1, 1, 1]} : vector<8x22x128xf32> to vector<8x16x128xf32>
    %242 = vector.extract_strided_slice %4 {offsets = [4, 2, 0], sizes = [1, 1, 128], strides = [1, 1, 1]} : vector<7x7x128xf32> to vector<1x1x128xf32>
    %243 = vector.shape_cast %242 : vector<1x1x128xf32> to vector<128xf32>
    %244 = vector.shape_cast %243 : vector<128xf32> to vector<1x1x128xf32>
    %245 = vector.broadcast %244 : vector<1x1x128xf32> to vector<8x16x128xf32>
    %246 = arith.mulf %241, %245 : vector<8x16x128xf32>
    %247 = arith.addf %240, %246 : vector<8x16x128xf32>
    %248 = vector.extract_strided_slice %226 {offsets = [0, 3, 0], sizes = [8, 16, 128], strides = [1, 1, 1]} : vector<8x22x128xf32> to vector<8x16x128xf32>
    %249 = vector.extract_strided_slice %4 {offsets = [4, 3, 0], sizes = [1, 1, 128], strides = [1, 1, 1]} : vector<7x7x128xf32> to vector<1x1x128xf32>
    %250 = vector.shape_cast %249 : vector<1x1x128xf32> to vector<128xf32>
    %251 = vector.shape_cast %250 : vector<128xf32> to vector<1x1x128xf32>
    %252 = vector.broadcast %251 : vector<1x1x128xf32> to vector<8x16x128xf32>
    %253 = arith.mulf %248, %252 : vector<8x16x128xf32>
    %254 = arith.addf %247, %253 : vector<8x16x128xf32>
    %255 = vector.extract_strided_slice %226 {offsets = [0, 4, 0], sizes = [8, 16, 128], strides = [1, 1, 1]} : vector<8x22x128xf32> to vector<8x16x128xf32>
    %256 = vector.extract_strided_slice %4 {offsets = [4, 4, 0], sizes = [1, 1, 128], strides = [1, 1, 1]} : vector<7x7x128xf32> to vector<1x1x128xf32>
    %257 = vector.shape_cast %256 : vector<1x1x128xf32> to vector<128xf32>
    %258 = vector.shape_cast %257 : vector<128xf32> to vector<1x1x128xf32>
    %259 = vector.broadcast %258 : vector<1x1x128xf32> to vector<8x16x128xf32>
    %260 = arith.mulf %255, %259 : vector<8x16x128xf32>
    %261 = arith.addf %254, %260 : vector<8x16x128xf32>
    %262 = vector.extract_strided_slice %226 {offsets = [0, 5, 0], sizes = [8, 16, 128], strides = [1, 1, 1]} : vector<8x22x128xf32> to vector<8x16x128xf32>
    %263 = vector.extract_strided_slice %4 {offsets = [4, 5, 0], sizes = [1, 1, 128], strides = [1, 1, 1]} : vector<7x7x128xf32> to vector<1x1x128xf32>
    %264 = vector.shape_cast %263 : vector<1x1x128xf32> to vector<128xf32>
    %265 = vector.shape_cast %264 : vector<128xf32> to vector<1x1x128xf32>
    %266 = vector.broadcast %265 : vector<1x1x128xf32> to vector<8x16x128xf32>
    %267 = arith.mulf %262, %266 : vector<8x16x128xf32>
    %268 = arith.addf %261, %267 : vector<8x16x128xf32>
    %269 = vector.extract_strided_slice %226 {offsets = [0, 6, 0], sizes = [8, 16, 128], strides = [1, 1, 1]} : vector<8x22x128xf32> to vector<8x16x128xf32>
    %270 = vector.extract_strided_slice %4 {offsets = [4, 6, 0], sizes = [1, 1, 128], strides = [1, 1, 1]} : vector<7x7x128xf32> to vector<1x1x128xf32>
    %271 = vector.shape_cast %270 : vector<1x1x128xf32> to vector<128xf32>
    %272 = vector.shape_cast %271 : vector<128xf32> to vector<1x1x128xf32>
    %273 = vector.broadcast %272 : vector<1x1x128xf32> to vector<8x16x128xf32>
    %274 = arith.mulf %269, %273 : vector<8x16x128xf32>
    %275 = arith.addf %268, %274 : vector<8x16x128xf32>
    %c0_i32_24 = arith.constant 0 : i32
    %276 = arith.addi %1, %c0_i32_24 : i32
    %c5_i32 = arith.constant 5 : i32
    %277 = arith.addi %276, %c5_i32 : i32
    %c0_25 = arith.constant 0 : index
    %278 = arith.index_cast %277 : i32 to index
    %c0_26 = arith.constant 0 : index
    %c0_27 = arith.constant 0 : index
    %279 = vector.load %arg3[%c0_25, %278, %c0_26, %c0_27] : memref<1x22x22x128xf32, #tpu.memory_space<vmem>>, vector<1x8x22x128xf32>
    %280 = vector.shape_cast %279 : vector<1x8x22x128xf32> to vector<8x22x128xf32>
    %281 = vector.extract_strided_slice %280 {offsets = [0, 0, 0], sizes = [8, 16, 128], strides = [1, 1, 1]} : vector<8x22x128xf32> to vector<8x16x128xf32>
    %282 = vector.extract_strided_slice %4 {offsets = [5, 0, 0], sizes = [1, 1, 128], strides = [1, 1, 1]} : vector<7x7x128xf32> to vector<1x1x128xf32>
    %283 = vector.shape_cast %282 : vector<1x1x128xf32> to vector<128xf32>
    %284 = vector.shape_cast %283 : vector<128xf32> to vector<1x1x128xf32>
    %285 = vector.broadcast %284 : vector<1x1x128xf32> to vector<8x16x128xf32>
    %286 = arith.mulf %281, %285 : vector<8x16x128xf32>
    %287 = arith.addf %275, %286 : vector<8x16x128xf32>
    %288 = vector.extract_strided_slice %280 {offsets = [0, 1, 0], sizes = [8, 16, 128], strides = [1, 1, 1]} : vector<8x22x128xf32> to vector<8x16x128xf32>
    %289 = vector.extract_strided_slice %4 {offsets = [5, 1, 0], sizes = [1, 1, 128], strides = [1, 1, 1]} : vector<7x7x128xf32> to vector<1x1x128xf32>
    %290 = vector.shape_cast %289 : vector<1x1x128xf32> to vector<128xf32>
    %291 = vector.shape_cast %290 : vector<128xf32> to vector<1x1x128xf32>
    %292 = vector.broadcast %291 : vector<1x1x128xf32> to vector<8x16x128xf32>
    %293 = arith.mulf %288, %292 : vector<8x16x128xf32>
    %294 = arith.addf %287, %293 : vector<8x16x128xf32>
    %295 = vector.extract_strided_slice %280 {offsets = [0, 2, 0], sizes = [8, 16, 128], strides = [1, 1, 1]} : vector<8x22x128xf32> to vector<8x16x128xf32>
    %296 = vector.extract_strided_slice %4 {offsets = [5, 2, 0], sizes = [1, 1, 128], strides = [1, 1, 1]} : vector<7x7x128xf32> to vector<1x1x128xf32>
    %297 = vector.shape_cast %296 : vector<1x1x128xf32> to vector<128xf32>
    %298 = vector.shape_cast %297 : vector<128xf32> to vector<1x1x128xf32>
    %299 = vector.broadcast %298 : vector<1x1x128xf32> to vector<8x16x128xf32>
    %300 = arith.mulf %295, %299 : vector<8x16x128xf32>
    %301 = arith.addf %294, %300 : vector<8x16x128xf32>
    %302 = vector.extract_strided_slice %280 {offsets = [0, 3, 0], sizes = [8, 16, 128], strides = [1, 1, 1]} : vector<8x22x128xf32> to vector<8x16x128xf32>
    %303 = vector.extract_strided_slice %4 {offsets = [5, 3, 0], sizes = [1, 1, 128], strides = [1, 1, 1]} : vector<7x7x128xf32> to vector<1x1x128xf32>
    %304 = vector.shape_cast %303 : vector<1x1x128xf32> to vector<128xf32>
    %305 = vector.shape_cast %304 : vector<128xf32> to vector<1x1x128xf32>
    %306 = vector.broadcast %305 : vector<1x1x128xf32> to vector<8x16x128xf32>
    %307 = arith.mulf %302, %306 : vector<8x16x128xf32>
    %308 = arith.addf %301, %307 : vector<8x16x128xf32>
    %309 = vector.extract_strided_slice %280 {offsets = [0, 4, 0], sizes = [8, 16, 128], strides = [1, 1, 1]} : vector<8x22x128xf32> to vector<8x16x128xf32>
    %310 = vector.extract_strided_slice %4 {offsets = [5, 4, 0], sizes = [1, 1, 128], strides = [1, 1, 1]} : vector<7x7x128xf32> to vector<1x1x128xf32>
    %311 = vector.shape_cast %310 : vector<1x1x128xf32> to vector<128xf32>
    %312 = vector.shape_cast %311 : vector<128xf32> to vector<1x1x128xf32>
    %313 = vector.broadcast %312 : vector<1x1x128xf32> to vector<8x16x128xf32>
    %314 = arith.mulf %309, %313 : vector<8x16x128xf32>
    %315 = arith.addf %308, %314 : vector<8x16x128xf32>
    %316 = vector.extract_strided_slice %280 {offsets = [0, 5, 0], sizes = [8, 16, 128], strides = [1, 1, 1]} : vector<8x22x128xf32> to vector<8x16x128xf32>
    %317 = vector.extract_strided_slice %4 {offsets = [5, 5, 0], sizes = [1, 1, 128], strides = [1, 1, 1]} : vector<7x7x128xf32> to vector<1x1x128xf32>
    %318 = vector.shape_cast %317 : vector<1x1x128xf32> to vector<128xf32>
    %319 = vector.shape_cast %318 : vector<128xf32> to vector<1x1x128xf32>
    %320 = vector.broadcast %319 : vector<1x1x128xf32> to vector<8x16x128xf32>
    %321 = arith.mulf %316, %320 : vector<8x16x128xf32>
    %322 = arith.addf %315, %321 : vector<8x16x128xf32>
    %323 = vector.extract_strided_slice %280 {offsets = [0, 6, 0], sizes = [8, 16, 128], strides = [1, 1, 1]} : vector<8x22x128xf32> to vector<8x16x128xf32>
    %324 = vector.extract_strided_slice %4 {offsets = [5, 6, 0], sizes = [1, 1, 128], strides = [1, 1, 1]} : vector<7x7x128xf32> to vector<1x1x128xf32>
    %325 = vector.shape_cast %324 : vector<1x1x128xf32> to vector<128xf32>
    %326 = vector.shape_cast %325 : vector<128xf32> to vector<1x1x128xf32>
    %327 = vector.broadcast %326 : vector<1x1x128xf32> to vector<8x16x128xf32>
    %328 = arith.mulf %323, %327 : vector<8x16x128xf32>
    %329 = arith.addf %322, %328 : vector<8x16x128xf32>
    %c0_i32_28 = arith.constant 0 : i32
    %330 = arith.addi %1, %c0_i32_28 : i32
    %c6_i32 = arith.constant 6 : i32
    %331 = arith.addi %330, %c6_i32 : i32
    %c0_29 = arith.constant 0 : index
    %332 = arith.index_cast %331 : i32 to index
    %c0_30 = arith.constant 0 : index
    %c0_31 = arith.constant 0 : index
    %333 = vector.load %arg3[%c0_29, %332, %c0_30, %c0_31] : memref<1x22x22x128xf32, #tpu.memory_space<vmem>>, vector<1x8x22x128xf32>
    %334 = vector.shape_cast %333 : vector<1x8x22x128xf32> to vector<8x22x128xf32>
    %335 = vector.extract_strided_slice %334 {offsets = [0, 0, 0], sizes = [8, 16, 128], strides = [1, 1, 1]} : vector<8x22x128xf32> to vector<8x16x128xf32>
    %336 = vector.extract_strided_slice %4 {offsets = [6, 0, 0], sizes = [1, 1, 128], strides = [1, 1, 1]} : vector<7x7x128xf32> to vector<1x1x128xf32>
    %337 = vector.shape_cast %336 : vector<1x1x128xf32> to vector<128xf32>
    %338 = vector.shape_cast %337 : vector<128xf32> to vector<1x1x128xf32>
    %339 = vector.broadcast %338 : vector<1x1x128xf32> to vector<8x16x128xf32>
    %340 = arith.mulf %335, %339 : vector<8x16x128xf32>
    %341 = arith.addf %329, %340 : vector<8x16x128xf32>
    %342 = vector.extract_strided_slice %334 {offsets = [0, 1, 0], sizes = [8, 16, 128], strides = [1, 1, 1]} : vector<8x22x128xf32> to vector<8x16x128xf32>
    %343 = vector.extract_strided_slice %4 {offsets = [6, 1, 0], sizes = [1, 1, 128], strides = [1, 1, 1]} : vector<7x7x128xf32> to vector<1x1x128xf32>
    %344 = vector.shape_cast %343 : vector<1x1x128xf32> to vector<128xf32>
    %345 = vector.shape_cast %344 : vector<128xf32> to vector<1x1x128xf32>
    %346 = vector.broadcast %345 : vector<1x1x128xf32> to vector<8x16x128xf32>
    %347 = arith.mulf %342, %346 : vector<8x16x128xf32>
    %348 = arith.addf %341, %347 : vector<8x16x128xf32>
    %349 = vector.extract_strided_slice %334 {offsets = [0, 2, 0], sizes = [8, 16, 128], strides = [1, 1, 1]} : vector<8x22x128xf32> to vector<8x16x128xf32>
    %350 = vector.extract_strided_slice %4 {offsets = [6, 2, 0], sizes = [1, 1, 128], strides = [1, 1, 1]} : vector<7x7x128xf32> to vector<1x1x128xf32>
    %351 = vector.shape_cast %350 : vector<1x1x128xf32> to vector<128xf32>
    %352 = vector.shape_cast %351 : vector<128xf32> to vector<1x1x128xf32>
    %353 = vector.broadcast %352 : vector<1x1x128xf32> to vector<8x16x128xf32>
    %354 = arith.mulf %349, %353 : vector<8x16x128xf32>
    %355 = arith.addf %348, %354 : vector<8x16x128xf32>
    %356 = vector.extract_strided_slice %334 {offsets = [0, 3, 0], sizes = [8, 16, 128], strides = [1, 1, 1]} : vector<8x22x128xf32> to vector<8x16x128xf32>
    %357 = vector.extract_strided_slice %4 {offsets = [6, 3, 0], sizes = [1, 1, 128], strides = [1, 1, 1]} : vector<7x7x128xf32> to vector<1x1x128xf32>
    %358 = vector.shape_cast %357 : vector<1x1x128xf32> to vector<128xf32>
    %359 = vector.shape_cast %358 : vector<128xf32> to vector<1x1x128xf32>
    %360 = vector.broadcast %359 : vector<1x1x128xf32> to vector<8x16x128xf32>
    %361 = arith.mulf %356, %360 : vector<8x16x128xf32>
    %362 = arith.addf %355, %361 : vector<8x16x128xf32>
    %363 = vector.extract_strided_slice %334 {offsets = [0, 4, 0], sizes = [8, 16, 128], strides = [1, 1, 1]} : vector<8x22x128xf32> to vector<8x16x128xf32>
    %364 = vector.extract_strided_slice %4 {offsets = [6, 4, 0], sizes = [1, 1, 128], strides = [1, 1, 1]} : vector<7x7x128xf32> to vector<1x1x128xf32>
    %365 = vector.shape_cast %364 : vector<1x1x128xf32> to vector<128xf32>
    %366 = vector.shape_cast %365 : vector<128xf32> to vector<1x1x128xf32>
    %367 = vector.broadcast %366 : vector<1x1x128xf32> to vector<8x16x128xf32>
    %368 = arith.mulf %363, %367 : vector<8x16x128xf32>
    %369 = arith.addf %362, %368 : vector<8x16x128xf32>
    %370 = vector.extract_strided_slice %334 {offsets = [0, 5, 0], sizes = [8, 16, 128], strides = [1, 1, 1]} : vector<8x22x128xf32> to vector<8x16x128xf32>
    %371 = vector.extract_strided_slice %4 {offsets = [6, 5, 0], sizes = [1, 1, 128], strides = [1, 1, 1]} : vector<7x7x128xf32> to vector<1x1x128xf32>
    %372 = vector.shape_cast %371 : vector<1x1x128xf32> to vector<128xf32>
    %373 = vector.shape_cast %372 : vector<128xf32> to vector<1x1x128xf32>
    %374 = vector.broadcast %373 : vector<1x1x128xf32> to vector<8x16x128xf32>
    %375 = arith.mulf %370, %374 : vector<8x16x128xf32>
    %376 = arith.addf %369, %375 : vector<8x16x128xf32>
    %377 = vector.extract_strided_slice %334 {offsets = [0, 6, 0], sizes = [8, 16, 128], strides = [1, 1, 1]} : vector<8x22x128xf32> to vector<8x16x128xf32>
    %378 = vector.extract_strided_slice %4 {offsets = [6, 6, 0], sizes = [1, 1, 128], strides = [1, 1, 1]} : vector<7x7x128xf32> to vector<1x1x128xf32>
    %379 = vector.shape_cast %378 : vector<1x1x128xf32> to vector<128xf32>
    %380 = vector.shape_cast %379 : vector<128xf32> to vector<1x1x128xf32>
    %381 = vector.broadcast %380 : vector<1x1x128xf32> to vector<8x16x128xf32>
    %382 = arith.mulf %377, %381 : vector<8x16x128xf32>
    %383 = arith.addf %376, %382 : vector<8x16x128xf32>
    %384 = vector.shape_cast %3 : vector<128xf32> to vector<1x1x128xf32>
    %385 = vector.broadcast %384 : vector<1x1x128xf32> to vector<8x16x128xf32>
    %386 = arith.addf %383, %385 : vector<8x16x128xf32>
    %c0_32 = arith.constant 0 : index
    %c0_33 = arith.constant 0 : index
    %c0_34 = arith.constant 0 : index
    %c0_35 = arith.constant 0 : index
    %387 = vector.load %arg6[%c0_32, %c0_33, %c0_34, %c0_35] : memref<1x8x16x128xf32, #tpu.memory_space<vmem>>, vector<1x8x16x128xf32>
    %388 = vector.shape_cast %387 : vector<1x8x16x128xf32> to vector<8x16x128xf32>
    %389 = vector.shape_cast %386 : vector<8x16x128xf32> to vector<1x8x16x128xf32>
    tpu.vector_store %arg6[%c0_32, %c0_33, %c0_34, %c0_35], %389 {strides = array<i32>} : memref<1x8x16x128xf32, #tpu.memory_space<vmem>>, vector<1x8x16x128xf32>,
    return
  }
  func.func @transform_0(%arg0: i32, %arg1: i32, %arg2: i32) -> (i32, i32, i32, i32) {
    %c0_i32 = arith.constant 0 : i32
    %c0_i32_0 = arith.constant 0 : i32
    %c0_i32_1 = arith.constant 0 : i32
    return %arg0, %c0_i32, %c0_i32_0, %arg1 : i32, i32, i32, i32
  }
  func.func @transform_1(%arg0: i32, %arg1: i32, %arg2: i32) -> (i32, i32, i32) {
    %c0_i32 = arith.constant 0 : i32
    %c0_i32_0 = arith.constant 0 : i32
    %c0_i32_1 = arith.constant 0 : i32
    return %c0_i32, %c0_i32_0, %arg1 : i32, i32, i32
  }
  func.func @transform_2(%arg0: i32, %arg1: i32, %arg2: i32) -> (i32, i32) {
    %c0_i32 = arith.constant 0 : i32
    %c0_i32_0 = arith.constant 0 : i32
    return %c0_i32, %arg1 : i32, i32
  }
  func.func @transform_3(%arg0: i32, %arg1: i32, %arg2: i32) -> (i32, i32, i32, i32) {
    %c0_i32 = arith.constant 0 : i32
    %c0_i32_0 = arith.constant 0 : i32
    return %arg0, %arg2, %c0_i32, %arg1 : i32, i32, i32, i32
  }
}

</mosaic_0001>

<llo_original>
// kernel: tpu_custom_call.1
$region0: #{tpu_custom_call.1}
  #allocation0 [shape = 'u32[]', space=smem, size = 0x4, offset = 0x4, fixed_abs, tag = 'smem constant byte address 0x4 - core index']
  #allocation1 [shape = 'u32[144,128]{1,0:T(1,128)}', space=vmem, size = 0x12000, scoped, tag = 'internal scratch']
  %s0 = inlined_call_operand.vmem [shape: f32[2,22,22,128], index: 0, kind: input, shape index: {}]
  %s1 = inlined_call_operand.vmem [shape: f32[7,7,128], index: 1, kind: input, shape index: {}]
  %s2 = inlined_call_operand.vmem [shape: f32[1,128], index: 2, kind: input, shape index: {}]
  %s3 = inlined_call_operand.hbm [shape: f32[2,16,16,128], index: 3, kind: output, shape index: {}]
  %s4 = sld [smem:[#allocation0]]
  $region45: #{tpu_custom_call.1} parent=0
    _
  %s6 = ssub.s32 1, %s4
  %s7 = scalar_select 0, %s6, %s4
  $region1: #{tpu_custom_call.1} parent=0
    #allocation2 [shape = 'u8[131072]{0}', space=vmem, size = 0x20000, scoped, tag = 'output window, operand 0']
    #allocation3 [shape = 's32[2]{0}', space=sflag, size = 0x8, scoped, tag = 'scoped memory for tpu_custom_call.1']
    %8 = vsyncpa [#allocation3], 0
    %s9 = scalar_lea.sflag [#allocation3], 1
    %10 = vsyncpa %s9, 0
    loop: start=0, step=1, limit=6
    $region2: #{tpu_custom_call.1} parent=1 // loop_pre_header
      _
    $region3: #{tpu_custom_call.1} parent=1 // loop_header
      %s12 = sphi 0, %s16
      %p13 = scmp.ge.s32.totalorder %s12, 6
      %s19 = sphi 0, %s38
      %s20 = sphi 0, %s34
      %s21 = sphi 0, %s30
      %s22 = sphi 0, %s19
      %s23 = sphi 0, %s20
      %s24 = sphi 0, %s21
      %s25 = sphi 0, %s22
      %s26 = sphi 0, %s23
      %s27 = sphi 0, %s24
      %s43 = sphi 0, %s45
      %s46 = sphi 0, %s43
      %s47 = sphi 0, %s46
      %s63 = sphi 0, %s47
      %s69 = sphi 0, %s71
      %s72 = sphi 0, %s69
      %s73 = sphi 0, %s72
      %s89 = sphi 0, %s73
      %s95 = sphi 0, %s97
      %s98 = sphi 0, %s95
      %s99 = sphi 0, %s98
      %s115 = sphi 0, %s99
      %s125 = sphi 0, %s127
      %s128 = sphi 0, %s125
      %s129 = sphi 0, %s128
      %s145 = sphi 0, %s129
    $region4: #{tpu_custom_call.1} parent=1 // loop_header_branch
      %15 = sbr.rel (%p13) target = $region8
    $region5: #{tpu_custom_call.1} parent=1 // loop_body
      %s17 = ssub.s32 %s12, 1
      %s18 = ssub.s32 %s12, 2
      %s28 = sadd.s32 1, %s21
      %p29 = scmp.ge.s32.totalorder %s28, 2
      %s30 = scalar_select %p29, 0, %s28
      %s31 = sadd.s32 1, %s20
      %s32 = scalar_select %p29, %s31, %s20
      %p33 = scmp.ge.s32.totalorder %s32, 1
      %s34 = scalar_select %p33, 0, %s32
      %s35 = sadd.s32 1, %s19
      %s36 = scalar_select %p33, %s35, %s19
      %p37 = scmp.ge.s32.totalorder %s36, 2
      %s38 = scalar_select %p37, 0, %s36
      %s39 = ssub.s32 %s19, %s38
      %s40 = ssub.s32 %s20, %s34
      %s41 = sor.u32 %s39, %s40
      %p42 = scmp.eq.s32.totalorder %s41, 0
      %s44 = sadd.s32 %s43, 1
      %s45 = scalar_select %p42, %s43, %s44
      %p48 = pneg %p42
      %p49 = scmp.eq.s32.totalorder %s12, 3
      %p50 = por %p48, %p49
      %p51 = scmp.ne.s32.totalorder %s43, %s46
      %p52 = scmp.eq.s32.totalorder %s12, 0
      %p53 = por %p51, %p52
      %p54 = scmp.ne.s32.totalorder %s43, %s46
      %p55 = scmp.eq.s32.totalorder %s17, 3
      %p56 = por %p54, %p55
      %p57 = scmp.ne.s32.totalorder %s46, %s47
      %p58 = scmp.eq.s32.totalorder %s17, 0
      %p59 = por %p57, %p58
      %p60 = scmp.ne.s32.totalorder %s46, %s47
      %p61 = scmp.eq.s32.totalorder %s18, 3
      %p62 = por %p60, %p61
      %p64 = scmp.ne.s32.totalorder %s47, %s63
      %p65 = scmp.eq.s32.totalorder %s18, 0
      %p66 = por %p64, %p65
      %s67 = ssub.s32 %s20, %s34
      %p68 = scmp.eq.s32.totalorder %s67, 0
      %s70 = sadd.s32 %s69, 1
      %s71 = scalar_select %p68, %s69, %s70
      %p74 = pneg %p68
      %p75 = scmp.eq.s32.totalorder %s12, 3
      %p76 = por %p74, %p75
      %p77 = scmp.ne.s32.totalorder %s69, %s72
      %p78 = scmp.eq.s32.totalorder %s12, 0
      %p79 = por %p77, %p78
      %p80 = scmp.ne.s32.totalorder %s69, %s72
      %p81 = scmp.eq.s32.totalorder %s17, 3
      %p82 = por %p80, %p81
      %p83 = scmp.ne.s32.totalorder %s72, %s73
      %p84 = scmp.eq.s32.totalorder %s17, 0
      %p85 = por %p83, %p84
      %p86 = scmp.ne.s32.totalorder %s72, %s73
      %p87 = scmp.eq.s32.totalorder %s18, 3
      %p88 = por %p86, %p87
      %p90 = scmp.ne.s32.totalorder %s73, %s89
      %p91 = scmp.eq.s32.totalorder %s18, 0
      %p92 = por %p90, %p91
      %s93 = ssub.s32 %s20, %s34
      %p94 = scmp.eq.s32.totalorder %s93, 0
      %s96 = sadd.s32 %s95, 1
      %s97 = scalar_select %p94, %s95, %s96
      %p100 = pneg %p94
      %p101 = scmp.eq.s32.totalorder %s12, 3
      %p102 = por %p100, %p101
      %p103 = scmp.ne.s32.totalorder %s95, %s98
      %p104 = scmp.eq.s32.totalorder %s12, 0
      %p105 = por %p103, %p104
      %p106 = scmp.ne.s32.totalorder %s95, %s98
      %p107 = scmp.eq.s32.totalorder %s17, 3
      %p108 = por %p106, %p107
      %p109 = scmp.ne.s32.totalorder %s98, %s99
      %p110 = scmp.eq.s32.totalorder %s17, 0
      %p111 = por %p109, %p110
      %p112 = scmp.ne.s32.totalorder %s98, %s99
      %p113 = scmp.eq.s32.totalorder %s18, 3
      %p114 = por %p112, %p113
      %p116 = scmp.ne.s32.totalorder %s99, %s115
      %p117 = scmp.eq.s32.totalorder %s18, 0
      %p118 = por %p116, %p117
      %s119 = ssub.s32 %s19, %s38
      %s120 = ssub.s32 %s21, %s30
      %s121 = sor.u32 %s119, %s120
      %s122 = ssub.s32 %s20, %s34
      %s123 = sor.u32 %s121, %s122
      %p124 = scmp.eq.s32.totalorder %s123, 0
      %s126 = sadd.s32 %s125, 1
      %s127 = scalar_select %p124, %s125, %s126
      %p130 = pneg %p124
      %p131 = scmp.eq.s32.totalorder %s12, 3
      %p132 = por %p130, %p131
      %p133 = scmp.ne.s32.totalorder %s125, %s128
      %p134 = scmp.eq.s32.totalorder %s12, 0
      %p135 = por %p133, %p134
      %p136 = scmp.ne.s32.totalorder %s125, %s128
      %p137 = scmp.eq.s32.totalorder %s17, 3
      %p138 = por %p136, %p137
      %p139 = scmp.ne.s32.totalorder %s128, %s129
      %p140 = scmp.eq.s32.totalorder %s17, 0
      %p141 = por %p139, %p140
      %p142 = scmp.ne.s32.totalorder %s128, %s129
      %p143 = scmp.eq.s32.totalorder %s18, 3
      %p144 = por %p142, %p143
      %p146 = scmp.ne.s32.totalorder %s129, %s145
      %p147 = scmp.eq.s32.totalorder %s18, 0
      %p148 = por %p146, %p147
      %p149 = scmp.le.s32.totalorder 1, %s12
      %p150 = scmp.lt.s32.totalorder %s12, 5
      %p151 = pnand %p149, %p150
      %p152 = pneg %p151
      // Predicated region
      $region9: #{tpu_custom_call.1} parent=5 // pred_check
        _
      $region10: #{tpu_custom_call.1} parent=5 // pred_check_branch
        %154 = sbr.rel (%p151) target = $region12
      $region11: #{tpu_custom_call.1} parent=5 // pred_region
        %s155 = ssub.s32 %s12, 1
        // Predicated region
        $region13: #{tpu_custom_call.1} parent=11 // pred_check
          %p156 = pneg %p85
        $region14: #{tpu_custom_call.1} parent=11 // pred_check_branch
          %158 = sbr.rel (%p156) target = $region16
        $region15: #{tpu_custom_call.1} parent=11 // pred_region
          %p159 = scmp.lt.s32.totalorder %s23, 0
          %s160 = scalar_select %p159, %s23, 0
          %s161 = smul.addr %s160, 8
          %s162 = scalar_lea.vmem %s1, %s161
        $region16: #{tpu_custom_call.1} parent=11 // pred_fallthru
          _
        // Predicated region
        $region17: #{tpu_custom_call.1} parent=11 // pred_check
          %p163 = pneg %p111
        $region18: #{tpu_custom_call.1} parent=11 // pred_check_branch
          %165 = sbr.rel (%p163) target = $region20
        $region19: #{tpu_custom_call.1} parent=11 // pred_region
          %p166 = scmp.lt.s32.totalorder %s23, 0
          %s167 = scalar_select %p166, %s23, 0
          %s168 = scalar_lea.vmem %s2, %s167
        $region20: #{tpu_custom_call.1} parent=11 // pred_fallthru
          _
      $region12: #{tpu_custom_call.1} parent=5 // pred_fallthru
        _
      %p169 = scmp.lt.s32.totalorder %s12, 4
      // Predicated region
      $region21: #{tpu_custom_call.1} parent=5 // pred_check
        %p170 = pneg %p169
      $region22: #{tpu_custom_call.1} parent=5 // pred_check_branch
        %172 = sbr.rel (%p170) target = $region24
      $region23: #{tpu_custom_call.1} parent=5 // pred_region
        // Predicated region
        $region25: #{tpu_custom_call.1} parent=23 // pred_check
          %p173 = pneg %p53
        $region26: #{tpu_custom_call.1} parent=23 // pred_check_branch
          %175 = sbr.rel (%p173) target = $region28
        $region27: #{tpu_custom_call.1} parent=23 // pred_region
          %p176 = scmp.lt.s32.totalorder %s19, 1
          %s177 = scalar_select %p176, %s19, 1
          %p178 = scmp.lt.s32.totalorder %s20, 0
          %s179 = scalar_select %p178, %s20, 0
          %s180 = smul.addr %s177, 66
          %s181 = sadd.s32 %s179, %s180
          %s182 = smul.addr %s181, 8
          %s183 = scalar_lea.vmem %s0, %s182
        $region28: #{tpu_custom_call.1} parent=23 // pred_fallthru
          _
      $region24: #{tpu_custom_call.1} parent=5 // pred_fallthru
        _
      %p184 = scmp.le.s32.totalorder 1, %s12
      %p185 = scmp.lt.s32.totalorder %s12, 5
      %p186 = pnand %p184, %p185
      %p187 = pneg %p186
      // Predicated region
      $region29: #{tpu_custom_call.1} parent=5 // pred_check
        _
      $region30: #{tpu_custom_call.1} parent=5 // pred_check_branch
        %189 = sbr.rel (%p186) target = $region32
      $region31: #{tpu_custom_call.1} parent=5 // pred_region
        %s190 = ssub.s32 %s12, 1
        %p191 = scmp.lt.s32.totalorder %s22, 1
        %s192 = scalar_select %p191, %s22, 1
        %p193 = scmp.lt.s32.totalorder %s23, 0
        %s194 = scalar_select %p193, %s23, 0
        %s195 = smul.addr %s192, 66
        %s196 = sadd.s32 %s194, %s195
        %s197 = smul.addr %s196, 8
        %s198 = scalar_lea.vmem %s0, %s197
        %p199 = pneg %p59
        %p200 = pneg %p56
        %p201 = scmp.lt.s32.totalorder %s23, 0
        %s202 = scalar_select %p201, %s23, 0
        %s203 = smul.addr %s202, 8
        %s204 = scalar_lea.vmem %s1, %s203
        %p205 = pneg %p85
        %p206 = pneg %p82
        %p207 = scmp.lt.s32.totalorder %s23, 0
        %s208 = scalar_select %p207, %s23, 0
        %s209 = scalar_lea.vmem %s2, %s208
        %p210 = pneg %p111
        %p211 = pneg %p108
        %p212 = pneg %p141
        %p213 = pneg %p138
        %s214 = sand.u32 %s128, 1
        %s215 = scalar_lea.sflag [#allocation3], %s214
        %s216 = sand.u32 %s128, 1
        %s217 = smul.addr %s216, 128
        %s218 = scalar_lea.vmem [#allocation2], %s217
        %p219 = scmp.lt.s32.totalorder %s22, 1
        %s220 = scalar_select %p219, %s22, 1
        %p221 = scmp.lt.s32.totalorder %s23, 0
        %s222 = scalar_select %p221, %s23, 0
        %s223 = smul.addr %s220, 66
        %s224 = sadd.s32 %s222, %s223
        %s225 = smul.addr %s224, 8
        %s226 = scalar_lea.vmem %s0, %s225
        %p227 = scmp.lt.s32.totalorder %s23, 0
        %s228 = scalar_select %p227, %s23, 0
        %s229 = smul.addr %s228, 8
        %s230 = scalar_lea.vmem %s1, %s229
        %p231 = scmp.lt.s32.totalorder %s23, 0
        %s232 = scalar_select %p231, %s23, 0
        %s233 = scalar_lea.vmem %s2, %s232
        %s234 = smul.u32 8, %s24
        %s235 = smul.u32 %s24, 8
        %v236 = vld [vmem:[%s233] sm:$0x1]
        %v237 = vld [vmem:[%s230] sm:$0x7f]
        %v238 = vld [vmem:[%s230 + $0x8] sm:$0x7f]
        %v239 = vld [vmem:[%s230 + $0x10] sm:$0x7f]
        %v240 = vld [vmem:[%s230 + $0x18] sm:$0x7f]
        %v241 = vld [vmem:[%s230 + $0x20] sm:$0x7f]
        %v242 = vld [vmem:[%s230 + $0x28] sm:$0x7f]
        %v243 = vld [vmem:[%s230 + $0x30] sm:$0x7f]
        %s244 = smul.u32 %s235, 24
        %s245 = scalar_lea.vmem %s226, %s244
        %v246 = vld [vmem:[%s245] sm:$0xff]
        %v247 = vld [vmem:[%s245 + $0x8] sm:$0xff]
        %v248 = vld [vmem:[%s245 + $0x10] sm:$0x3f]
        %v249 = vld [vmem:[%s245 + $0x18] sm:$0xff]
        %v250 = vld [vmem:[%s245 + $0x20] sm:$0xff]
        %v251 = vld [vmem:[%s245 + $0x28] sm:$0x3f]
        %v252 = vld [vmem:[%s245 + $0x30] sm:$0xff]
        %v253 = vld [vmem:[%s245 + $0x38] sm:$0xff]
        %v254 = vld [vmem:[%s245 + $0x40] sm:$0x3f]
        %v255 = vld [vmem:[%s245 + $0x48] sm:$0xff]
        %v256 = vld [vmem:[%s245 + $0x50] sm:$0xff]
        %v257 = vld [vmem:[%s245 + $0x58] sm:$0x3f]
        %v258 = vld [vmem:[%s245 + $0x60] sm:$0xff]
        %v259 = vld [vmem:[%s245 + $0x68] sm:$0xff]
        %v260 = vld [vmem:[%s245 + $0x70] sm:$0x3f]
        %v261 = vld [vmem:[%s245 + $0x78] sm:$0xff]
        %v262 = vld [vmem:[%s245 + $0x80] sm:$0xff]
        %v263 = vld [vmem:[%s245 + $0x88] sm:$0x3f]
        %v264 = vld [vmem:[%s245 + $0x90] sm:$0xff]
        %v265 = vld [vmem:[%s245 + $0x98] sm:$0xff]
        %v266 = vld [vmem:[%s245 + $0xa0] sm:$0x3f]
        %v267 = vld [vmem:[%s245 + $0xa8] sm:$0xff]
        %v268 = vld [vmem:[%s245 + $0xb0] sm:$0xff]
        %v269 = vld [vmem:[%s245 + $0xb8] sm:$0x3f]
        %v270 = vlaneseq
        %v271 = vshrl.u32 %v270, 7
        %v272 = vsub.s32 0, %v271
        %v273 = vrot.slane %v237, %v272
        %v274 = vmul.f32 %v246, %v273
        %v275 = vmul.f32 %v247, %v273
        %v276 = vmul.f32 %v249, %v273
        %v277 = vmul.f32 %v250, %v273
        %v278 = vmul.f32 %v252, %v273
        %v279 = vmul.f32 %v253, %v273
        %v280 = vmul.f32 %v255, %v273
        %v281 = vmul.f32 %v256, %v273
        %v282 = vmul.f32 %v258, %v273
        %v283 = vmul.f32 %v259, %v273
        %v284 = vmul.f32 %v261, %v273
        %v285 = vmul.f32 %v262, %v273
        %v286 = vmul.f32 %v264, %v273
        %v287 = vmul.f32 %v265, %v273
        %v288 = vmul.f32 %v267, %v273
        %v289 = vmul.f32 %v268, %v273
        %v290 = vadd.f32 %v274, 0.0
        %v291 = vadd.f32 %v275, 0.0
        %v292 = vadd.f32 %v276, 0.0
        %v293 = vadd.f32 %v277, 0.0
        %v294 = vadd.f32 %v278, 0.0
        %v295 = vadd.f32 %v279, 0.0
        %v296 = vadd.f32 %v280, 0.0
        %v297 = vadd.f32 %v281, 0.0
        %v298 = vadd.f32 %v282, 0.0
        %v299 = vadd.f32 %v283, 0.0
        %v300 = vadd.f32 %v284, 0.0
        %v301 = vadd.f32 %v285, 0.0
        %v302 = vadd.f32 %v286, 0.0
        %v303 = vadd.f32 %v287, 0.0
        %v304 = vadd.f32 %v288, 0.0
        %v305 = vadd.f32 %v289, 0.0
        %v306 = vlaneseq
        %v307 = vshrl.u32 %v306, 7
        %v308 = vsub.s32 1, %v307
        %v309 = vrot.slane %v237, %v308
        %v310 = vmul.f32 %v246, %v309
        %v311 = vmul.f32 %v247, %v309
        %v312 = vmul.f32 %v248, %v309
        %v313 = vmul.f32 %v249, %v309
        %v314 = vmul.f32 %v250, %v309
        %v315 = vmul.f32 %v251, %v309
        %v316 = vmul.f32 %v252, %v309
        %v317 = vmul.f32 %v253, %v309
        %v318 = vmul.f32 %v254, %v309
        %v319 = vmul.f32 %v255, %v309
        %v320 = vmul.f32 %v256, %v309
        %v321 = vmul.f32 %v257, %v309
        %v322 = vmul.f32 %v258, %v309
        %v323 = vmul.f32 %v259, %v309
        %v324 = vmul.f32 %v260, %v309
        %v325 = vmul.f32 %v261, %v309
        %v326 = vmul.f32 %v262, %v309
        %v327 = vmul.f32 %v263, %v309
        %v328 = vmul.f32 %v264, %v309
        %v329 = vmul.f32 %v265, %v309
        %v330 = vmul.f32 %v266, %v309
        %v331 = vmul.f32 %v267, %v309
        %v332 = vmul.f32 %v268, %v309
        %v333 = vmul.f32 %v269, %v309
        %vm358 = vcmask 1046528
        %v359 = vrot.slane %v310, 1
        %v360 = vrot.slane %v311, 1
        %v361 = vsel %vm358, %v359, %v360
        %v362 = vrot.slane %v312, 1
        %v363 = vsel %vm358, %v360, %v362
        %v364 = vrot.slane %v313, 1
        %v365 = vrot.slane %v314, 1
        %v366 = vsel %vm358, %v364, %v365
        %v367 = vrot.slane %v315, 1
        %v368 = vsel %vm358, %v365, %v367
        %v369 = vrot.slane %v316, 1
        %v370 = vrot.slane %v317, 1
        %v371 = vsel %vm358, %v369, %v370
        %v372 = vrot.slane %v318, 1
        %v373 = vsel %vm358, %v370, %v372
        %v374 = vrot.slane %v319, 1
        %v375 = vrot.slane %v320, 1
        %v376 = vsel %vm358, %v374, %v375
        %v377 = vrot.slane %v321, 1
        %v378 = vsel %vm358, %v375, %v377
        %v379 = vrot.slane %v322, 1
        %v380 = vrot.slane %v323, 1
        %v381 = vsel %vm358, %v379, %v380
        %v382 = vrot.slane %v324, 1
        %v383 = vsel %vm358, %v380, %v382
        %v384 = vrot.slane %v325, 1
        %v385 = vrot.slane %v326, 1
        %v386 = vsel %vm358, %v384, %v385
        %v387 = vrot.slane %v327, 1
        %v388 = vsel %vm358, %v385, %v387
        %v389 = vrot.slane %v328, 1
        %v390 = vrot.slane %v329, 1
        %v391 = vsel %vm358, %v389, %v390
        %v392 = vrot.slane %v330, 1
        %v393 = vsel %vm358, %v390, %v392
        %v394 = vrot.slane %v331, 1
        %v395 = vrot.slane %v332, 1
        %v396 = vsel %vm358, %v394, %v395
        %v397 = vrot.slane %v333, 1
        %v398 = vsel %vm358, %v395, %v397
        %v415 = vadd.f32 %v290, %v361
        %v416 = vadd.f32 %v291, %v363
        %v417 = vadd.f32 %v292, %v366
        %v418 = vadd.f32 %v293, %v368
        %v419 = vadd.f32 %v294, %v371
        %v420 = vadd.f32 %v295, %v373
        %v421 = vadd.f32 %v296, %v376
        %v422 = vadd.f32 %v297, %v378
        %v423 = vadd.f32 %v298, %v381
        %v424 = vadd.f32 %v299, %v383
        %v425 = vadd.f32 %v300, %v386
        %v426 = vadd.f32 %v301, %v388
        %v427 = vadd.f32 %v302, %v391
        %v428 = vadd.f32 %v303, %v393
        %v429 = vadd.f32 %v304, %v396
        %v430 = vadd.f32 %v305, %v398
        %v431 = vlaneseq
        %v432 = vshrl.u32 %v431, 7
        %v433 = vsub.s32 2, %v432
        %v434 = vrot.slane %v237, %v433
        %v435 = vmul.f32 %v246, %v434
        %v436 = vmul.f32 %v247, %v434
        %v437 = vmul.f32 %v248, %v434
        %v438 = vmul.f32 %v249, %v434
        %v439 = vmul.f32 %v250, %v434
        %v440 = vmul.f32 %v251, %v434
        %v441 = vmul.f32 %v252, %v434
        %v442 = vmul.f32 %v253, %v434
        %v443 = vmul.f32 %v254, %v434
        %v444 = vmul.f32 %v255, %v434
        %v445 = vmul.f32 %v256, %v434
        %v446 = vmul.f32 %v257, %v434
        %v447 = vmul.f32 %v258, %v434
        %v448 = vmul.f32 %v259, %v434
        %v449 = vmul.f32 %v260, %v434
        %v450 = vmul.f32 %v261, %v434
        %v451 = vmul.f32 %v262, %v434
        %v452 = vmul.f32 %v263, %v434
        %v453 = vmul.f32 %v264, %v434
        %v454 = vmul.f32 %v265, %v434
        %v455 = vmul.f32 %v266, %v434
        %v456 = vmul.f32 %v267, %v434
        %v457 = vmul.f32 %v268, %v434
        %v458 = vmul.f32 %v269, %v434
        %vm483 = vcmask 1045504
        %v484 = vrot.slane %v435, 2
        %v485 = vrot.slane %v436, 2
        %v486 = vsel %vm483, %v484, %v485
        %v487 = vrot.slane %v437, 2
        %v488 = vsel %vm483, %v485, %v487
        %v489 = vrot.slane %v438, 2
        %v490 = vrot.slane %v439, 2
        %v491 = vsel %vm483, %v489, %v490
        %v492 = vrot.slane %v440, 2
        %v493 = vsel %vm483, %v490, %v492
        %v494 = vrot.slane %v441, 2
        %v495 = vrot.slane %v442, 2
        %v496 = vsel %vm483, %v494, %v495
        %v497 = vrot.slane %v443, 2
        %v498 = vsel %vm483, %v495, %v497
        %v499 = vrot.slane %v444, 2
        %v500 = vrot.slane %v445, 2
        %v501 = vsel %vm483, %v499, %v500
        %v502 = vrot.slane %v446, 2
        %v503 = vsel %vm483, %v500, %v502
        %v504 = vrot.slane %v447, 2
        %v505 = vrot.slane %v448, 2
        %v506 = vsel %vm483, %v504, %v505
        %v507 = vrot.slane %v449, 2
        %v508 = vsel %vm483, %v505, %v507
        %v509 = vrot.slane %v450, 2
        %v510 = vrot.slane %v451, 2
        %v511 = vsel %vm483, %v509, %v510
        %v512 = vrot.slane %v452, 2
        %v513 = vsel %vm483, %v510, %v512
        %v514 = vrot.slane %v453, 2
        %v515 = vrot.slane %v454, 2
        %v516 = vsel %vm483, %v514, %v515
        %v517 = vrot.slane %v455, 2
        %v518 = vsel %vm483, %v515, %v517
        %v519 = vrot.slane %v456, 2
        %v520 = vrot.slane %v457, 2
        %v521 = vsel %vm483, %v519, %v520
        %v522 = vrot.slane %v458, 2
        %v523 = vsel %vm483, %v520, %v522
        %v540 = vadd.f32 %v415, %v486
        %v541 = vadd.f32 %v416, %v488
        %v542 = vadd.f32 %v417, %v491
        %v543 = vadd.f32 %v418, %v493
        %v544 = vadd.f32 %v419, %v496
        %v545 = vadd.f32 %v420, %v498
        %v546 = vadd.f32 %v421, %v501
        %v547 = vadd.f32 %v422, %v503
        %v548 = vadd.f32 %v423, %v506
        %v549 = vadd.f32 %v424, %v508
        %v550 = vadd.f32 %v425, %v511
        %v551 = vadd.f32 %v426, %v513
        %v552 = vadd.f32 %v427, %v516
        %v553 = vadd.f32 %v428, %v518
        %v554 = vadd.f32 %v429, %v521
        %v555 = vadd.f32 %v430, %v523
        %v556 = vlaneseq
        %v557 = vshrl.u32 %v556, 7
        %v558 = vsub.s32 3, %v557
        %v559 = vrot.slane %v237, %v558
        %v560 = vmul.f32 %v246, %v559
        %v561 = vmul.f32 %v247, %v559
        %v562 = vmul.f32 %v248, %v559
        %v563 = vmul.f32 %v249, %v559
        %v564 = vmul.f32 %v250, %v559
        %v565 = vmul.f32 %v251, %v559
        %v566 = vmul.f32 %v252, %v559
        %v567 = vmul.f32 %v253, %v559
        %v568 = vmul.f32 %v254, %v559
        %v569 = vmul.f32 %v255, %v559
        %v570 = vmul.f32 %v256, %v559
        %v571 = vmul.f32 %v257, %v559
        %v572 = vmul.f32 %v258, %v559
        %v573 = vmul.f32 %v259, %v559
        %v574 = vmul.f32 %v260, %v559
        %v575 = vmul.f32 %v261, %v559
        %v576 = vmul.f32 %v262, %v559
        %v577 = vmul.f32 %v263, %v559
        %v578 = vmul.f32 %v264, %v559
        %v579 = vmul.f32 %v265, %v559
        %v580 = vmul.f32 %v266, %v559
        %v581 = vmul.f32 %v267, %v559
        %v582 = vmul.f32 %v268, %v559
        %v583 = vmul.f32 %v269, %v559
        %vm608 = vcmask 1044480
        %v609 = vrot.slane %v560, 3
        %v610 = vrot.slane %v561, 3
        %v611 = vsel %vm608, %v609, %v610
        %v612 = vrot.slane %v562, 3
        %v613 = vsel %vm608, %v610, %v612
        %v614 = vrot.slane %v563, 3
        %v615 = vrot.slane %v564, 3
        %v616 = vsel %vm608, %v614, %v615
        %v617 = vrot.slane %v565, 3
        %v618 = vsel %vm608, %v615, %v617
        %v619 = vrot.slane %v566, 3
        %v620 = vrot.slane %v567, 3
        %v621 = vsel %vm608, %v619, %v620
        %v622 = vrot.slane %v568, 3
        %v623 = vsel %vm608, %v620, %v622
        %v624 = vrot.slane %v569, 3
        %v625 = vrot.slane %v570, 3
        %v626 = vsel %vm608, %v624, %v625
        %v627 = vrot.slane %v571, 3
        %v628 = vsel %vm608, %v625, %v627
        %v629 = vrot.slane %v572, 3
        %v630 = vrot.slane %v573, 3
        %v631 = vsel %vm608, %v629, %v630
        %v632 = vrot.slane %v574, 3
        %v633 = vsel %vm608, %v630, %v632
        %v634 = vrot.slane %v575, 3
        %v635 = vrot.slane %v576, 3
        %v636 = vsel %vm608, %v634, %v635
        %v637 = vrot.slane %v577, 3
        %v638 = vsel %vm608, %v635, %v637
        %v639 = vrot.slane %v578, 3
        %v640 = vrot.slane %v579, 3
        %v641 = vsel %vm608, %v639, %v640
        %v642 = vrot.slane %v580, 3
        %v643 = vsel %vm608, %v640, %v642
        %v644 = vrot.slane %v581, 3
        %v645 = vrot.slane %v582, 3
        %v646 = vsel %vm608, %v644, %v645
        %v647 = vrot.slane %v583, 3
        %v648 = vsel %vm608, %v645, %v647
        %v665 = vadd.f32 %v540, %v611
        %v666 = vadd.f32 %v541, %v613
        %v667 = vadd.f32 %v542, %v616
        %v668 = vadd.f32 %v543, %v618
        %v669 = vadd.f32 %v544, %v621
        %v670 = vadd.f32 %v545, %v623
        %v671 = vadd.f32 %v546, %v626
        %v672 = vadd.f32 %v547, %v628
        %v673 = vadd.f32 %v548, %v631
        %v674 = vadd.f32 %v549, %v633
        %v675 = vadd.f32 %v550, %v636
        %v676 = vadd.f32 %v551, %v638
        %v677 = vadd.f32 %v552, %v641
        %v678 = vadd.f32 %v553, %v643
        %v679 = vadd.f32 %v554, %v646
        %v680 = vadd.f32 %v555, %v648
        %v681 = vlaneseq
        %v682 = vshrl.u32 %v681, 7
        %v683 = vsub.s32 4, %v682
        %v684 = vrot.slane %v237, %v683
        %v685 = vmul.f32 %v246, %v684
        %v686 = vmul.f32 %v247, %v684
        %v687 = vmul.f32 %v248, %v684
        %v688 = vmul.f32 %v249, %v684
        %v689 = vmul.f32 %v250, %v684
        %v690 = vmul.f32 %v251, %v684
        %v691 = vmul.f32 %v252, %v684
        %v692 = vmul.f32 %v253, %v684
        %v693 = vmul.f32 %v254, %v684
        %v694 = vmul.f32 %v255, %v684
        %v695 = vmul.f32 %v256, %v684
        %v696 = vmul.f32 %v257, %v684
        %v697 = vmul.f32 %v258, %v684
        %v698 = vmul.f32 %v259, %v684
        %v699 = vmul.f32 %v260, %v684
        %v700 = vmul.f32 %v261, %v684
        %v701 = vmul.f32 %v262, %v684
        %v702 = vmul.f32 %v263, %v684
        %v703 = vmul.f32 %v264, %v684
        %v704 = vmul.f32 %v265, %v684
        %v705 = vmul.f32 %v266, %v684
        %v706 = vmul.f32 %v267, %v684
        %v707 = vmul.f32 %v268, %v684
        %v708 = vmul.f32 %v269, %v684
        %vm733 = vcmask 1043456
        %v734 = vrot.slane %v685, 4
        %v735 = vrot.slane %v686, 4
        %v736 = vsel %vm733, %v734, %v735
        %v737 = vrot.slane %v687, 4
        %v738 = vsel %vm733, %v735, %v737
        %v739 = vrot.slane %v688, 4
        %v740 = vrot.slane %v689, 4
        %v741 = vsel %vm733, %v739, %v740
        %v742 = vrot.slane %v690, 4
        %v743 = vsel %vm733, %v740, %v742
        %v744 = vrot.slane %v691, 4
        %v745 = vrot.slane %v692, 4
        %v746 = vsel %vm733, %v744, %v745
        %v747 = vrot.slane %v693, 4
        %v748 = vsel %vm733, %v745, %v747
        %v749 = vrot.slane %v694, 4
        %v750 = vrot.slane %v695, 4
        %v751 = vsel %vm733, %v749, %v750
        %v752 = vrot.slane %v696, 4
        %v753 = vsel %vm733, %v750, %v752
        %v754 = vrot.slane %v697, 4
        %v755 = vrot.slane %v698, 4
        %v756 = vsel %vm733, %v754, %v755
        %v757 = vrot.slane %v699, 4
        %v758 = vsel %vm733, %v755, %v757
        %v759 = vrot.slane %v700, 4
        %v760 = vrot.slane %v701, 4
        %v761 = vsel %vm733, %v759, %v760
        %v762 = vrot.slane %v702, 4
        %v763 = vsel %vm733, %v760, %v762
        %v764 = vrot.slane %v703, 4
        %v765 = vrot.slane %v704, 4
        %v766 = vsel %vm733, %v764, %v765
        %v767 = vrot.slane %v705, 4
        %v768 = vsel %vm733, %v765, %v767
        %v769 = vrot.slane %v706, 4
        %v770 = vrot.slane %v707, 4
        %v771 = vsel %vm733, %v769, %v770
        %v772 = vrot.slane %v708, 4
        %v773 = vsel %vm733, %v770, %v772
        %v790 = vadd.f32 %v665, %v736
        %v791 = vadd.f32 %v666, %v738
        %v792 = vadd.f32 %v667, %v741
        %v793 = vadd.f32 %v668, %v743
        %v794 = vadd.f32 %v669, %v746
        %v795 = vadd.f32 %v670, %v748
        %v796 = vadd.f32 %v671, %v751
        %v797 = vadd.f32 %v672, %v753
        %v798 = vadd.f32 %v673, %v756
        %v799 = vadd.f32 %v674, %v758
        %v800 = vadd.f32 %v675, %v761
        %v801 = vadd.f32 %v676, %v763
        %v802 = vadd.f32 %v677, %v766
        %v803 = vadd.f32 %v678, %v768
        %v804 = vadd.f32 %v679, %v771
        %v805 = vadd.f32 %v680, %v773
        %v806 = vlaneseq
        %v807 = vshrl.u32 %v806, 7
        %v808 = vsub.s32 5, %v807
        %v809 = vrot.slane %v237, %v808
        %v810 = vmul.f32 %v246, %v809
        %v811 = vmul.f32 %v247, %v809
        %v812 = vmul.f32 %v248, %v809
        %v813 = vmul.f32 %v249, %v809
        %v814 = vmul.f32 %v250, %v809
        %v815 = vmul.f32 %v251, %v809
        %v816 = vmul.f32 %v252, %v809
        %v817 = vmul.f32 %v253, %v809
        %v818 = vmul.f32 %v254, %v809
        %v819 = vmul.f32 %v255, %v809
        %v820 = vmul.f32 %v256, %v809
        %v821 = vmul.f32 %v257, %v809
        %v822 = vmul.f32 %v258, %v809
        %v823 = vmul.f32 %v259, %v809
        %v824 = vmul.f32 %v260, %v809
        %v825 = vmul.f32 %v261, %v809
        %v826 = vmul.f32 %v262, %v809
        %v827 = vmul.f32 %v263, %v809
        %v828 = vmul.f32 %v264, %v809
        %v829 = vmul.f32 %v265, %v809
        %v830 = vmul.f32 %v266, %v809
        %v831 = vmul.f32 %v267, %v809
        %v832 = vmul.f32 %v268, %v809
        %v833 = vmul.f32 %v269, %v809
        %vm858 = vcmask 1042432
        %v859 = vrot.slane %v810, 5
        %v860 = vrot.slane %v811, 5
        %v861 = vsel %vm858, %v859, %v860
        %v862 = vrot.slane %v812, 5
        %v863 = vsel %vm858, %v860, %v862
        %v864 = vrot.slane %v813, 5
        %v865 = vrot.slane %v814, 5
        %v866 = vsel %vm858, %v864, %v865
        %v867 = vrot.slane %v815, 5
        %v868 = vsel %vm858, %v865, %v867
        %v869 = vrot.slane %v816, 5
        %v870 = vrot.slane %v817, 5
        %v871 = vsel %vm858, %v869, %v870
        %v872 = vrot.slane %v818, 5
        %v873 = vsel %vm858, %v870, %v872
        %v874 = vrot.slane %v819, 5
        %v875 = vrot.slane %v820, 5
        %v876 = vsel %vm858, %v874, %v875
        %v877 = vrot.slane %v821, 5
        %v878 = vsel %vm858, %v875, %v877
        %v879 = vrot.slane %v822, 5
        %v880 = vrot.slane %v823, 5
        %v881 = vsel %vm858, %v879, %v880
        %v882 = vrot.slane %v824, 5
        %v883 = vsel %vm858, %v880, %v882
        %v884 = vrot.slane %v825, 5
        %v885 = vrot.slane %v826, 5
        %v886 = vsel %vm858, %v884, %v885
        %v887 = vrot.slane %v827, 5
        %v888 = vsel %vm858, %v885, %v887
        %v889 = vrot.slane %v828, 5
        %v890 = vrot.slane %v829, 5
        %v891 = vsel %vm858, %v889, %v890
        %v892 = vrot.slane %v830, 5
        %v893 = vsel %vm858, %v890, %v892
        %v894 = vrot.slane %v831, 5
        %v895 = vrot.slane %v832, 5
        %v896 = vsel %vm858, %v894, %v895
        %v897 = vrot.slane %v833, 5
        %v898 = vsel %vm858, %v895, %v897
        %v915 = vadd.f32 %v790, %v861
        %v916 = vadd.f32 %v791, %v863
        %v917 = vadd.f32 %v792, %v866
        %v918 = vadd.f32 %v793, %v868
        %v919 = vadd.f32 %v794, %v871
        %v920 = vadd.f32 %v795, %v873
        %v921 = vadd.f32 %v796, %v876
        %v922 = vadd.f32 %v797, %v878
        %v923 = vadd.f32 %v798, %v881
        %v924 = vadd.f32 %v799, %v883
        %v925 = vadd.f32 %v800, %v886
        %v926 = vadd.f32 %v801, %v888
        %v927 = vadd.f32 %v802, %v891
        %v928 = vadd.f32 %v803, %v893
        %v929 = vadd.f32 %v804, %v896
        %v930 = vadd.f32 %v805, %v898
        %v931 = vlaneseq
        %v932 = vshrl.u32 %v931, 7
        %v933 = vsub.s32 6, %v932
        %v934 = vrot.slane %v237, %v933
        %v935 = vmul.f32 %v246, %v934
        %v936 = vmul.f32 %v247, %v934
        %v937 = vmul.f32 %v248, %v934
        %v938 = vmul.f32 %v249, %v934
        %v939 = vmul.f32 %v250, %v934
        %v940 = vmul.f32 %v251, %v934
        %v941 = vmul.f32 %v252, %v934
        %v942 = vmul.f32 %v253, %v934
        %v943 = vmul.f32 %v254, %v934
        %v944 = vmul.f32 %v255, %v934
        %v945 = vmul.f32 %v256, %v934
        %v946 = vmul.f32 %v257, %v934
        %v947 = vmul.f32 %v258, %v934
        %v948 = vmul.f32 %v259, %v934
        %v949 = vmul.f32 %v260, %v934
        %v950 = vmul.f32 %v261, %v934
        %v951 = vmul.f32 %v262, %v934
        %v952 = vmul.f32 %v263, %v934
        %v953 = vmul.f32 %v264, %v934
        %v954 = vmul.f32 %v265, %v934
        %v955 = vmul.f32 %v266, %v934
        %v956 = vmul.f32 %v267, %v934
        %v957 = vmul.f32 %v268, %v934
        %v958 = vmul.f32 %v269, %v934
        %vm983 = vcmask 1041408
        %v984 = vrot.slane %v935, 6
        %v985 = vrot.slane %v936, 6
        %v986 = vsel %vm983, %v984, %v985
        %v987 = vrot.slane %v937, 6
        %v988 = vsel %vm983, %v985, %v987
        %v989 = vrot.slane %v938, 6
        %v990 = vrot.slane %v939, 6
        %v991 = vsel %vm983, %v989, %v990
        %v992 = vrot.slane %v940, 6
        %v993 = vsel %vm983, %v990, %v992
        %v994 = vrot.slane %v941, 6
        %v995 = vrot.slane %v942, 6
        %v996 = vsel %vm983, %v994, %v995
        %v997 = vrot.slane %v943, 6
        %v998 = vsel %vm983, %v995, %v997
        %v999 = vrot.slane %v944, 6
        %v1000 = vrot.slane %v945, 6
        %v1001 = vsel %vm983, %v999, %v1000
        %v1002 = vrot.slane %v946, 6
        %v1003 = vsel %vm983, %v1000, %v1002
        %v1004 = vrot.slane %v947, 6
        %v1005 = vrot.slane %v948, 6
        %v1006 = vsel %vm983, %v1004, %v1005
        %v1007 = vrot.slane %v949, 6
        %v1008 = vsel %vm983, %v1005, %v1007
        %v1009 = vrot.slane %v950, 6
        %v1010 = vrot.slane %v951, 6
        %v1011 = vsel %vm983, %v1009, %v1010
        %v1012 = vrot.slane %v952, 6
        %v1013 = vsel %vm983, %v1010, %v1012
        %v1014 = vrot.slane %v953, 6
        %v1015 = vrot.slane %v954, 6
        %v1016 = vsel %vm983, %v1014, %v1015
        %v1017 = vrot.slane %v955, 6
        %v1018 = vsel %vm983, %v1015, %v1017
        %v1019 = vrot.slane %v956, 6
        %v1020 = vrot.slane %v957, 6
        %v1021 = vsel %vm983, %v1019, %v1020
        %v1022 = vrot.slane %v958, 6
        %v1023 = vsel %vm983, %v1020, %v1022
        %v1040 = vadd.f32 %v915, %v986
        %v1041 = vadd.f32 %v916, %v988
        %v1042 = vadd.f32 %v917, %v991
        %v1043 = vadd.f32 %v918, %v993
        %v1044 = vadd.f32 %v919, %v996
        %v1045 = vadd.f32 %v920, %v998
        %v1046 = vadd.f32 %v921, %v1001
        %v1047 = vadd.f32 %v922, %v1003
        %v1048 = vadd.f32 %v923, %v1006
        %v1049 = vadd.f32 %v924, %v1008
        %v1050 = vadd.f32 %v925, %v1011
        %v1051 = vadd.f32 %v926, %v1013
        %v1052 = vadd.f32 %v927, %v1016
        %v1053 = vadd.f32 %v928, %v1018
        %v1054 = vadd.f32 %v929, %v1021
        %v1055 = vadd.f32 %v930, %v1023
        %s1056 = sadd.s32 %s235, 1
        %s1057 = smul.u32 %s1056, 24
        %s1058 = scalar_lea.vmem %s226, %s1057
        %v1059 = vld [vmem:[%s1058] sm:$0xff]
        %v1060 = vld [vmem:[%s1058 + $0x8] sm:$0xff]
        %v1061 = vld [vmem:[%s1058 + $0x10] sm:$0x3f]
        %v1062 = vld [vmem:[%s1058 + $0x18] sm:$0xff]
        %v1063 = vld [vmem:[%s1058 + $0x20] sm:$0xff]
        %v1064 = vld [vmem:[%s1058 + $0x28] sm:$0x3f]
        %v1065 = vld [vmem:[%s1058 + $0x30] sm:$0xff]
        %v1066 = vld [vmem:[%s1058 + $0x38] sm:$0xff]
        %v1067 = vld [vmem:[%s1058 + $0x40] sm:$0x3f]
        %v1068 = vld [vmem:[%s1058 + $0x48] sm:$0xff]
        %v1069 = vld [vmem:[%s1058 + $0x50] sm:$0xff]
        %v1070 = vld [vmem:[%s1058 + $0x58] sm:$0x3f]
        %v1071 = vld [vmem:[%s1058 + $0x60] sm:$0xff]
        %v1072 = vld [vmem:[%s1058 + $0x68] sm:$0xff]
        %v1073 = vld [vmem:[%s1058 + $0x70] sm:$0x3f]
        %v1074 = vld [vmem:[%s1058 + $0x78] sm:$0xff]
        %v1075 = vld [vmem:[%s1058 + $0x80] sm:$0xff]
        %v1076 = vld [vmem:[%s1058 + $0x88] sm:$0x3f]
        %v1077 = vld [vmem:[%s1058 + $0x90] sm:$0xff]
        %v1078 = vld [vmem:[%s1058 + $0x98] sm:$0xff]
        %v1079 = vld [vmem:[%s1058 + $0xa0] sm:$0x3f]
        %v1080 = vld [vmem:[%s1058 + $0xa8] sm:$0xff]
        %v1081 = vld [vmem:[%s1058 + $0xb0] sm:$0xff]
        %v1082 = vld [vmem:[%s1058 + $0xb8] sm:$0x3f]
        %v1083 = vlaneseq
        %v1084 = vshrl.u32 %v1083, 7
        %v1085 = vsub.s32 0, %v1084
        %v1086 = vrot.slane %v238, %v1085
        %v1087 = vmul.f32 %v1059, %v1086
        %v1088 = vmul.f32 %v1060, %v1086
        %v1089 = vmul.f32 %v1062, %v1086
        %v1090 = vmul.f32 %v1063, %v1086
        %v1091 = vmul.f32 %v1065, %v1086
        %v1092 = vmul.f32 %v1066, %v1086
        %v1093 = vmul.f32 %v1068, %v1086
        %v1094 = vmul.f32 %v1069, %v1086
        %v1095 = vmul.f32 %v1071, %v1086
        %v1096 = vmul.f32 %v1072, %v1086
        %v1097 = vmul.f32 %v1074, %v1086
        %v1098 = vmul.f32 %v1075, %v1086
        %v1099 = vmul.f32 %v1077, %v1086
        %v1100 = vmul.f32 %v1078, %v1086
        %v1101 = vmul.f32 %v1080, %v1086
        %v1102 = vmul.f32 %v1081, %v1086
        %v1103 = vadd.f32 %v1040, %v1087
        %v1104 = vadd.f32 %v1041, %v1088
        %v1105 = vadd.f32 %v1042, %v1089
        %v1106 = vadd.f32 %v1043, %v1090
        %v1107 = vadd.f32 %v1044, %v1091
        %v1108 = vadd.f32 %v1045, %v1092
        %v1109 = vadd.f32 %v1046, %v1093
        %v1110 = vadd.f32 %v1047, %v1094
        %v1111 = vadd.f32 %v1048, %v1095
        %v1112 = vadd.f32 %v1049, %v1096
        %v1113 = vadd.f32 %v1050, %v1097
        %v1114 = vadd.f32 %v1051, %v1098
        %v1115 = vadd.f32 %v1052, %v1099
        %v1116 = vadd.f32 %v1053, %v1100
        %v1117 = vadd.f32 %v1054, %v1101
        %v1118 = vadd.f32 %v1055, %v1102
        %v1119 = vlaneseq
        %v1120 = vshrl.u32 %v1119, 7
        %v1121 = vsub.s32 1, %v1120
        %v1122 = vrot.slane %v238, %v1121
        %v1123 = vmul.f32 %v1059, %v1122
        %v1124 = vmul.f32 %v1060, %v1122
        %v1125 = vmul.f32 %v1061, %v1122
        %v1126 = vmul.f32 %v1062, %v1122
        %v1127 = vmul.f32 %v1063, %v1122
        %v1128 = vmul.f32 %v1064, %v1122
        %v1129 = vmul.f32 %v1065, %v1122
        %v1130 = vmul.f32 %v1066, %v1122
        %v1131 = vmul.f32 %v1067, %v1122
        %v1132 = vmul.f32 %v1068, %v1122
        %v1133 = vmul.f32 %v1069, %v1122
        %v1134 = vmul.f32 %v1070, %v1122
        %v1135 = vmul.f32 %v1071, %v1122
        %v1136 = vmul.f32 %v1072, %v1122
        %v1137 = vmul.f32 %v1073, %v1122
        %v1138 = vmul.f32 %v1074, %v1122
        %v1139 = vmul.f32 %v1075, %v1122
        %v1140 = vmul.f32 %v1076, %v1122
        %v1141 = vmul.f32 %v1077, %v1122
        %v1142 = vmul.f32 %v1078, %v1122
        %v1143 = vmul.f32 %v1079, %v1122
        %v1144 = vmul.f32 %v1080, %v1122
        %v1145 = vmul.f32 %v1081, %v1122
        %v1146 = vmul.f32 %v1082, %v1122
        %v1171 = vrot.slane %v1123, 1
        %v1172 = vrot.slane %v1124, 1
        %v1173 = vsel %vm358, %v1171, %v1172
        %v1174 = vrot.slane %v1125, 1
        %v1175 = vsel %vm358, %v1172, %v1174
        %v1176 = vrot.slane %v1126, 1
        %v1177 = vrot.slane %v1127, 1
        %v1178 = vsel %vm358, %v1176, %v1177
        %v1179 = vrot.slane %v1128, 1
        %v1180 = vsel %vm358, %v1177, %v1179
        %v1181 = vrot.slane %v1129, 1
        %v1182 = vrot.slane %v1130, 1
        %v1183 = vsel %vm358, %v1181, %v1182
        %v1184 = vrot.slane %v1131, 1
        %v1185 = vsel %vm358, %v1182, %v1184
        %v1186 = vrot.slane %v1132, 1
        %v1187 = vrot.slane %v1133, 1
        %v1188 = vsel %vm358, %v1186, %v1187
        %v1189 = vrot.slane %v1134, 1
        %v1190 = vsel %vm358, %v1187, %v1189
        %v1191 = vrot.slane %v1135, 1
        %v1192 = vrot.slane %v1136, 1
        %v1193 = vsel %vm358, %v1191, %v1192
        %v1194 = vrot.slane %v1137, 1
        %v1195 = vsel %vm358, %v1192, %v1194
        %v1196 = vrot.slane %v1138, 1
        %v1197 = vrot.slane %v1139, 1
        %v1198 = vsel %vm358, %v1196, %v1197
        %v1199 = vrot.slane %v1140, 1
        %v1200 = vsel %vm358, %v1197, %v1199
        %v1201 = vrot.slane %v1141, 1
        %v1202 = vrot.slane %v1142, 1
        %v1203 = vsel %vm358, %v1201, %v1202
        %v1204 = vrot.slane %v1143, 1
        %v1205 = vsel %vm358, %v1202, %v1204
        %v1206 = vrot.slane %v1144, 1
        %v1207 = vrot.slane %v1145, 1
        %v1208 = vsel %vm358, %v1206, %v1207
        %v1209 = vrot.slane %v1146, 1
        %v1210 = vsel %vm358, %v1207, %v1209
        %v1227 = vadd.f32 %v1103, %v1173
        %v1228 = vadd.f32 %v1104, %v1175
        %v1229 = vadd.f32 %v1105, %v1178
        %v1230 = vadd.f32 %v1106, %v1180
        %v1231 = vadd.f32 %v1107, %v1183
        %v1232 = vadd.f32 %v1108, %v1185
        %v1233 = vadd.f32 %v1109, %v1188
        %v1234 = vadd.f32 %v1110, %v1190
        %v1235 = vadd.f32 %v1111, %v1193
        %v1236 = vadd.f32 %v1112, %v1195
        %v1237 = vadd.f32 %v1113, %v1198
        %v1238 = vadd.f32 %v1114, %v1200
        %v1239 = vadd.f32 %v1115, %v1203
        %v1240 = vadd.f32 %v1116, %v1205
        %v1241 = vadd.f32 %v1117, %v1208
        %v1242 = vadd.f32 %v1118, %v1210
        %v1243 = vlaneseq
        %v1244 = vshrl.u32 %v1243, 7
        %v1245 = vsub.s32 2, %v1244
        %v1246 = vrot.slane %v238, %v1245
        %v1247 = vmul.f32 %v1059, %v1246
        %v1248 = vmul.f32 %v1060, %v1246
        %v1249 = vmul.f32 %v1061, %v1246
        %v1250 = vmul.f32 %v1062, %v1246
        %v1251 = vmul.f32 %v1063, %v1246
        %v1252 = vmul.f32 %v1064, %v1246
        %v1253 = vmul.f32 %v1065, %v1246
        %v1254 = vmul.f32 %v1066, %v1246
        %v1255 = vmul.f32 %v1067, %v1246
        %v1256 = vmul.f32 %v1068, %v1246
        %v1257 = vmul.f32 %v1069, %v1246
        %v1258 = vmul.f32 %v1070, %v1246
        %v1259 = vmul.f32 %v1071, %v1246
        %v1260 = vmul.f32 %v1072, %v1246
        %v1261 = vmul.f32 %v1073, %v1246
        %v1262 = vmul.f32 %v1074, %v1246
        %v1263 = vmul.f32 %v1075, %v1246
        %v1264 = vmul.f32 %v1076, %v1246
        %v1265 = vmul.f32 %v1077, %v1246
        %v1266 = vmul.f32 %v1078, %v1246
        %v1267 = vmul.f32 %v1079, %v1246
        %v1268 = vmul.f32 %v1080, %v1246
        %v1269 = vmul.f32 %v1081, %v1246
        %v1270 = vmul.f32 %v1082, %v1246
        %v1295 = vrot.slane %v1247, 2
        %v1296 = vrot.slane %v1248, 2
        %v1297 = vsel %vm483, %v1295, %v1296
        %v1298 = vrot.slane %v1249, 2
        %v1299 = vsel %vm483, %v1296, %v1298
        %v1300 = vrot.slane %v1250, 2
        %v1301 = vrot.slane %v1251, 2
        %v1302 = vsel %vm483, %v1300, %v1301
        %v1303 = vrot.slane %v1252, 2
        %v1304 = vsel %vm483, %v1301, %v1303
        %v1305 = vrot.slane %v1253, 2
        %v1306 = vrot.slane %v1254, 2
        %v1307 = vsel %vm483, %v1305, %v1306
        %v1308 = vrot.slane %v1255, 2
        %v1309 = vsel %vm483, %v1306, %v1308
        %v1310 = vrot.slane %v1256, 2
        %v1311 = vrot.slane %v1257, 2
        %v1312 = vsel %vm483, %v1310, %v1311
        %v1313 = vrot.slane %v1258, 2
        %v1314 = vsel %vm483, %v1311, %v1313
        %v1315 = vrot.slane %v1259, 2
        %v1316 = vrot.slane %v1260, 2
        %v1317 = vsel %vm483, %v1315, %v1316
        %v1318 = vrot.slane %v1261, 2
        %v1319 = vsel %vm483, %v1316, %v1318
        %v1320 = vrot.slane %v1262, 2
        %v1321 = vrot.slane %v1263, 2
        %v1322 = vsel %vm483, %v1320, %v1321
        %v1323 = vrot.slane %v1264, 2
        %v1324 = vsel %vm483, %v1321, %v1323
        %v1325 = vrot.slane %v1265, 2
        %v1326 = vrot.slane %v1266, 2
        %v1327 = vsel %vm483, %v1325, %v1326
        %v1328 = vrot.slane %v1267, 2
        %v1329 = vsel %vm483, %v1326, %v1328
        %v1330 = vrot.slane %v1268, 2
        %v1331 = vrot.slane %v1269, 2
        %v1332 = vsel %vm483, %v1330, %v1331
        %v1333 = vrot.slane %v1270, 2
        %v1334 = vsel %vm483, %v1331, %v1333
        %v1351 = vadd.f32 %v1227, %v1297
        %v1352 = vadd.f32 %v1228, %v1299
        %v1353 = vadd.f32 %v1229, %v1302
        %v1354 = vadd.f32 %v1230, %v1304
        %v1355 = vadd.f32 %v1231, %v1307
        %v1356 = vadd.f32 %v1232, %v1309
        %v1357 = vadd.f32 %v1233, %v1312
        %v1358 = vadd.f32 %v1234, %v1314
        %v1359 = vadd.f32 %v1235, %v1317
        %v1360 = vadd.f32 %v1236, %v1319
        %v1361 = vadd.f32 %v1237, %v1322
        %v1362 = vadd.f32 %v1238, %v1324
        %v1363 = vadd.f32 %v1239, %v1327
        %v1364 = vadd.f32 %v1240, %v1329
        %v1365 = vadd.f32 %v1241, %v1332
        %v1366 = vadd.f32 %v1242, %v1334
        %v1367 = vlaneseq
        %v1368 = vshrl.u32 %v1367, 7
        %v1369 = vsub.s32 3, %v1368
        %v1370 = vrot.slane %v238, %v1369
        %v1371 = vmul.f32 %v1059, %v1370
        %v1372 = vmul.f32 %v1060, %v1370
        %v1373 = vmul.f32 %v1061, %v1370
        %v1374 = vmul.f32 %v1062, %v1370
        %v1375 = vmul.f32 %v1063, %v1370
        %v1376 = vmul.f32 %v1064, %v1370
        %v1377 = vmul.f32 %v1065, %v1370
        %v1378 = vmul.f32 %v1066, %v1370
        %v1379 = vmul.f32 %v1067, %v1370
        %v1380 = vmul.f32 %v1068, %v1370
        %v1381 = vmul.f32 %v1069, %v1370
        %v1382 = vmul.f32 %v1070, %v1370
        %v1383 = vmul.f32 %v1071, %v1370
        %v1384 = vmul.f32 %v1072, %v1370
        %v1385 = vmul.f32 %v1073, %v1370
        %v1386 = vmul.f32 %v1074, %v1370
        %v1387 = vmul.f32 %v1075, %v1370
        %v1388 = vmul.f32 %v1076, %v1370
        %v1389 = vmul.f32 %v1077, %v1370
        %v1390 = vmul.f32 %v1078, %v1370
        %v1391 = vmul.f32 %v1079, %v1370
        %v1392 = vmul.f32 %v1080, %v1370
        %v1393 = vmul.f32 %v1081, %v1370
        %v1394 = vmul.f32 %v1082, %v1370
        %v1419 = vrot.slane %v1371, 3
        %v1420 = vrot.slane %v1372, 3
        %v1421 = vsel %vm608, %v1419, %v1420
        %v1422 = vrot.slane %v1373, 3
        %v1423 = vsel %vm608, %v1420, %v1422
        %v1424 = vrot.slane %v1374, 3
        %v1425 = vrot.slane %v1375, 3
        %v1426 = vsel %vm608, %v1424, %v1425
        %v1427 = vrot.slane %v1376, 3
        %v1428 = vsel %vm608, %v1425, %v1427
        %v1429 = vrot.slane %v1377, 3
        %v1430 = vrot.slane %v1378, 3
        %v1431 = vsel %vm608, %v1429, %v1430
        %v1432 = vrot.slane %v1379, 3
        %v1433 = vsel %vm608, %v1430, %v1432
        %v1434 = vrot.slane %v1380, 3
        %v1435 = vrot.slane %v1381, 3
        %v1436 = vsel %vm608, %v1434, %v1435
        %v1437 = vrot.slane %v1382, 3
        %v1438 = vsel %vm608, %v1435, %v1437
        %v1439 = vrot.slane %v1383, 3
        %v1440 = vrot.slane %v1384, 3
        %v1441 = vsel %vm608, %v1439, %v1440
        %v1442 = vrot.slane %v1385, 3
        %v1443 = vsel %vm608, %v1440, %v1442
        %v1444 = vrot.slane %v1386, 3
        %v1445 = vrot.slane %v1387, 3
        %v1446 = vsel %vm608, %v1444, %v1445
        %v1447 = vrot.slane %v1388, 3
        %v1448 = vsel %vm608, %v1445, %v1447
        %v1449 = vrot.slane %v1389, 3
        %v1450 = vrot.slane %v1390, 3
        %v1451 = vsel %vm608, %v1449, %v1450
        %v1452 = vrot.slane %v1391, 3
        %v1453 = vsel %vm608, %v1450, %v1452
        %v1454 = vrot.slane %v1392, 3
        %v1455 = vrot.slane %v1393, 3
        %v1456 = vsel %vm608, %v1454, %v1455
        %v1457 = vrot.slane %v1394, 3
        %v1458 = vsel %vm608, %v1455, %v1457
        %v1475 = vadd.f32 %v1351, %v1421
        %v1476 = vadd.f32 %v1352, %v1423
        %v1477 = vadd.f32 %v1353, %v1426
        %v1478 = vadd.f32 %v1354, %v1428
        %v1479 = vadd.f32 %v1355, %v1431
        %v1480 = vadd.f32 %v1356, %v1433
        %v1481 = vadd.f32 %v1357, %v1436
        %v1482 = vadd.f32 %v1358, %v1438
        %v1483 = vadd.f32 %v1359, %v1441
        %v1484 = vadd.f32 %v1360, %v1443
        %v1485 = vadd.f32 %v1361, %v1446
        %v1486 = vadd.f32 %v1362, %v1448
        %v1487 = vadd.f32 %v1363, %v1451
        %v1488 = vadd.f32 %v1364, %v1453
        %v1489 = vadd.f32 %v1365, %v1456
        %v1490 = vadd.f32 %v1366, %v1458
        %v1491 = vlaneseq
        %v1492 = vshrl.u32 %v1491, 7
        %v1493 = vsub.s32 4, %v1492
        %v1494 = vrot.slane %v238, %v1493
        %v1495 = vmul.f32 %v1059, %v1494
        %v1496 = vmul.f32 %v1060, %v1494
        %v1497 = vmul.f32 %v1061, %v1494
        %v1498 = vmul.f32 %v1062, %v1494
        %v1499 = vmul.f32 %v1063, %v1494
        %v1500 = vmul.f32 %v1064, %v1494
        %v1501 = vmul.f32 %v1065, %v1494
        %v1502 = vmul.f32 %v1066, %v1494
        %v1503 = vmul.f32 %v1067, %v1494
        %v1504 = vmul.f32 %v1068, %v1494
        %v1505 = vmul.f32 %v1069, %v1494
        %v1506 = vmul.f32 %v1070, %v1494
        %v1507 = vmul.f32 %v1071, %v1494
        %v1508 = vmul.f32 %v1072, %v1494
        %v1509 = vmul.f32 %v1073, %v1494
        %v1510 = vmul.f32 %v1074, %v1494
        %v1511 = vmul.f32 %v1075, %v1494
        %v1512 = vmul.f32 %v1076, %v1494
        %v1513 = vmul.f32 %v1077, %v1494
        %v1514 = vmul.f32 %v1078, %v1494
        %v1515 = vmul.f32 %v1079, %v1494
        %v1516 = vmul.f32 %v1080, %v1494
        %v1517 = vmul.f32 %v1081, %v1494
        %v1518 = vmul.f32 %v1082, %v1494
        %v1543 = vrot.slane %v1495, 4
        %v1544 = vrot.slane %v1496, 4
        %v1545 = vsel %vm733, %v1543, %v1544
        %v1546 = vrot.slane %v1497, 4
        %v1547 = vsel %vm733, %v1544, %v1546
        %v1548 = vrot.slane %v1498, 4
        %v1549 = vrot.slane %v1499, 4
        %v1550 = vsel %vm733, %v1548, %v1549
        %v1551 = vrot.slane %v1500, 4
        %v1552 = vsel %vm733, %v1549, %v1551
        %v1553 = vrot.slane %v1501, 4
        %v1554 = vrot.slane %v1502, 4
        %v1555 = vsel %vm733, %v1553, %v1554
        %v1556 = vrot.slane %v1503, 4
        %v1557 = vsel %vm733, %v1554, %v1556
        %v1558 = vrot.slane %v1504, 4
        %v1559 = vrot.slane %v1505, 4
        %v1560 = vsel %vm733, %v1558, %v1559
        %v1561 = vrot.slane %v1506, 4
        %v1562 = vsel %vm733, %v1559, %v1561
        %v1563 = vrot.slane %v1507, 4
        %v1564 = vrot.slane %v1508, 4
        %v1565 = vsel %vm733, %v1563, %v1564
        %v1566 = vrot.slane %v1509, 4
        %v1567 = vsel %vm733, %v1564, %v1566
        %v1568 = vrot.slane %v1510, 4
        %v1569 = vrot.slane %v1511, 4
        %v1570 = vsel %vm733, %v1568, %v1569
        %v1571 = vrot.slane %v1512, 4
        %v1572 = vsel %vm733, %v1569, %v1571
        %v1573 = vrot.slane %v1513, 4
        %v1574 = vrot.slane %v1514, 4
        %v1575 = vsel %vm733, %v1573, %v1574
        %v1576 = vrot.slane %v1515, 4
        %v1577 = vsel %vm733, %v1574, %v1576
        %v1578 = vrot.slane %v1516, 4
        %v1579 = vrot.slane %v1517, 4
        %v1580 = vsel %vm733, %v1578, %v1579
        %v1581 = vrot.slane %v1518, 4
        %v1582 = vsel %vm733, %v1579, %v1581
        %v1599 = vadd.f32 %v1475, %v1545
        %v1600 = vadd.f32 %v1476, %v1547
        %v1601 = vadd.f32 %v1477, %v1550
        %v1602 = vadd.f32 %v1478, %v1552
        %v1603 = vadd.f32 %v1479, %v1555
        %v1604 = vadd.f32 %v1480, %v1557
        %v1605 = vadd.f32 %v1481, %v1560
        %v1606 = vadd.f32 %v1482, %v1562
        %v1607 = vadd.f32 %v1483, %v1565
        %v1608 = vadd.f32 %v1484, %v1567
        %v1609 = vadd.f32 %v1485, %v1570
        %v1610 = vadd.f32 %v1486, %v1572
        %v1611 = vadd.f32 %v1487, %v1575
        %v1612 = vadd.f32 %v1488, %v1577
        %v1613 = vadd.f32 %v1489, %v1580
        %v1614 = vadd.f32 %v1490, %v1582
        %v1615 = vlaneseq
        %v1616 = vshrl.u32 %v1615, 7
        %v1617 = vsub.s32 5, %v1616
        %v1618 = vrot.slane %v238, %v1617
        %v1619 = vmul.f32 %v1059, %v1618
        %v1620 = vmul.f32 %v1060, %v1618
        %v1621 = vmul.f32 %v1061, %v1618
        %v1622 = vmul.f32 %v1062, %v1618
        %v1623 = vmul.f32 %v1063, %v1618
        %v1624 = vmul.f32 %v1064, %v1618
        %v1625 = vmul.f32 %v1065, %v1618
        %v1626 = vmul.f32 %v1066, %v1618
        %v1627 = vmul.f32 %v1067, %v1618
        %v1628 = vmul.f32 %v1068, %v1618
        %v1629 = vmul.f32 %v1069, %v1618
        %v1630 = vmul.f32 %v1070, %v1618
        %v1631 = vmul.f32 %v1071, %v1618
        %v1632 = vmul.f32 %v1072, %v1618
        %v1633 = vmul.f32 %v1073, %v1618
        %v1634 = vmul.f32 %v1074, %v1618
        %v1635 = vmul.f32 %v1075, %v1618
        %v1636 = vmul.f32 %v1076, %v1618
        %v1637 = vmul.f32 %v1077, %v1618
        %v1638 = vmul.f32 %v1078, %v1618
        %v1639 = vmul.f32 %v1079, %v1618
        %v1640 = vmul.f32 %v1080, %v1618
        %v1641 = vmul.f32 %v1081, %v1618
        %v1642 = vmul.f32 %v1082, %v1618
        %v1667 = vrot.slane %v1619, 5
        %v1668 = vrot.slane %v1620, 5
        %v1669 = vsel %vm858, %v1667, %v1668
        %v1670 = vrot.slane %v1621, 5
        %v1671 = vsel %vm858, %v1668, %v1670
        %v1672 = vrot.slane %v1622, 5
        %v1673 = vrot.slane %v1623, 5
        %v1674 = vsel %vm858, %v1672, %v1673
        %v1675 = vrot.slane %v1624, 5
        %v1676 = vsel %vm858, %v1673, %v1675
        %v1677 = vrot.slane %v1625, 5
        %v1678 = vrot.slane %v1626, 5
        %v1679 = vsel %vm858, %v1677, %v1678
        %v1680 = vrot.slane %v1627, 5
        %v1681 = vsel %vm858, %v1678, %v1680
        %v1682 = vrot.slane %v1628, 5
        %v1683 = vrot.slane %v1629, 5
        %v1684 = vsel %vm858, %v1682, %v1683
        %v1685 = vrot.slane %v1630, 5
        %v1686 = vsel %vm858, %v1683, %v1685
        %v1687 = vrot.slane %v1631, 5
        %v1688 = vrot.slane %v1632, 5
        %v1689 = vsel %vm858, %v1687, %v1688
        %v1690 = vrot.slane %v1633, 5
        %v1691 = vsel %vm858, %v1688, %v1690
        %v1692 = vrot.slane %v1634, 5
        %v1693 = vrot.slane %v1635, 5
        %v1694 = vsel %vm858, %v1692, %v1693
        %v1695 = vrot.slane %v1636, 5
        %v1696 = vsel %vm858, %v1693, %v1695
        %v1697 = vrot.slane %v1637, 5
        %v1698 = vrot.slane %v1638, 5
        %v1699 = vsel %vm858, %v1697, %v1698
        %v1700 = vrot.slane %v1639, 5
        %v1701 = vsel %vm858, %v1698, %v1700
        %v1702 = vrot.slane %v1640, 5
        %v1703 = vrot.slane %v1641, 5
        %v1704 = vsel %vm858, %v1702, %v1703
        %v1705 = vrot.slane %v1642, 5
        %v1706 = vsel %vm858, %v1703, %v1705
        %v1723 = vadd.f32 %v1599, %v1669
        %v1724 = vadd.f32 %v1600, %v1671
        %v1725 = vadd.f32 %v1601, %v1674
        %v1726 = vadd.f32 %v1602, %v1676
        %v1727 = vadd.f32 %v1603, %v1679
        %v1728 = vadd.f32 %v1604, %v1681
        %v1729 = vadd.f32 %v1605, %v1684
        %v1730 = vadd.f32 %v1606, %v1686
        %v1731 = vadd.f32 %v1607, %v1689
        %v1732 = vadd.f32 %v1608, %v1691
        %v1733 = vadd.f32 %v1609, %v1694
        %v1734 = vadd.f32 %v1610, %v1696
        %v1735 = vadd.f32 %v1611, %v1699
        %v1736 = vadd.f32 %v1612, %v1701
        %v1737 = vadd.f32 %v1613, %v1704
        %v1738 = vadd.f32 %v1614, %v1706
        %v1739 = vlaneseq
        %v1740 = vshrl.u32 %v1739, 7
        %v1741 = vsub.s32 6, %v1740
        %v1742 = vrot.slane %v238, %v1741
        %v1743 = vmul.f32 %v1059, %v1742
        %v1744 = vmul.f32 %v1060, %v1742
        %v1745 = vmul.f32 %v1061, %v1742
        %v1746 = vmul.f32 %v1062, %v1742
        %v1747 = vmul.f32 %v1063, %v1742
        %v1748 = vmul.f32 %v1064, %v1742
        %v1749 = vmul.f32 %v1065, %v1742
        %v1750 = vmul.f32 %v1066, %v1742
        %v1751 = vmul.f32 %v1067, %v1742
        %v1752 = vmul.f32 %v1068, %v1742
        %v1753 = vmul.f32 %v1069, %v1742
        %v1754 = vmul.f32 %v1070, %v1742
        %v1755 = vmul.f32 %v1071, %v1742
        %v1756 = vmul.f32 %v1072, %v1742
        %v1757 = vmul.f32 %v1073, %v1742
        %v1758 = vmul.f32 %v1074, %v1742
        %v1759 = vmul.f32 %v1075, %v1742
        %v1760 = vmul.f32 %v1076, %v1742
        %v1761 = vmul.f32 %v1077, %v1742
        %v1762 = vmul.f32 %v1078, %v1742
        %v1763 = vmul.f32 %v1079, %v1742
        %v1764 = vmul.f32 %v1080, %v1742
        %v1765 = vmul.f32 %v1081, %v1742
        %v1766 = vmul.f32 %v1082, %v1742
        %v1791 = vrot.slane %v1743, 6
        %v1792 = vrot.slane %v1744, 6
        %v1793 = vsel %vm983, %v1791, %v1792
        %v1794 = vrot.slane %v1745, 6
        %v1795 = vsel %vm983, %v1792, %v1794
        %v1796 = vrot.slane %v1746, 6
        %v1797 = vrot.slane %v1747, 6
        %v1798 = vsel %vm983, %v1796, %v1797
        %v1799 = vrot.slane %v1748, 6
        %v1800 = vsel %vm983, %v1797, %v1799
        %v1801 = vrot.slane %v1749, 6
        %v1802 = vrot.slane %v1750, 6
        %v1803 = vsel %vm983, %v1801, %v1802
        %v1804 = vrot.slane %v1751, 6
        %v1805 = vsel %vm983, %v1802, %v1804
        %v1806 = vrot.slane %v1752, 6
        %v1807 = vrot.slane %v1753, 6
        %v1808 = vsel %vm983, %v1806, %v1807
        %v1809 = vrot.slane %v1754, 6
        %v1810 = vsel %vm983, %v1807, %v1809
        %v1811 = vrot.slane %v1755, 6
        %v1812 = vrot.slane %v1756, 6
        %v1813 = vsel %vm983, %v1811, %v1812
        %v1814 = vrot.slane %v1757, 6
        %v1815 = vsel %vm983, %v1812, %v1814
        %v1816 = vrot.slane %v1758, 6
        %v1817 = vrot.slane %v1759, 6
        %v1818 = vsel %vm983, %v1816, %v1817
        %v1819 = vrot.slane %v1760, 6
        %v1820 = vsel %vm983, %v1817, %v1819
        %v1821 = vrot.slane %v1761, 6
        %v1822 = vrot.slane %v1762, 6
        %v1823 = vsel %vm983, %v1821, %v1822
        %v1824 = vrot.slane %v1763, 6
        %v1825 = vsel %vm983, %v1822, %v1824
        %v1826 = vrot.slane %v1764, 6
        %v1827 = vrot.slane %v1765, 6
        %v1828 = vsel %vm983, %v1826, %v1827
        %v1829 = vrot.slane %v1766, 6
        %v1830 = vsel %vm983, %v1827, %v1829
        %v1847 = vadd.f32 %v1723, %v1793
        %v1848 = vadd.f32 %v1724, %v1795
        %v1849 = vadd.f32 %v1725, %v1798
        %v1850 = vadd.f32 %v1726, %v1800
        %v1851 = vadd.f32 %v1727, %v1803
        %v1852 = vadd.f32 %v1728, %v1805
        %v1853 = vadd.f32 %v1729, %v1808
        %v1854 = vadd.f32 %v1730, %v1810
        %v1855 = vadd.f32 %v1731, %v1813
        %v1856 = vadd.f32 %v1732, %v1815
        %v1857 = vadd.f32 %v1733, %v1818
        %v1858 = vadd.f32 %v1734, %v1820
        %v1859 = vadd.f32 %v1735, %v1823
        %v1860 = vadd.f32 %v1736, %v1825
        %v1861 = vadd.f32 %v1737, %v1828
        %v1862 = vadd.f32 %v1738, %v1830
        %s1863 = sadd.s32 %s235, 2
        %s1864 = smul.u32 %s1863, 24
        %s1865 = scalar_lea.vmem %s226, %s1864
        %v1866 = vld [vmem:[%s1865] sm:$0xff]
        %v1867 = vld [vmem:[%s1865 + $0x8] sm:$0xff]
        %v1868 = vld [vmem:[%s1865 + $0x10] sm:$0x3f]
        %v1869 = vld [vmem:[%s1865 + $0x18] sm:$0xff]
        %v1870 = vld [vmem:[%s1865 + $0x20] sm:$0xff]
        %v1871 = vld [vmem:[%s1865 + $0x28] sm:$0x3f]
        %v1872 = vld [vmem:[%s1865 + $0x30] sm:$0xff]
        %v1873 = vld [vmem:[%s1865 + $0x38] sm:$0xff]
        %v1874 = vld [vmem:[%s1865 + $0x40] sm:$0x3f]
        %v1875 = vld [vmem:[%s1865 + $0x48] sm:$0xff]
        %v1876 = vld [vmem:[%s1865 + $0x50] sm:$0xff]
        %v1877 = vld [vmem:[%s1865 + $0x58] sm:$0x3f]
        %v1878 = vld [vmem:[%s1865 + $0x60] sm:$0xff]
        %v1879 = vld [vmem:[%s1865 + $0x68] sm:$0xff]
        %v1880 = vld [vmem:[%s1865 + $0x70] sm:$0x3f]
        %v1881 = vld [vmem:[%s1865 + $0x78] sm:$0xff]
        %v1882 = vld [vmem:[%s1865 + $0x80] sm:$0xff]
        %v1883 = vld [vmem:[%s1865 + $0x88] sm:$0x3f]
        %v1884 = vld [vmem:[%s1865 + $0x90] sm:$0xff]
        %v1885 = vld [vmem:[%s1865 + $0x98] sm:$0xff]
        %v1886 = vld [vmem:[%s1865 + $0xa0] sm:$0x3f]
        %v1887 = vld [vmem:[%s1865 + $0xa8] sm:$0xff]
        %v1888 = vld [vmem:[%s1865 + $0xb0] sm:$0xff]
        %v1889 = vld [vmem:[%s1865 + $0xb8] sm:$0x3f]
        %v1890 = vlaneseq
        %v1891 = vshrl.u32 %v1890, 7
        %v1892 = vsub.s32 0, %v1891
        %v1893 = vrot.slane %v239, %v1892
        %v1894 = vmul.f32 %v1866, %v1893
        %v1895 = vmul.f32 %v1867, %v1893
        %v1896 = vmul.f32 %v1869, %v1893
        %v1897 = vmul.f32 %v1870, %v1893
        %v1898 = vmul.f32 %v1872, %v1893
        %v1899 = vmul.f32 %v1873, %v1893
        %v1900 = vmul.f32 %v1875, %v1893
        %v1901 = vmul.f32 %v1876, %v1893
        %v1902 = vmul.f32 %v1878, %v1893
        %v1903 = vmul.f32 %v1879, %v1893
        %v1904 = vmul.f32 %v1881, %v1893
        %v1905 = vmul.f32 %v1882, %v1893
        %v1906 = vmul.f32 %v1884, %v1893
        %v1907 = vmul.f32 %v1885, %v1893
        %v1908 = vmul.f32 %v1887, %v1893
        %v1909 = vmul.f32 %v1888, %v1893
        %v1910 = vadd.f32 %v1847, %v1894
        %v1911 = vadd.f32 %v1848, %v1895
        %v1912 = vadd.f32 %v1849, %v1896
        %v1913 = vadd.f32 %v1850, %v1897
        %v1914 = vadd.f32 %v1851, %v1898
        %v1915 = vadd.f32 %v1852, %v1899
        %v1916 = vadd.f32 %v1853, %v1900
        %v1917 = vadd.f32 %v1854, %v1901
        %v1918 = vadd.f32 %v1855, %v1902
        %v1919 = vadd.f32 %v1856, %v1903
        %v1920 = vadd.f32 %v1857, %v1904
        %v1921 = vadd.f32 %v1858, %v1905
        %v1922 = vadd.f32 %v1859, %v1906
        %v1923 = vadd.f32 %v1860, %v1907
        %v1924 = vadd.f32 %v1861, %v1908
        %v1925 = vadd.f32 %v1862, %v1909
        %v1926 = vlaneseq
        %v1927 = vshrl.u32 %v1926, 7
        %v1928 = vsub.s32 1, %v1927
        %v1929 = vrot.slane %v239, %v1928
        %v1930 = vmul.f32 %v1866, %v1929
        %v1931 = vmul.f32 %v1867, %v1929
        %v1932 = vmul.f32 %v1868, %v1929
        %v1933 = vmul.f32 %v1869, %v1929
        %v1934 = vmul.f32 %v1870, %v1929
        %v1935 = vmul.f32 %v1871, %v1929
        %v1936 = vmul.f32 %v1872, %v1929
        %v1937 = vmul.f32 %v1873, %v1929
        %v1938 = vmul.f32 %v1874, %v1929
        %v1939 = vmul.f32 %v1875, %v1929
        %v1940 = vmul.f32 %v1876, %v1929
        %v1941 = vmul.f32 %v1877, %v1929
        %v1942 = vmul.f32 %v1878, %v1929
        %v1943 = vmul.f32 %v1879, %v1929
        %v1944 = vmul.f32 %v1880, %v1929
        %v1945 = vmul.f32 %v1881, %v1929
        %v1946 = vmul.f32 %v1882, %v1929
        %v1947 = vmul.f32 %v1883, %v1929
        %v1948 = vmul.f32 %v1884, %v1929
        %v1949 = vmul.f32 %v1885, %v1929
        %v1950 = vmul.f32 %v1886, %v1929
        %v1951 = vmul.f32 %v1887, %v1929
        %v1952 = vmul.f32 %v1888, %v1929
        %v1953 = vmul.f32 %v1889, %v1929
        %v1978 = vrot.slane %v1930, 1
        %v1979 = vrot.slane %v1931, 1
        %v1980 = vsel %vm358, %v1978, %v1979
        %v1981 = vrot.slane %v1932, 1
        %v1982 = vsel %vm358, %v1979, %v1981
        %v1983 = vrot.slane %v1933, 1
        %v1984 = vrot.slane %v1934, 1
        %v1985 = vsel %vm358, %v1983, %v1984
        %v1986 = vrot.slane %v1935, 1
        %v1987 = vsel %vm358, %v1984, %v1986
        %v1988 = vrot.slane %v1936, 1
        %v1989 = vrot.slane %v1937, 1
        %v1990 = vsel %vm358, %v1988, %v1989
        %v1991 = vrot.slane %v1938, 1
        %v1992 = vsel %vm358, %v1989, %v1991
        %v1993 = vrot.slane %v1939, 1
        %v1994 = vrot.slane %v1940, 1
        %v1995 = vsel %vm358, %v1993, %v1994
        %v1996 = vrot.slane %v1941, 1
        %v1997 = vsel %vm358, %v1994, %v1996
        %v1998 = vrot.slane %v1942, 1
        %v1999 = vrot.slane %v1943, 1
        %v2000 = vsel %vm358, %v1998, %v1999
        %v2001 = vrot.slane %v1944, 1
        %v2002 = vsel %vm358, %v1999, %v2001
        %v2003 = vrot.slane %v1945, 1
        %v2004 = vrot.slane %v1946, 1
        %v2005 = vsel %vm358, %v2003, %v2004
        %v2006 = vrot.slane %v1947, 1
        %v2007 = vsel %vm358, %v2004, %v2006
        %v2008 = vrot.slane %v1948, 1
        %v2009 = vrot.slane %v1949, 1
        %v2010 = vsel %vm358, %v2008, %v2009
        %v2011 = vrot.slane %v1950, 1
        %v2012 = vsel %vm358, %v2009, %v2011
        %v2013 = vrot.slane %v1951, 1
        %v2014 = vrot.slane %v1952, 1
        %v2015 = vsel %vm358, %v2013, %v2014
        %v2016 = vrot.slane %v1953, 1
        %v2017 = vsel %vm358, %v2014, %v2016
        %v2034 = vadd.f32 %v1910, %v1980
        %v2035 = vadd.f32 %v1911, %v1982
        %v2036 = vadd.f32 %v1912, %v1985
        %v2037 = vadd.f32 %v1913, %v1987
        %v2038 = vadd.f32 %v1914, %v1990
        %v2039 = vadd.f32 %v1915, %v1992
        %v2040 = vadd.f32 %v1916, %v1995
        %v2041 = vadd.f32 %v1917, %v1997
        %v2042 = vadd.f32 %v1918, %v2000
        %v2043 = vadd.f32 %v1919, %v2002
        %v2044 = vadd.f32 %v1920, %v2005
        %v2045 = vadd.f32 %v1921, %v2007
        %v2046 = vadd.f32 %v1922, %v2010
        %v2047 = vadd.f32 %v1923, %v2012
        %v2048 = vadd.f32 %v1924, %v2015
        %v2049 = vadd.f32 %v1925, %v2017
        %v2050 = vlaneseq
        %v2051 = vshrl.u32 %v2050, 7
        %v2052 = vsub.s32 2, %v2051
        %v2053 = vrot.slane %v239, %v2052
        %v2054 = vmul.f32 %v1866, %v2053
        %v2055 = vmul.f32 %v1867, %v2053
        %v2056 = vmul.f32 %v1868, %v2053
        %v2057 = vmul.f32 %v1869, %v2053
        %v2058 = vmul.f32 %v1870, %v2053
        %v2059 = vmul.f32 %v1871, %v2053
        %v2060 = vmul.f32 %v1872, %v2053
        %v2061 = vmul.f32 %v1873, %v2053
        %v2062 = vmul.f32 %v1874, %v2053
        %v2063 = vmul.f32 %v1875, %v2053
        %v2064 = vmul.f32 %v1876, %v2053
        %v2065 = vmul.f32 %v1877, %v2053
        %v2066 = vmul.f32 %v1878, %v2053
        %v2067 = vmul.f32 %v1879, %v2053
        %v2068 = vmul.f32 %v1880, %v2053
        %v2069 = vmul.f32 %v1881, %v2053
        %v2070 = vmul.f32 %v1882, %v2053
        %v2071 = vmul.f32 %v1883, %v2053
        %v2072 = vmul.f32 %v1884, %v2053
        %v2073 = vmul.f32 %v1885, %v2053
        %v2074 = vmul.f32 %v1886, %v2053
        %v2075 = vmul.f32 %v1887, %v2053
        %v2076 = vmul.f32 %v1888, %v2053
        %v2077 = vmul.f32 %v1889, %v2053
        %v2102 = vrot.slane %v2054, 2
        %v2103 = vrot.slane %v2055, 2
        %v2104 = vsel %vm483, %v2102, %v2103
        %v2105 = vrot.slane %v2056, 2
        %v2106 = vsel %vm483, %v2103, %v2105
        %v2107 = vrot.slane %v2057, 2
        %v2108 = vrot.slane %v2058, 2
        %v2109 = vsel %vm483, %v2107, %v2108
        %v2110 = vrot.slane %v2059, 2
        %v2111 = vsel %vm483, %v2108, %v2110
        %v2112 = vrot.slane %v2060, 2
        %v2113 = vrot.slane %v2061, 2
        %v2114 = vsel %vm483, %v2112, %v2113
        %v2115 = vrot.slane %v2062, 2
        %v2116 = vsel %vm483, %v2113, %v2115
        %v2117 = vrot.slane %v2063, 2
        %v2118 = vrot.slane %v2064, 2
        %v2119 = vsel %vm483, %v2117, %v2118
        %v2120 = vrot.slane %v2065, 2
        %v2121 = vsel %vm483, %v2118, %v2120
        %v2122 = vrot.slane %v2066, 2
        %v2123 = vrot.slane %v2067, 2
        %v2124 = vsel %vm483, %v2122, %v2123
        %v2125 = vrot.slane %v2068, 2
        %v2126 = vsel %vm483, %v2123, %v2125
        %v2127 = vrot.slane %v2069, 2
        %v2128 = vrot.slane %v2070, 2
        %v2129 = vsel %vm483, %v2127, %v2128
        %v2130 = vrot.slane %v2071, 2
        %v2131 = vsel %vm483, %v2128, %v2130
        %v2132 = vrot.slane %v2072, 2
        %v2133 = vrot.slane %v2073, 2
        %v2134 = vsel %vm483, %v2132, %v2133
        %v2135 = vrot.slane %v2074, 2
        %v2136 = vsel %vm483, %v2133, %v2135
        %v2137 = vrot.slane %v2075, 2
        %v2138 = vrot.slane %v2076, 2
        %v2139 = vsel %vm483, %v2137, %v2138
        %v2140 = vrot.slane %v2077, 2
        %v2141 = vsel %vm483, %v2138, %v2140
        %v2158 = vadd.f32 %v2034, %v2104
        %v2159 = vadd.f32 %v2035, %v2106
        %v2160 = vadd.f32 %v2036, %v2109
        %v2161 = vadd.f32 %v2037, %v2111
        %v2162 = vadd.f32 %v2038, %v2114
        %v2163 = vadd.f32 %v2039, %v2116
        %v2164 = vadd.f32 %v2040, %v2119
        %v2165 = vadd.f32 %v2041, %v2121
        %v2166 = vadd.f32 %v2042, %v2124
        %v2167 = vadd.f32 %v2043, %v2126
        %v2168 = vadd.f32 %v2044, %v2129
        %v2169 = vadd.f32 %v2045, %v2131
        %v2170 = vadd.f32 %v2046, %v2134
        %v2171 = vadd.f32 %v2047, %v2136
        %v2172 = vadd.f32 %v2048, %v2139
        %v2173 = vadd.f32 %v2049, %v2141
        %v2174 = vlaneseq
        %v2175 = vshrl.u32 %v2174, 7
        %v2176 = vsub.s32 3, %v2175
        %v2177 = vrot.slane %v239, %v2176
        %v2178 = vmul.f32 %v1866, %v2177
        %v2179 = vmul.f32 %v1867, %v2177
        %v2180 = vmul.f32 %v1868, %v2177
        %v2181 = vmul.f32 %v1869, %v2177
        %v2182 = vmul.f32 %v1870, %v2177
        %v2183 = vmul.f32 %v1871, %v2177
        %v2184 = vmul.f32 %v1872, %v2177
        %v2185 = vmul.f32 %v1873, %v2177
        %v2186 = vmul.f32 %v1874, %v2177
        %v2187 = vmul.f32 %v1875, %v2177
        %v2188 = vmul.f32 %v1876, %v2177
        %v2189 = vmul.f32 %v1877, %v2177
        %v2190 = vmul.f32 %v1878, %v2177
        %v2191 = vmul.f32 %v1879, %v2177
        %v2192 = vmul.f32 %v1880, %v2177
        %v2193 = vmul.f32 %v1881, %v2177
        %v2194 = vmul.f32 %v1882, %v2177
        %v2195 = vmul.f32 %v1883, %v2177
        %v2196 = vmul.f32 %v1884, %v2177
        %v2197 = vmul.f32 %v1885, %v2177
        %v2198 = vmul.f32 %v1886, %v2177
        %v2199 = vmul.f32 %v1887, %v2177
        %v2200 = vmul.f32 %v1888, %v2177
        %v2201 = vmul.f32 %v1889, %v2177
        %v2226 = vrot.slane %v2178, 3
        %v2227 = vrot.slane %v2179, 3
        %v2228 = vsel %vm608, %v2226, %v2227
        %v2229 = vrot.slane %v2180, 3
        %v2230 = vsel %vm608, %v2227, %v2229
        %v2231 = vrot.slane %v2181, 3
        %v2232 = vrot.slane %v2182, 3
        %v2233 = vsel %vm608, %v2231, %v2232
        %v2234 = vrot.slane %v2183, 3
        %v2235 = vsel %vm608, %v2232, %v2234
        %v2236 = vrot.slane %v2184, 3
        %v2237 = vrot.slane %v2185, 3
        %v2238 = vsel %vm608, %v2236, %v2237
        %v2239 = vrot.slane %v2186, 3
        %v2240 = vsel %vm608, %v2237, %v2239
        %v2241 = vrot.slane %v2187, 3
        %v2242 = vrot.slane %v2188, 3
        %v2243 = vsel %vm608, %v2241, %v2242
        %v2244 = vrot.slane %v2189, 3
        %v2245 = vsel %vm608, %v2242, %v2244
        %v2246 = vrot.slane %v2190, 3
        %v2247 = vrot.slane %v2191, 3
        %v2248 = vsel %vm608, %v2246, %v2247
        %v2249 = vrot.slane %v2192, 3
        %v2250 = vsel %vm608, %v2247, %v2249
        %v2251 = vrot.slane %v2193, 3
        %v2252 = vrot.slane %v2194, 3
        %v2253 = vsel %vm608, %v2251, %v2252
        %v2254 = vrot.slane %v2195, 3
        %v2255 = vsel %vm608, %v2252, %v2254
        %v2256 = vrot.slane %v2196, 3
        %v2257 = vrot.slane %v2197, 3
        %v2258 = vsel %vm608, %v2256, %v2257
        %v2259 = vrot.slane %v2198, 3
        %v2260 = vsel %vm608, %v2257, %v2259
        %v2261 = vrot.slane %v2199, 3
        %v2262 = vrot.slane %v2200, 3
        %v2263 = vsel %vm608, %v2261, %v2262
        %v2264 = vrot.slane %v2201, 3
        %v2265 = vsel %vm608, %v2262, %v2264
        %v2282 = vadd.f32 %v2158, %v2228
        %v2283 = vadd.f32 %v2159, %v2230
        %v2284 = vadd.f32 %v2160, %v2233
        %v2285 = vadd.f32 %v2161, %v2235
        %v2286 = vadd.f32 %v2162, %v2238
        %v2287 = vadd.f32 %v2163, %v2240
        %v2288 = vadd.f32 %v2164, %v2243
        %v2289 = vadd.f32 %v2165, %v2245
        %v2290 = vadd.f32 %v2166, %v2248
        %v2291 = vadd.f32 %v2167, %v2250
        %v2292 = vadd.f32 %v2168, %v2253
        %v2293 = vadd.f32 %v2169, %v2255
        %v2294 = vadd.f32 %v2170, %v2258
        %v2295 = vadd.f32 %v2171, %v2260
        %v2296 = vadd.f32 %v2172, %v2263
        %v2297 = vadd.f32 %v2173, %v2265
        %v2298 = vlaneseq
        %v2299 = vshrl.u32 %v2298, 7
        %v2300 = vsub.s32 4, %v2299
        %v2301 = vrot.slane %v239, %v2300
        %v2302 = vmul.f32 %v1866, %v2301
        %v2303 = vmul.f32 %v1867, %v2301
        %v2304 = vmul.f32 %v1868, %v2301
        %v2305 = vmul.f32 %v1869, %v2301
        %v2306 = vmul.f32 %v1870, %v2301
        %v2307 = vmul.f32 %v1871, %v2301
        %v2308 = vmul.f32 %v1872, %v2301
        %v2309 = vmul.f32 %v1873, %v2301
        %v2310 = vmul.f32 %v1874, %v2301
        %v2311 = vmul.f32 %v1875, %v2301
        %v2312 = vmul.f32 %v1876, %v2301
        %v2313 = vmul.f32 %v1877, %v2301
        %v2314 = vmul.f32 %v1878, %v2301
        %v2315 = vmul.f32 %v1879, %v2301
        %v2316 = vmul.f32 %v1880, %v2301
        %v2317 = vmul.f32 %v1881, %v2301
        %v2318 = vmul.f32 %v1882, %v2301
        %v2319 = vmul.f32 %v1883, %v2301
        %v2320 = vmul.f32 %v1884, %v2301
        %v2321 = vmul.f32 %v1885, %v2301
        %v2322 = vmul.f32 %v1886, %v2301
        %v2323 = vmul.f32 %v1887, %v2301
        %v2324 = vmul.f32 %v1888, %v2301
        %v2325 = vmul.f32 %v1889, %v2301
        %v2350 = vrot.slane %v2302, 4
        %v2351 = vrot.slane %v2303, 4
        %v2352 = vsel %vm733, %v2350, %v2351
        %v2353 = vrot.slane %v2304, 4
        %v2354 = vsel %vm733, %v2351, %v2353
        %v2355 = vrot.slane %v2305, 4
        %v2356 = vrot.slane %v2306, 4
        %v2357 = vsel %vm733, %v2355, %v2356
        %v2358 = vrot.slane %v2307, 4
        %v2359 = vsel %vm733, %v2356, %v2358
        %v2360 = vrot.slane %v2308, 4
        %v2361 = vrot.slane %v2309, 4
        %v2362 = vsel %vm733, %v2360, %v2361
        %v2363 = vrot.slane %v2310, 4
        %v2364 = vsel %vm733, %v2361, %v2363
        %v2365 = vrot.slane %v2311, 4
        %v2366 = vrot.slane %v2312, 4
        %v2367 = vsel %vm733, %v2365, %v2366
        %v2368 = vrot.slane %v2313, 4
        %v2369 = vsel %vm733, %v2366, %v2368
        %v2370 = vrot.slane %v2314, 4
        %v2371 = vrot.slane %v2315, 4
        %v2372 = vsel %vm733, %v2370, %v2371
        %v2373 = vrot.slane %v2316, 4
        %v2374 = vsel %vm733, %v2371, %v2373
        %v2375 = vrot.slane %v2317, 4
        %v2376 = vrot.slane %v2318, 4
        %v2377 = vsel %vm733, %v2375, %v2376
        %v2378 = vrot.slane %v2319, 4
        %v2379 = vsel %vm733, %v2376, %v2378
        %v2380 = vrot.slane %v2320, 4
        %v2381 = vrot.slane %v2321, 4
        %v2382 = vsel %vm733, %v2380, %v2381
        %v2383 = vrot.slane %v2322, 4
        %v2384 = vsel %vm733, %v2381, %v2383
        %v2385 = vrot.slane %v2323, 4
        %v2386 = vrot.slane %v2324, 4
        %v2387 = vsel %vm733, %v2385, %v2386
        %v2388 = vrot.slane %v2325, 4
        %v2389 = vsel %vm733, %v2386, %v2388
        %v2406 = vadd.f32 %v2282, %v2352
        %v2407 = vadd.f32 %v2283, %v2354
        %v2408 = vadd.f32 %v2284, %v2357
        %v2409 = vadd.f32 %v2285, %v2359
        %v2410 = vadd.f32 %v2286, %v2362
        %v2411 = vadd.f32 %v2287, %v2364
        %v2412 = vadd.f32 %v2288, %v2367
        %v2413 = vadd.f32 %v2289, %v2369
        %v2414 = vadd.f32 %v2290, %v2372
        %v2415 = vadd.f32 %v2291, %v2374
        %v2416 = vadd.f32 %v2292, %v2377
        %v2417 = vadd.f32 %v2293, %v2379
        %v2418 = vadd.f32 %v2294, %v2382
        %v2419 = vadd.f32 %v2295, %v2384
        %v2420 = vadd.f32 %v2296, %v2387
        %v2421 = vadd.f32 %v2297, %v2389
        %v2422 = vlaneseq
        %v2423 = vshrl.u32 %v2422, 7
        %v2424 = vsub.s32 5, %v2423
        %v2425 = vrot.slane %v239, %v2424
        %v2426 = vmul.f32 %v1866, %v2425
        %v2427 = vmul.f32 %v1867, %v2425
        %v2428 = vmul.f32 %v1868, %v2425
        %v2429 = vmul.f32 %v1869, %v2425
        %v2430 = vmul.f32 %v1870, %v2425
        %v2431 = vmul.f32 %v1871, %v2425
        %v2432 = vmul.f32 %v1872, %v2425
        %v2433 = vmul.f32 %v1873, %v2425
        %v2434 = vmul.f32 %v1874, %v2425
        %v2435 = vmul.f32 %v1875, %v2425
        %v2436 = vmul.f32 %v1876, %v2425
        %v2437 = vmul.f32 %v1877, %v2425
        %v2438 = vmul.f32 %v1878, %v2425
        %v2439 = vmul.f32 %v1879, %v2425
        %v2440 = vmul.f32 %v1880, %v2425
        %v2441 = vmul.f32 %v1881, %v2425
        %v2442 = vmul.f32 %v1882, %v2425
        %v2443 = vmul.f32 %v1883, %v2425
        %v2444 = vmul.f32 %v1884, %v2425
        %v2445 = vmul.f32 %v1885, %v2425
        %v2446 = vmul.f32 %v1886, %v2425
        %v2447 = vmul.f32 %v1887, %v2425
        %v2448 = vmul.f32 %v1888, %v2425
        %v2449 = vmul.f32 %v1889, %v2425
        %v2474 = vrot.slane %v2426, 5
        %v2475 = vrot.slane %v2427, 5
        %v2476 = vsel %vm858, %v2474, %v2475
        %v2477 = vrot.slane %v2428, 5
        %v2478 = vsel %vm858, %v2475, %v2477
        %v2479 = vrot.slane %v2429, 5
        %v2480 = vrot.slane %v2430, 5
        %v2481 = vsel %vm858, %v2479, %v2480
        %v2482 = vrot.slane %v2431, 5
        %v2483 = vsel %vm858, %v2480, %v2482
        %v2484 = vrot.slane %v2432, 5
        %v2485 = vrot.slane %v2433, 5
        %v2486 = vsel %vm858, %v2484, %v2485
        %v2487 = vrot.slane %v2434, 5
        %v2488 = vsel %vm858, %v2485, %v2487
        %v2489 = vrot.slane %v2435, 5
        %v2490 = vrot.slane %v2436, 5
        %v2491 = vsel %vm858, %v2489, %v2490
        %v2492 = vrot.slane %v2437, 5
        %v2493 = vsel %vm858, %v2490, %v2492
        %v2494 = vrot.slane %v2438, 5
        %v2495 = vrot.slane %v2439, 5
        %v2496 = vsel %vm858, %v2494, %v2495
        %v2497 = vrot.slane %v2440, 5
        %v2498 = vsel %vm858, %v2495, %v2497
        %v2499 = vrot.slane %v2441, 5
        %v2500 = vrot.slane %v2442, 5
        %v2501 = vsel %vm858, %v2499, %v2500
        %v2502 = vrot.slane %v2443, 5
        %v2503 = vsel %vm858, %v2500, %v2502
        %v2504 = vrot.slane %v2444, 5
        %v2505 = vrot.slane %v2445, 5
        %v2506 = vsel %vm858, %v2504, %v2505
        %v2507 = vrot.slane %v2446, 5
        %v2508 = vsel %vm858, %v2505, %v2507
        %v2509 = vrot.slane %v2447, 5
        %v2510 = vrot.slane %v2448, 5
        %v2511 = vsel %vm858, %v2509, %v2510
        %v2512 = vrot.slane %v2449, 5
        %v2513 = vsel %vm858, %v2510, %v2512
        %v2530 = vadd.f32 %v2406, %v2476
        %v2531 = vadd.f32 %v2407, %v2478
        %v2532 = vadd.f32 %v2408, %v2481
        %v2533 = vadd.f32 %v2409, %v2483
        %v2534 = vadd.f32 %v2410, %v2486
        %v2535 = vadd.f32 %v2411, %v2488
        %v2536 = vadd.f32 %v2412, %v2491
        %v2537 = vadd.f32 %v2413, %v2493
        %v2538 = vadd.f32 %v2414, %v2496
        %v2539 = vadd.f32 %v2415, %v2498
        %v2540 = vadd.f32 %v2416, %v2501
        %v2541 = vadd.f32 %v2417, %v2503
        %v2542 = vadd.f32 %v2418, %v2506
        %v2543 = vadd.f32 %v2419, %v2508
        %v2544 = vadd.f32 %v2420, %v2511
        %v2545 = vadd.f32 %v2421, %v2513
        %v2546 = vlaneseq
        %v2547 = vshrl.u32 %v2546, 7
        %v2548 = vsub.s32 6, %v2547
        %v2549 = vrot.slane %v239, %v2548
        %v2550 = vmul.f32 %v1866, %v2549
        %v2551 = vmul.f32 %v1867, %v2549
        %v2552 = vmul.f32 %v1868, %v2549
        %v2553 = vmul.f32 %v1869, %v2549
        %v2554 = vmul.f32 %v1870, %v2549
        %v2555 = vmul.f32 %v1871, %v2549
        %v2556 = vmul.f32 %v1872, %v2549
        %v2557 = vmul.f32 %v1873, %v2549
        %v2558 = vmul.f32 %v1874, %v2549
        %v2559 = vmul.f32 %v1875, %v2549
        %v2560 = vmul.f32 %v1876, %v2549
        %v2561 = vmul.f32 %v1877, %v2549
        %v2562 = vmul.f32 %v1878, %v2549
        %v2563 = vmul.f32 %v1879, %v2549
        %v2564 = vmul.f32 %v1880, %v2549
        %v2565 = vmul.f32 %v1881, %v2549
        %v2566 = vmul.f32 %v1882, %v2549
        %v2567 = vmul.f32 %v1883, %v2549
        %v2568 = vmul.f32 %v1884, %v2549
        %v2569 = vmul.f32 %v1885, %v2549
        %v2570 = vmul.f32 %v1886, %v2549
        %v2571 = vmul.f32 %v1887, %v2549
        %v2572 = vmul.f32 %v1888, %v2549
        %v2573 = vmul.f32 %v1889, %v2549
        %v2598 = vrot.slane %v2550, 6
        %v2599 = vrot.slane %v2551, 6
        %v2600 = vsel %vm983, %v2598, %v2599
        %v2601 = vrot.slane %v2552, 6
        %v2602 = vsel %vm983, %v2599, %v2601
        %v2603 = vrot.slane %v2553, 6
        %v2604 = vrot.slane %v2554, 6
        %v2605 = vsel %vm983, %v2603, %v2604
        %v2606 = vrot.slane %v2555, 6
        %v2607 = vsel %vm983, %v2604, %v2606
        %v2608 = vrot.slane %v2556, 6
        %v2609 = vrot.slane %v2557, 6
        %v2610 = vsel %vm983, %v2608, %v2609
        %v2611 = vrot.slane %v2558, 6
        %v2612 = vsel %vm983, %v2609, %v2611
        %v2613 = vrot.slane %v2559, 6
        %v2614 = vrot.slane %v2560, 6
        %v2615 = vsel %vm983, %v2613, %v2614
        %v2616 = vrot.slane %v2561, 6
        %v2617 = vsel %vm983, %v2614, %v2616
        %v2618 = vrot.slane %v2562, 6
        %v2619 = vrot.slane %v2563, 6
        %v2620 = vsel %vm983, %v2618, %v2619
        %v2621 = vrot.slane %v2564, 6
        %v2622 = vsel %vm983, %v2619, %v2621
        %v2623 = vrot.slane %v2565, 6
        %v2624 = vrot.slane %v2566, 6
        %v2625 = vsel %vm983, %v2623, %v2624
        %v2626 = vrot.slane %v2567, 6
        %v2627 = vsel %vm983, %v2624, %v2626
        %v2628 = vrot.slane %v2568, 6
        %v2629 = vrot.slane %v2569, 6
        %v2630 = vsel %vm983, %v2628, %v2629
        %v2631 = vrot.slane %v2570, 6
        %v2632 = vsel %vm983, %v2629, %v2631
        %v2633 = vrot.slane %v2571, 6
        %v2634 = vrot.slane %v2572, 6
        %v2635 = vsel %vm983, %v2633, %v2634
        %v2636 = vrot.slane %v2573, 6
        %v2637 = vsel %vm983, %v2634, %v2636
        %v2654 = vadd.f32 %v2530, %v2600
        %v2655 = vadd.f32 %v2531, %v2602
        %v2656 = vadd.f32 %v2532, %v2605
        %v2657 = vadd.f32 %v2533, %v2607
        %v2658 = vadd.f32 %v2534, %v2610
        %v2659 = vadd.f32 %v2535, %v2612
        %v2660 = vadd.f32 %v2536, %v2615
        %v2661 = vadd.f32 %v2537, %v2617
        %v2662 = vadd.f32 %v2538, %v2620
        %v2663 = vadd.f32 %v2539, %v2622
        %v2664 = vadd.f32 %v2540, %v2625
        %v2665 = vadd.f32 %v2541, %v2627
        %v2666 = vadd.f32 %v2542, %v2630
        %v2667 = vadd.f32 %v2543, %v2632
        %v2668 = vadd.f32 %v2544, %v2635
        %v2669 = vadd.f32 %v2545, %v2637
        %s2670 = sadd.s32 %s235, 3
        %s2671 = smul.u32 %s2670, 24
        %s2672 = scalar_lea.vmem %s226, %s2671
        %v2673 = vld [vmem:[%s2672] sm:$0xff]
        %v2674 = vld [vmem:[%s2672 + $0x8] sm:$0xff]
        %v2675 = vld [vmem:[%s2672 + $0x10] sm:$0x3f]
        %v2676 = vld [vmem:[%s2672 + $0x18] sm:$0xff]
        %v2677 = vld [vmem:[%s2672 + $0x20] sm:$0xff]
        %v2678 = vld [vmem:[%s2672 + $0x28] sm:$0x3f]
        %v2679 = vld [vmem:[%s2672 + $0x30] sm:$0xff]
        %v2680 = vld [vmem:[%s2672 + $0x38] sm:$0xff]
        %v2681 = vld [vmem:[%s2672 + $0x40] sm:$0x3f]
        %v2682 = vld [vmem:[%s2672 + $0x48] sm:$0xff]
        %v2683 = vld [vmem:[%s2672 + $0x50] sm:$0xff]
        %v2684 = vld [vmem:[%s2672 + $0x58] sm:$0x3f]
        %v2685 = vld [vmem:[%s2672 + $0x60] sm:$0xff]
        %v2686 = vld [vmem:[%s2672 + $0x68] sm:$0xff]
        %v2687 = vld [vmem:[%s2672 + $0x70] sm:$0x3f]
        %v2688 = vld [vmem:[%s2672 + $0x78] sm:$0xff]
        %v2689 = vld [vmem:[%s2672 + $0x80] sm:$0xff]
        %v2690 = vld [vmem:[%s2672 + $0x88] sm:$0x3f]
        %v2691 = vld [vmem:[%s2672 + $0x90] sm:$0xff]
        %v2692 = vld [vmem:[%s2672 + $0x98] sm:$0xff]
        %v2693 = vld [vmem:[%s2672 + $0xa0] sm:$0x3f]
        %v2694 = vld [vmem:[%s2672 + $0xa8] sm:$0xff]
        %v2695 = vld [vmem:[%s2672 + $0xb0] sm:$0xff]
        %v2696 = vld [vmem:[%s2672 + $0xb8] sm:$0x3f]
        %v2697 = vlaneseq
        %v2698 = vshrl.u32 %v2697, 7
        %v2699 = vsub.s32 0, %v2698
        %v2700 = vrot.slane %v240, %v2699
        %v2701 = vmul.f32 %v2673, %v2700
        %v2702 = vmul.f32 %v2674, %v2700
        %v2703 = vmul.f32 %v2676, %v2700
        %v2704 = vmul.f32 %v2677, %v2700
        %v2705 = vmul.f32 %v2679, %v2700
        %v2706 = vmul.f32 %v2680, %v2700
        %v2707 = vmul.f32 %v2682, %v2700
        %v2708 = vmul.f32 %v2683, %v2700
        %v2709 = vmul.f32 %v2685, %v2700
        %v2710 = vmul.f32 %v2686, %v2700
        %v2711 = vmul.f32 %v2688, %v2700
        %v2712 = vmul.f32 %v2689, %v2700
        %v2713 = vmul.f32 %v2691, %v2700
        %v2714 = vmul.f32 %v2692, %v2700
        %v2715 = vmul.f32 %v2694, %v2700
        %v2716 = vmul.f32 %v2695, %v2700
        %v2717 = vadd.f32 %v2654, %v2701
        %v2718 = vadd.f32 %v2655, %v2702
        %v2719 = vadd.f32 %v2656, %v2703
        %v2720 = vadd.f32 %v2657, %v2704
        %v2721 = vadd.f32 %v2658, %v2705
        %v2722 = vadd.f32 %v2659, %v2706
        %v2723 = vadd.f32 %v2660, %v2707
        %v2724 = vadd.f32 %v2661, %v2708
        %v2725 = vadd.f32 %v2662, %v2709
        %v2726 = vadd.f32 %v2663, %v2710
        %v2727 = vadd.f32 %v2664, %v2711
        %v2728 = vadd.f32 %v2665, %v2712
        %v2729 = vadd.f32 %v2666, %v2713
        %v2730 = vadd.f32 %v2667, %v2714
        %v2731 = vadd.f32 %v2668, %v2715
        %v2732 = vadd.f32 %v2669, %v2716
        %v2733 = vlaneseq
        %v2734 = vshrl.u32 %v2733, 7
        %v2735 = vsub.s32 1, %v2734
        %v2736 = vrot.slane %v240, %v2735
        %v2737 = vmul.f32 %v2673, %v2736
        %v2738 = vmul.f32 %v2674, %v2736
        %v2739 = vmul.f32 %v2675, %v2736
        %v2740 = vmul.f32 %v2676, %v2736
        %v2741 = vmul.f32 %v2677, %v2736
        %v2742 = vmul.f32 %v2678, %v2736
        %v2743 = vmul.f32 %v2679, %v2736
        %v2744 = vmul.f32 %v2680, %v2736
        %v2745 = vmul.f32 %v2681, %v2736
        %v2746 = vmul.f32 %v2682, %v2736
        %v2747 = vmul.f32 %v2683, %v2736
        %v2748 = vmul.f32 %v2684, %v2736
        %v2749 = vmul.f32 %v2685, %v2736
        %v2750 = vmul.f32 %v2686, %v2736
        %v2751 = vmul.f32 %v2687, %v2736
        %v2752 = vmul.f32 %v2688, %v2736
        %v2753 = vmul.f32 %v2689, %v2736
        %v2754 = vmul.f32 %v2690, %v2736
        %v2755 = vmul.f32 %v2691, %v2736
        %v2756 = vmul.f32 %v2692, %v2736
        %v2757 = vmul.f32 %v2693, %v2736
        %v2758 = vmul.f32 %v2694, %v2736
        %v2759 = vmul.f32 %v2695, %v2736
        %v2760 = vmul.f32 %v2696, %v2736
        %v2785 = vrot.slane %v2737, 1
        %v2786 = vrot.slane %v2738, 1
        %v2787 = vsel %vm358, %v2785, %v2786
        %v2788 = vrot.slane %v2739, 1
        %v2789 = vsel %vm358, %v2786, %v2788
        %v2790 = vrot.slane %v2740, 1
        %v2791 = vrot.slane %v2741, 1
        %v2792 = vsel %vm358, %v2790, %v2791
        %v2793 = vrot.slane %v2742, 1
        %v2794 = vsel %vm358, %v2791, %v2793
        %v2795 = vrot.slane %v2743, 1
        %v2796 = vrot.slane %v2744, 1
        %v2797 = vsel %vm358, %v2795, %v2796
        %v2798 = vrot.slane %v2745, 1
        %v2799 = vsel %vm358, %v2796, %v2798
        %v2800 = vrot.slane %v2746, 1
        %v2801 = vrot.slane %v2747, 1
        %v2802 = vsel %vm358, %v2800, %v2801
        %v2803 = vrot.slane %v2748, 1
        %v2804 = vsel %vm358, %v2801, %v2803
        %v2805 = vrot.slane %v2749, 1
        %v2806 = vrot.slane %v2750, 1
        %v2807 = vsel %vm358, %v2805, %v2806
        %v2808 = vrot.slane %v2751, 1
        %v2809 = vsel %vm358, %v2806, %v2808
        %v2810 = vrot.slane %v2752, 1
        %v2811 = vrot.slane %v2753, 1
        %v2812 = vsel %vm358, %v2810, %v2811
        %v2813 = vrot.slane %v2754, 1
        %v2814 = vsel %vm358, %v2811, %v2813
        %v2815 = vrot.slane %v2755, 1
        %v2816 = vrot.slane %v2756, 1
        %v2817 = vsel %vm358, %v2815, %v2816
        %v2818 = vrot.slane %v2757, 1
        %v2819 = vsel %vm358, %v2816, %v2818
        %v2820 = vrot.slane %v2758, 1
        %v2821 = vrot.slane %v2759, 1
        %v2822 = vsel %vm358, %v2820, %v2821
        %v2823 = vrot.slane %v2760, 1
        %v2824 = vsel %vm358, %v2821, %v2823
        %v2841 = vadd.f32 %v2717, %v2787
        %v2842 = vadd.f32 %v2718, %v2789
        %v2843 = vadd.f32 %v2719, %v2792
        %v2844 = vadd.f32 %v2720, %v2794
        %v2845 = vadd.f32 %v2721, %v2797
        %v2846 = vadd.f32 %v2722, %v2799
        %v2847 = vadd.f32 %v2723, %v2802
        %v2848 = vadd.f32 %v2724, %v2804
        %v2849 = vadd.f32 %v2725, %v2807
        %v2850 = vadd.f32 %v2726, %v2809
        %v2851 = vadd.f32 %v2727, %v2812
        %v2852 = vadd.f32 %v2728, %v2814
        %v2853 = vadd.f32 %v2729, %v2817
        %v2854 = vadd.f32 %v2730, %v2819
        %v2855 = vadd.f32 %v2731, %v2822
        %v2856 = vadd.f32 %v2732, %v2824
        %v2857 = vlaneseq
        %v2858 = vshrl.u32 %v2857, 7
        %v2859 = vsub.s32 2, %v2858
        %v2860 = vrot.slane %v240, %v2859
        %v2861 = vmul.f32 %v2673, %v2860
        %v2862 = vmul.f32 %v2674, %v2860
        %v2863 = vmul.f32 %v2675, %v2860
        %v2864 = vmul.f32 %v2676, %v2860
        %v2865 = vmul.f32 %v2677, %v2860
        %v2866 = vmul.f32 %v2678, %v2860
        %v2867 = vmul.f32 %v2679, %v2860
        %v2868 = vmul.f32 %v2680, %v2860
        %v2869 = vmul.f32 %v2681, %v2860
        %v2870 = vmul.f32 %v2682, %v2860
        %v2871 = vmul.f32 %v2683, %v2860
        %v2872 = vmul.f32 %v2684, %v2860
        %v2873 = vmul.f32 %v2685, %v2860
        %v2874 = vmul.f32 %v2686, %v2860
        %v2875 = vmul.f32 %v2687, %v2860
        %v2876 = vmul.f32 %v2688, %v2860
        %v2877 = vmul.f32 %v2689, %v2860
        %v2878 = vmul.f32 %v2690, %v2860
        %v2879 = vmul.f32 %v2691, %v2860
        %v2880 = vmul.f32 %v2692, %v2860
        %v2881 = vmul.f32 %v2693, %v2860
        %v2882 = vmul.f32 %v2694, %v2860
        %v2883 = vmul.f32 %v2695, %v2860
        %v2884 = vmul.f32 %v2696, %v2860
        %v2909 = vrot.slane %v2861, 2
        %v2910 = vrot.slane %v2862, 2
        %v2911 = vsel %vm483, %v2909, %v2910
        %v2912 = vrot.slane %v2863, 2
        %v2913 = vsel %vm483, %v2910, %v2912
        %v2914 = vrot.slane %v2864, 2
        %v2915 = vrot.slane %v2865, 2
        %v2916 = vsel %vm483, %v2914, %v2915
        %v2917 = vrot.slane %v2866, 2
        %v2918 = vsel %vm483, %v2915, %v2917
        %v2919 = vrot.slane %v2867, 2
        %v2920 = vrot.slane %v2868, 2
        %v2921 = vsel %vm483, %v2919, %v2920
        %v2922 = vrot.slane %v2869, 2
        %v2923 = vsel %vm483, %v2920, %v2922
        %v2924 = vrot.slane %v2870, 2
        %v2925 = vrot.slane %v2871, 2
        %v2926 = vsel %vm483, %v2924, %v2925
        %v2927 = vrot.slane %v2872, 2
        %v2928 = vsel %vm483, %v2925, %v2927
        %v2929 = vrot.slane %v2873, 2
        %v2930 = vrot.slane %v2874, 2
        %v2931 = vsel %vm483, %v2929, %v2930
        %v2932 = vrot.slane %v2875, 2
        %v2933 = vsel %vm483, %v2930, %v2932
        %v2934 = vrot.slane %v2876, 2
        %v2935 = vrot.slane %v2877, 2
        %v2936 = vsel %vm483, %v2934, %v2935
        %v2937 = vrot.slane %v2878, 2
        %v2938 = vsel %vm483, %v2935, %v2937
        %v2939 = vrot.slane %v2879, 2
        %v2940 = vrot.slane %v2880, 2
        %v2941 = vsel %vm483, %v2939, %v2940
        %v2942 = vrot.slane %v2881, 2
        %v2943 = vsel %vm483, %v2940, %v2942
        %v2944 = vrot.slane %v2882, 2
        %v2945 = vrot.slane %v2883, 2
        %v2946 = vsel %vm483, %v2944, %v2945
        %v2947 = vrot.slane %v2884, 2
        %v2948 = vsel %vm483, %v2945, %v2947
        %v2965 = vadd.f32 %v2841, %v2911
        %v2966 = vadd.f32 %v2842, %v2913
        %v2967 = vadd.f32 %v2843, %v2916
        %v2968 = vadd.f32 %v2844, %v2918
        %v2969 = vadd.f32 %v2845, %v2921
        %v2970 = vadd.f32 %v2846, %v2923
        %v2971 = vadd.f32 %v2847, %v2926
        %v2972 = vadd.f32 %v2848, %v2928
        %v2973 = vadd.f32 %v2849, %v2931
        %v2974 = vadd.f32 %v2850, %v2933
        %v2975 = vadd.f32 %v2851, %v2936
        %v2976 = vadd.f32 %v2852, %v2938
        %v2977 = vadd.f32 %v2853, %v2941
        %v2978 = vadd.f32 %v2854, %v2943
        %v2979 = vadd.f32 %v2855, %v2946
        %v2980 = vadd.f32 %v2856, %v2948
        %v2981 = vlaneseq
        %v2982 = vshrl.u32 %v2981, 7
        %v2983 = vsub.s32 3, %v2982
        %v2984 = vrot.slane %v240, %v2983
        %v2985 = vmul.f32 %v2673, %v2984
        %v2986 = vmul.f32 %v2674, %v2984
        %v2987 = vmul.f32 %v2675, %v2984
        %v2988 = vmul.f32 %v2676, %v2984
        %v2989 = vmul.f32 %v2677, %v2984
        %v2990 = vmul.f32 %v2678, %v2984
        %v2991 = vmul.f32 %v2679, %v2984
        %v2992 = vmul.f32 %v2680, %v2984
        %v2993 = vmul.f32 %v2681, %v2984
        %v2994 = vmul.f32 %v2682, %v2984
        %v2995 = vmul.f32 %v2683, %v2984
        %v2996 = vmul.f32 %v2684, %v2984
        %v2997 = vmul.f32 %v2685, %v2984
        %v2998 = vmul.f32 %v2686, %v2984
        %v2999 = vmul.f32 %v2687, %v2984
        %v3000 = vmul.f32 %v2688, %v2984
        %v3001 = vmul.f32 %v2689, %v2984
        %v3002 = vmul.f32 %v2690, %v2984
        %v3003 = vmul.f32 %v2691, %v2984
        %v3004 = vmul.f32 %v2692, %v2984
        %v3005 = vmul.f32 %v2693, %v2984
        %v3006 = vmul.f32 %v2694, %v2984
        %v3007 = vmul.f32 %v2695, %v2984
        %v3008 = vmul.f32 %v2696, %v2984
        %v3033 = vrot.slane %v2985, 3
        %v3034 = vrot.slane %v2986, 3
        %v3035 = vsel %vm608, %v3033, %v3034
        %v3036 = vrot.slane %v2987, 3
        %v3037 = vsel %vm608, %v3034, %v3036
        %v3038 = vrot.slane %v2988, 3
        %v3039 = vrot.slane %v2989, 3
        %v3040 = vsel %vm608, %v3038, %v3039
        %v3041 = vrot.slane %v2990, 3
        %v3042 = vsel %vm608, %v3039, %v3041
        %v3043 = vrot.slane %v2991, 3
        %v3044 = vrot.slane %v2992, 3
        %v3045 = vsel %vm608, %v3043, %v3044
        %v3046 = vrot.slane %v2993, 3
        %v3047 = vsel %vm608, %v3044, %v3046
        %v3048 = vrot.slane %v2994, 3
        %v3049 = vrot.slane %v2995, 3
        %v3050 = vsel %vm608, %v3048, %v3049
        %v3051 = vrot.slane %v2996, 3
        %v3052 = vsel %vm608, %v3049, %v3051
        %v3053 = vrot.slane %v2997, 3
        %v3054 = vrot.slane %v2998, 3
        %v3055 = vsel %vm608, %v3053, %v3054
        %v3056 = vrot.slane %v2999, 3
        %v3057 = vsel %vm608, %v3054, %v3056
        %v3058 = vrot.slane %v3000, 3
        %v3059 = vrot.slane %v3001, 3
        %v3060 = vsel %vm608, %v3058, %v3059
        %v3061 = vrot.slane %v3002, 3
        %v3062 = vsel %vm608, %v3059, %v3061
        %v3063 = vrot.slane %v3003, 3
        %v3064 = vrot.slane %v3004, 3
        %v3065 = vsel %vm608, %v3063, %v3064
        %v3066 = vrot.slane %v3005, 3
        %v3067 = vsel %vm608, %v3064, %v3066
        %v3068 = vrot.slane %v3006, 3
        %v3069 = vrot.slane %v3007, 3
        %v3070 = vsel %vm608, %v3068, %v3069
        %v3071 = vrot.slane %v3008, 3
        %v3072 = vsel %vm608, %v3069, %v3071
        %v3089 = vadd.f32 %v2965, %v3035
        %v3090 = vadd.f32 %v2966, %v3037
        %v3091 = vadd.f32 %v2967, %v3040
        %v3092 = vadd.f32 %v2968, %v3042
        %v3093 = vadd.f32 %v2969, %v3045
        %v3094 = vadd.f32 %v2970, %v3047
        %v3095 = vadd.f32 %v2971, %v3050
        %v3096 = vadd.f32 %v2972, %v3052
        %v3097 = vadd.f32 %v2973, %v3055
        %v3098 = vadd.f32 %v2974, %v3057
        %v3099 = vadd.f32 %v2975, %v3060
        %v3100 = vadd.f32 %v2976, %v3062
        %v3101 = vadd.f32 %v2977, %v3065
        %v3102 = vadd.f32 %v2978, %v3067
        %v3103 = vadd.f32 %v2979, %v3070
        %v3104 = vadd.f32 %v2980, %v3072
        %v3105 = vlaneseq
        %v3106 = vshrl.u32 %v3105, 7
        %v3107 = vsub.s32 4, %v3106
        %v3108 = vrot.slane %v240, %v3107
        %v3109 = vmul.f32 %v2673, %v3108
        %v3110 = vmul.f32 %v2674, %v3108
        %v3111 = vmul.f32 %v2675, %v3108
        %v3112 = vmul.f32 %v2676, %v3108
        %v3113 = vmul.f32 %v2677, %v3108
        %v3114 = vmul.f32 %v2678, %v3108
        %v3115 = vmul.f32 %v2679, %v3108
        %v3116 = vmul.f32 %v2680, %v3108
        %v3117 = vmul.f32 %v2681, %v3108
        %v3118 = vmul.f32 %v2682, %v3108
        %v3119 = vmul.f32 %v2683, %v3108
        %v3120 = vmul.f32 %v2684, %v3108
        %v3121 = vmul.f32 %v2685, %v3108
        %v3122 = vmul.f32 %v2686, %v3108
        %v3123 = vmul.f32 %v2687, %v3108
        %v3124 = vmul.f32 %v2688, %v3108
        %v3125 = vmul.f32 %v2689, %v3108
        %v3126 = vmul.f32 %v2690, %v3108
        %v3127 = vmul.f32 %v2691, %v3108
        %v3128 = vmul.f32 %v2692, %v3108
        %v3129 = vmul.f32 %v2693, %v3108
        %v3130 = vmul.f32 %v2694, %v3108
        %v3131 = vmul.f32 %v2695, %v3108
        %v3132 = vmul.f32 %v2696, %v3108
        %v3157 = vrot.slane %v3109, 4
        %v3158 = vrot.slane %v3110, 4
        %v3159 = vsel %vm733, %v3157, %v3158
        %v3160 = vrot.slane %v3111, 4
        %v3161 = vsel %vm733, %v3158, %v3160
        %v3162 = vrot.slane %v3112, 4
        %v3163 = vrot.slane %v3113, 4
        %v3164 = vsel %vm733, %v3162, %v3163
        %v3165 = vrot.slane %v3114, 4
        %v3166 = vsel %vm733, %v3163, %v3165
        %v3167 = vrot.slane %v3115, 4
        %v3168 = vrot.slane %v3116, 4
        %v3169 = vsel %vm733, %v3167, %v3168
        %v3170 = vrot.slane %v3117, 4
        %v3171 = vsel %vm733, %v3168, %v3170
        %v3172 = vrot.slane %v3118, 4
        %v3173 = vrot.slane %v3119, 4
        %v3174 = vsel %vm733, %v3172, %v3173
        %v3175 = vrot.slane %v3120, 4
        %v3176 = vsel %vm733, %v3173, %v3175
        %v3177 = vrot.slane %v3121, 4
        %v3178 = vrot.slane %v3122, 4
        %v3179 = vsel %vm733, %v3177, %v3178
        %v3180 = vrot.slane %v3123, 4
        %v3181 = vsel %vm733, %v3178, %v3180
        %v3182 = vrot.slane %v3124, 4
        %v3183 = vrot.slane %v3125, 4
        %v3184 = vsel %vm733, %v3182, %v3183
        %v3185 = vrot.slane %v3126, 4
        %v3186 = vsel %vm733, %v3183, %v3185
        %v3187 = vrot.slane %v3127, 4
        %v3188 = vrot.slane %v3128, 4
        %v3189 = vsel %vm733, %v3187, %v3188
        %v3190 = vrot.slane %v3129, 4
        %v3191 = vsel %vm733, %v3188, %v3190
        %v3192 = vrot.slane %v3130, 4
        %v3193 = vrot.slane %v3131, 4
        %v3194 = vsel %vm733, %v3192, %v3193
        %v3195 = vrot.slane %v3132, 4
        %v3196 = vsel %vm733, %v3193, %v3195
        %v3213 = vadd.f32 %v3089, %v3159
        %v3214 = vadd.f32 %v3090, %v3161
        %v3215 = vadd.f32 %v3091, %v3164
        %v3216 = vadd.f32 %v3092, %v3166
        %v3217 = vadd.f32 %v3093, %v3169
        %v3218 = vadd.f32 %v3094, %v3171
        %v3219 = vadd.f32 %v3095, %v3174
        %v3220 = vadd.f32 %v3096, %v3176
        %v3221 = vadd.f32 %v3097, %v3179
        %v3222 = vadd.f32 %v3098, %v3181
        %v3223 = vadd.f32 %v3099, %v3184
        %v3224 = vadd.f32 %v3100, %v3186
        %v3225 = vadd.f32 %v3101, %v3189
        %v3226 = vadd.f32 %v3102, %v3191
        %v3227 = vadd.f32 %v3103, %v3194
        %v3228 = vadd.f32 %v3104, %v3196
        %v3229 = vlaneseq
        %v3230 = vshrl.u32 %v3229, 7
        %v3231 = vsub.s32 5, %v3230
        %v3232 = vrot.slane %v240, %v3231
        %v3233 = vmul.f32 %v2673, %v3232
        %v3234 = vmul.f32 %v2674, %v3232
        %v3235 = vmul.f32 %v2675, %v3232
        %v3236 = vmul.f32 %v2676, %v3232
        %v3237 = vmul.f32 %v2677, %v3232
        %v3238 = vmul.f32 %v2678, %v3232
        %v3239 = vmul.f32 %v2679, %v3232
        %v3240 = vmul.f32 %v2680, %v3232
        %v3241 = vmul.f32 %v2681, %v3232
        %v3242 = vmul.f32 %v2682, %v3232
        %v3243 = vmul.f32 %v2683, %v3232
        %v3244 = vmul.f32 %v2684, %v3232
        %v3245 = vmul.f32 %v2685, %v3232
        %v3246 = vmul.f32 %v2686, %v3232
        %v3247 = vmul.f32 %v2687, %v3232
        %v3248 = vmul.f32 %v2688, %v3232
        %v3249 = vmul.f32 %v2689, %v3232
        %v3250 = vmul.f32 %v2690, %v3232
        %v3251 = vmul.f32 %v2691, %v3232
        %v3252 = vmul.f32 %v2692, %v3232
        %v3253 = vmul.f32 %v2693, %v3232
        %v3254 = vmul.f32 %v2694, %v3232
        %v3255 = vmul.f32 %v2695, %v3232
        %v3256 = vmul.f32 %v2696, %v3232
        %v3281 = vrot.slane %v3233, 5
        %v3282 = vrot.slane %v3234, 5
        %v3283 = vsel %vm858, %v3281, %v3282
        %v3284 = vrot.slane %v3235, 5
        %v3285 = vsel %vm858, %v3282, %v3284
        %v3286 = vrot.slane %v3236, 5
        %v3287 = vrot.slane %v3237, 5
        %v3288 = vsel %vm858, %v3286, %v3287
        %v3289 = vrot.slane %v3238, 5
        %v3290 = vsel %vm858, %v3287, %v3289
        %v3291 = vrot.slane %v3239, 5
        %v3292 = vrot.slane %v3240, 5
        %v3293 = vsel %vm858, %v3291, %v3292
        %v3294 = vrot.slane %v3241, 5
        %v3295 = vsel %vm858, %v3292, %v3294
        %v3296 = vrot.slane %v3242, 5
        %v3297 = vrot.slane %v3243, 5
        %v3298 = vsel %vm858, %v3296, %v3297
        %v3299 = vrot.slane %v3244, 5
        %v3300 = vsel %vm858, %v3297, %v3299
        %v3301 = vrot.slane %v3245, 5
        %v3302 = vrot.slane %v3246, 5
        %v3303 = vsel %vm858, %v3301, %v3302
        %v3304 = vrot.slane %v3247, 5
        %v3305 = vsel %vm858, %v3302, %v3304
        %v3306 = vrot.slane %v3248, 5
        %v3307 = vrot.slane %v3249, 5
        %v3308 = vsel %vm858, %v3306, %v3307
        %v3309 = vrot.slane %v3250, 5
        %v3310 = vsel %vm858, %v3307, %v3309
        %v3311 = vrot.slane %v3251, 5
        %v3312 = vrot.slane %v3252, 5
        %v3313 = vsel %vm858, %v3311, %v3312
        %v3314 = vrot.slane %v3253, 5
        %v3315 = vsel %vm858, %v3312, %v3314
        %v3316 = vrot.slane %v3254, 5
        %v3317 = vrot.slane %v3255, 5
        %v3318 = vsel %vm858, %v3316, %v3317
        %v3319 = vrot.slane %v3256, 5
        %v3320 = vsel %vm858, %v3317, %v3319
        %v3337 = vadd.f32 %v3213, %v3283
        %v3338 = vadd.f32 %v3214, %v3285
        %v3339 = vadd.f32 %v3215, %v3288
        %v3340 = vadd.f32 %v3216, %v3290
        %v3341 = vadd.f32 %v3217, %v3293
        %v3342 = vadd.f32 %v3218, %v3295
        %v3343 = vadd.f32 %v3219, %v3298
        %v3344 = vadd.f32 %v3220, %v3300
        %v3345 = vadd.f32 %v3221, %v3303
        %v3346 = vadd.f32 %v3222, %v3305
        %v3347 = vadd.f32 %v3223, %v3308
        %v3348 = vadd.f32 %v3224, %v3310
        %v3349 = vadd.f32 %v3225, %v3313
        %v3350 = vadd.f32 %v3226, %v3315
        %v3351 = vadd.f32 %v3227, %v3318
        %v3352 = vadd.f32 %v3228, %v3320
        %v3353 = vlaneseq
        %v3354 = vshrl.u32 %v3353, 7
        %v3355 = vsub.s32 6, %v3354
        %v3356 = vrot.slane %v240, %v3355
        %v3357 = vmul.f32 %v2673, %v3356
        %v3358 = vmul.f32 %v2674, %v3356
        %v3359 = vmul.f32 %v2675, %v3356
        %v3360 = vmul.f32 %v2676, %v3356
        %v3361 = vmul.f32 %v2677, %v3356
        %v3362 = vmul.f32 %v2678, %v3356
        %v3363 = vmul.f32 %v2679, %v3356
        %v3364 = vmul.f32 %v2680, %v3356
        %v3365 = vmul.f32 %v2681, %v3356
        %v3366 = vmul.f32 %v2682, %v3356
        %v3367 = vmul.f32 %v2683, %v3356
        %v3368 = vmul.f32 %v2684, %v3356
        %v3369 = vmul.f32 %v2685, %v3356
        %v3370 = vmul.f32 %v2686, %v3356
        %v3371 = vmul.f32 %v2687, %v3356
        %v3372 = vmul.f32 %v2688, %v3356
        %v3373 = vmul.f32 %v2689, %v3356
        %v3374 = vmul.f32 %v2690, %v3356
        %v3375 = vmul.f32 %v2691, %v3356
        %v3376 = vmul.f32 %v2692, %v3356
        %v3377 = vmul.f32 %v2693, %v3356
        %v3378 = vmul.f32 %v2694, %v3356
        %v3379 = vmul.f32 %v2695, %v3356
        %v3380 = vmul.f32 %v2696, %v3356
        %v3405 = vrot.slane %v3357, 6
        %v3406 = vrot.slane %v3358, 6
        %v3407 = vsel %vm983, %v3405, %v3406
        %v3408 = vrot.slane %v3359, 6
        %v3409 = vsel %vm983, %v3406, %v3408
        %v3410 = vrot.slane %v3360, 6
        %v3411 = vrot.slane %v3361, 6
        %v3412 = vsel %vm983, %v3410, %v3411
        %v3413 = vrot.slane %v3362, 6
        %v3414 = vsel %vm983, %v3411, %v3413
        %v3415 = vrot.slane %v3363, 6
        %v3416 = vrot.slane %v3364, 6
        %v3417 = vsel %vm983, %v3415, %v3416
        %v3418 = vrot.slane %v3365, 6
        %v3419 = vsel %vm983, %v3416, %v3418
        %v3420 = vrot.slane %v3366, 6
        %v3421 = vrot.slane %v3367, 6
        %v3422 = vsel %vm983, %v3420, %v3421
        %v3423 = vrot.slane %v3368, 6
        %v3424 = vsel %vm983, %v3421, %v3423
        %v3425 = vrot.slane %v3369, 6
        %v3426 = vrot.slane %v3370, 6
        %v3427 = vsel %vm983, %v3425, %v3426
        %v3428 = vrot.slane %v3371, 6
        %v3429 = vsel %vm983, %v3426, %v3428
        %v3430 = vrot.slane %v3372, 6
        %v3431 = vrot.slane %v3373, 6
        %v3432 = vsel %vm983, %v3430, %v3431
        %v3433 = vrot.slane %v3374, 6
        %v3434 = vsel %vm983, %v3431, %v3433
        %v3435 = vrot.slane %v3375, 6
        %v3436 = vrot.slane %v3376, 6
        %v3437 = vsel %vm983, %v3435, %v3436
        %v3438 = vrot.slane %v3377, 6
        %v3439 = vsel %vm983, %v3436, %v3438
        %v3440 = vrot.slane %v3378, 6
        %v3441 = vrot.slane %v3379, 6
        %v3442 = vsel %vm983, %v3440, %v3441
        %v3443 = vrot.slane %v3380, 6
        %v3444 = vsel %vm983, %v3441, %v3443
        %v3461 = vadd.f32 %v3337, %v3407
        %v3462 = vadd.f32 %v3338, %v3409
        %v3463 = vadd.f32 %v3339, %v3412
        %v3464 = vadd.f32 %v3340, %v3414
        %v3465 = vadd.f32 %v3341, %v3417
        %v3466 = vadd.f32 %v3342, %v3419
        %v3467 = vadd.f32 %v3343, %v3422
        %v3468 = vadd.f32 %v3344, %v3424
        %v3469 = vadd.f32 %v3345, %v3427
        %v3470 = vadd.f32 %v3346, %v3429
        %v3471 = vadd.f32 %v3347, %v3432
        %v3472 = vadd.f32 %v3348, %v3434
        %v3473 = vadd.f32 %v3349, %v3437
        %v3474 = vadd.f32 %v3350, %v3439
        %v3475 = vadd.f32 %v3351, %v3442
        %v3476 = vadd.f32 %v3352, %v3444
        %s3477 = sadd.s32 %s235, 4
        %s3478 = smul.u32 %s3477, 24
        %s3479 = scalar_lea.vmem %s226, %s3478
        %v3480 = vld [vmem:[%s3479] sm:$0xff]
        %v3481 = vld [vmem:[%s3479 + $0x8] sm:$0xff]
        %v3482 = vld [vmem:[%s3479 + $0x10] sm:$0x3f]
        %v3483 = vld [vmem:[%s3479 + $0x18] sm:$0xff]
        %v3484 = vld [vmem:[%s3479 + $0x20] sm:$0xff]
        %v3485 = vld [vmem:[%s3479 + $0x28] sm:$0x3f]
        %v3486 = vld [vmem:[%s3479 + $0x30] sm:$0xff]
        %v3487 = vld [vmem:[%s3479 + $0x38] sm:$0xff]
        %v3488 = vld [vmem:[%s3479 + $0x40] sm:$0x3f]
        %v3489 = vld [vmem:[%s3479 + $0x48] sm:$0xff]
        %v3490 = vld [vmem:[%s3479 + $0x50] sm:$0xff]
        %v3491 = vld [vmem:[%s3479 + $0x58] sm:$0x3f]
        %v3492 = vld [vmem:[%s3479 + $0x60] sm:$0xff]
        %v3493 = vld [vmem:[%s3479 + $0x68] sm:$0xff]
        %v3494 = vld [vmem:[%s3479 + $0x70] sm:$0x3f]
        %v3495 = vld [vmem:[%s3479 + $0x78] sm:$0xff]
        %v3496 = vld [vmem:[%s3479 + $0x80] sm:$0xff]
        %v3497 = vld [vmem:[%s3479 + $0x88] sm:$0x3f]
        %v3498 = vld [vmem:[%s3479 + $0x90] sm:$0xff]
        %v3499 = vld [vmem:[%s3479 + $0x98] sm:$0xff]
        %v3500 = vld [vmem:[%s3479 + $0xa0] sm:$0x3f]
        %v3501 = vld [vmem:[%s3479 + $0xa8] sm:$0xff]
        %v3502 = vld [vmem:[%s3479 + $0xb0] sm:$0xff]
        %v3503 = vld [vmem:[%s3479 + $0xb8] sm:$0x3f]
        %v3504 = vlaneseq
        %v3505 = vshrl.u32 %v3504, 7
        %v3506 = vsub.s32 0, %v3505
        %v3507 = vrot.slane %v241, %v3506
        %v3508 = vmul.f32 %v3480, %v3507
        %v3509 = vmul.f32 %v3481, %v3507
        %v3510 = vmul.f32 %v3483, %v3507
        %v3511 = vmul.f32 %v3484, %v3507
        %v3512 = vmul.f32 %v3486, %v3507
        %v3513 = vmul.f32 %v3487, %v3507
        %v3514 = vmul.f32 %v3489, %v3507
        %v3515 = vmul.f32 %v3490, %v3507
        %v3516 = vmul.f32 %v3492, %v3507
        %v3517 = vmul.f32 %v3493, %v3507
        %v3518 = vmul.f32 %v3495, %v3507
        %v3519 = vmul.f32 %v3496, %v3507
        %v3520 = vmul.f32 %v3498, %v3507
        %v3521 = vmul.f32 %v3499, %v3507
        %v3522 = vmul.f32 %v3501, %v3507
        %v3523 = vmul.f32 %v3502, %v3507
        %v3524 = vadd.f32 %v3461, %v3508
        %v3525 = vadd.f32 %v3462, %v3509
        %v3526 = vadd.f32 %v3463, %v3510
        %v3527 = vadd.f32 %v3464, %v3511
        %v3528 = vadd.f32 %v3465, %v3512
        %v3529 = vadd.f32 %v3466, %v3513
        %v3530 = vadd.f32 %v3467, %v3514
        %v3531 = vadd.f32 %v3468, %v3515
        %v3532 = vadd.f32 %v3469, %v3516
        %v3533 = vadd.f32 %v3470, %v3517
        %v3534 = vadd.f32 %v3471, %v3518
        %v3535 = vadd.f32 %v3472, %v3519
        %v3536 = vadd.f32 %v3473, %v3520
        %v3537 = vadd.f32 %v3474, %v3521
        %v3538 = vadd.f32 %v3475, %v3522
        %v3539 = vadd.f32 %v3476, %v3523
        %v3540 = vlaneseq
        %v3541 = vshrl.u32 %v3540, 7
        %v3542 = vsub.s32 1, %v3541
        %v3543 = vrot.slane %v241, %v3542
        %v3544 = vmul.f32 %v3480, %v3543
        %v3545 = vmul.f32 %v3481, %v3543
        %v3546 = vmul.f32 %v3482, %v3543
        %v3547 = vmul.f32 %v3483, %v3543
        %v3548 = vmul.f32 %v3484, %v3543
        %v3549 = vmul.f32 %v3485, %v3543
        %v3550 = vmul.f32 %v3486, %v3543
        %v3551 = vmul.f32 %v3487, %v3543
        %v3552 = vmul.f32 %v3488, %v3543
        %v3553 = vmul.f32 %v3489, %v3543
        %v3554 = vmul.f32 %v3490, %v3543
        %v3555 = vmul.f32 %v3491, %v3543
        %v3556 = vmul.f32 %v3492, %v3543
        %v3557 = vmul.f32 %v3493, %v3543
        %v3558 = vmul.f32 %v3494, %v3543
        %v3559 = vmul.f32 %v3495, %v3543
        %v3560 = vmul.f32 %v3496, %v3543
        %v3561 = vmul.f32 %v3497, %v3543
        %v3562 = vmul.f32 %v3498, %v3543
        %v3563 = vmul.f32 %v3499, %v3543
        %v3564 = vmul.f32 %v3500, %v3543
        %v3565 = vmul.f32 %v3501, %v3543
        %v3566 = vmul.f32 %v3502, %v3543
        %v3567 = vmul.f32 %v3503, %v3543
        %v3592 = vrot.slane %v3544, 1
        %v3593 = vrot.slane %v3545, 1
        %v3594 = vsel %vm358, %v3592, %v3593
        %v3595 = vrot.slane %v3546, 1
        %v3596 = vsel %vm358, %v3593, %v3595
        %v3597 = vrot.slane %v3547, 1
        %v3598 = vrot.slane %v3548, 1
        %v3599 = vsel %vm358, %v3597, %v3598
        %v3600 = vrot.slane %v3549, 1
        %v3601 = vsel %vm358, %v3598, %v3600
        %v3602 = vrot.slane %v3550, 1
        %v3603 = vrot.slane %v3551, 1
        %v3604 = vsel %vm358, %v3602, %v3603
        %v3605 = vrot.slane %v3552, 1
        %v3606 = vsel %vm358, %v3603, %v3605
        %v3607 = vrot.slane %v3553, 1
        %v3608 = vrot.slane %v3554, 1
        %v3609 = vsel %vm358, %v3607, %v3608
        %v3610 = vrot.slane %v3555, 1
        %v3611 = vsel %vm358, %v3608, %v3610
        %v3612 = vrot.slane %v3556, 1
        %v3613 = vrot.slane %v3557, 1
        %v3614 = vsel %vm358, %v3612, %v3613
        %v3615 = vrot.slane %v3558, 1
        %v3616 = vsel %vm358, %v3613, %v3615
        %v3617 = vrot.slane %v3559, 1
        %v3618 = vrot.slane %v3560, 1
        %v3619 = vsel %vm358, %v3617, %v3618
        %v3620 = vrot.slane %v3561, 1
        %v3621 = vsel %vm358, %v3618, %v3620
        %v3622 = vrot.slane %v3562, 1
        %v3623 = vrot.slane %v3563, 1
        %v3624 = vsel %vm358, %v3622, %v3623
        %v3625 = vrot.slane %v3564, 1
        %v3626 = vsel %vm358, %v3623, %v3625
        %v3627 = vrot.slane %v3565, 1
        %v3628 = vrot.slane %v3566, 1
        %v3629 = vsel %vm358, %v3627, %v3628
        %v3630 = vrot.slane %v3567, 1
        %v3631 = vsel %vm358, %v3628, %v3630
        %v3648 = vadd.f32 %v3524, %v3594
        %v3649 = vadd.f32 %v3525, %v3596
        %v3650 = vadd.f32 %v3526, %v3599
        %v3651 = vadd.f32 %v3527, %v3601
        %v3652 = vadd.f32 %v3528, %v3604
        %v3653 = vadd.f32 %v3529, %v3606
        %v3654 = vadd.f32 %v3530, %v3609
        %v3655 = vadd.f32 %v3531, %v3611
        %v3656 = vadd.f32 %v3532, %v3614
        %v3657 = vadd.f32 %v3533, %v3616
        %v3658 = vadd.f32 %v3534, %v3619
        %v3659 = vadd.f32 %v3535, %v3621
        %v3660 = vadd.f32 %v3536, %v3624
        %v3661 = vadd.f32 %v3537, %v3626
        %v3662 = vadd.f32 %v3538, %v3629
        %v3663 = vadd.f32 %v3539, %v3631
        %v3664 = vlaneseq
        %v3665 = vshrl.u32 %v3664, 7
        %v3666 = vsub.s32 2, %v3665
        %v3667 = vrot.slane %v241, %v3666
        %v3668 = vmul.f32 %v3480, %v3667
        %v3669 = vmul.f32 %v3481, %v3667
        %v3670 = vmul.f32 %v3482, %v3667
        %v3671 = vmul.f32 %v3483, %v3667
        %v3672 = vmul.f32 %v3484, %v3667
        %v3673 = vmul.f32 %v3485, %v3667
        %v3674 = vmul.f32 %v3486, %v3667
        %v3675 = vmul.f32 %v3487, %v3667
        %v3676 = vmul.f32 %v3488, %v3667
        %v3677 = vmul.f32 %v3489, %v3667
        %v3678 = vmul.f32 %v3490, %v3667
        %v3679 = vmul.f32 %v3491, %v3667
        %v3680 = vmul.f32 %v3492, %v3667
        %v3681 = vmul.f32 %v3493, %v3667
        %v3682 = vmul.f32 %v3494, %v3667
        %v3683 = vmul.f32 %v3495, %v3667
        %v3684 = vmul.f32 %v3496, %v3667
        %v3685 = vmul.f32 %v3497, %v3667
        %v3686 = vmul.f32 %v3498, %v3667
        %v3687 = vmul.f32 %v3499, %v3667
        %v3688 = vmul.f32 %v3500, %v3667
        %v3689 = vmul.f32 %v3501, %v3667
        %v3690 = vmul.f32 %v3502, %v3667
        %v3691 = vmul.f32 %v3503, %v3667
        %v3716 = vrot.slane %v3668, 2
        %v3717 = vrot.slane %v3669, 2
        %v3718 = vsel %vm483, %v3716, %v3717
        %v3719 = vrot.slane %v3670, 2
        %v3720 = vsel %vm483, %v3717, %v3719
        %v3721 = vrot.slane %v3671, 2
        %v3722 = vrot.slane %v3672, 2
        %v3723 = vsel %vm483, %v3721, %v3722
        %v3724 = vrot.slane %v3673, 2
        %v3725 = vsel %vm483, %v3722, %v3724
        %v3726 = vrot.slane %v3674, 2
        %v3727 = vrot.slane %v3675, 2
        %v3728 = vsel %vm483, %v3726, %v3727
        %v3729 = vrot.slane %v3676, 2
        %v3730 = vsel %vm483, %v3727, %v3729
        %v3731 = vrot.slane %v3677, 2
        %v3732 = vrot.slane %v3678, 2
        %v3733 = vsel %vm483, %v3731, %v3732
        %v3734 = vrot.slane %v3679, 2
        %v3735 = vsel %vm483, %v3732, %v3734
        %v3736 = vrot.slane %v3680, 2
        %v3737 = vrot.slane %v3681, 2
        %v3738 = vsel %vm483, %v3736, %v3737
        %v3739 = vrot.slane %v3682, 2
        %v3740 = vsel %vm483, %v3737, %v3739
        %v3741 = vrot.slane %v3683, 2
        %v3742 = vrot.slane %v3684, 2
        %v3743 = vsel %vm483, %v3741, %v3742
        %v3744 = vrot.slane %v3685, 2
        %v3745 = vsel %vm483, %v3742, %v3744
        %v3746 = vrot.slane %v3686, 2
        %v3747 = vrot.slane %v3687, 2
        %v3748 = vsel %vm483, %v3746, %v3747
        %v3749 = vrot.slane %v3688, 2
        %v3750 = vsel %vm483, %v3747, %v3749
        %v3751 = vrot.slane %v3689, 2
        %v3752 = vrot.slane %v3690, 2
        %v3753 = vsel %vm483, %v3751, %v3752
        %v3754 = vrot.slane %v3691, 2
        %v3755 = vsel %vm483, %v3752, %v3754
        %v3772 = vadd.f32 %v3648, %v3718
        %v3773 = vadd.f32 %v3649, %v3720
        %v3774 = vadd.f32 %v3650, %v3723
        %v3775 = vadd.f32 %v3651, %v3725
        %v3776 = vadd.f32 %v3652, %v3728
        %v3777 = vadd.f32 %v3653, %v3730
        %v3778 = vadd.f32 %v3654, %v3733
        %v3779 = vadd.f32 %v3655, %v3735
        %v3780 = vadd.f32 %v3656, %v3738
        %v3781 = vadd.f32 %v3657, %v3740
        %v3782 = vadd.f32 %v3658, %v3743
        %v3783 = vadd.f32 %v3659, %v3745
        %v3784 = vadd.f32 %v3660, %v3748
        %v3785 = vadd.f32 %v3661, %v3750
        %v3786 = vadd.f32 %v3662, %v3753
        %v3787 = vadd.f32 %v3663, %v3755
        %v3788 = vlaneseq
        %v3789 = vshrl.u32 %v3788, 7
        %v3790 = vsub.s32 3, %v3789
        %v3791 = vrot.slane %v241, %v3790
        %v3792 = vmul.f32 %v3480, %v3791
        %v3793 = vmul.f32 %v3481, %v3791
        %v3794 = vmul.f32 %v3482, %v3791
        %v3795 = vmul.f32 %v3483, %v3791
        %v3796 = vmul.f32 %v3484, %v3791
        %v3797 = vmul.f32 %v3485, %v3791
        %v3798 = vmul.f32 %v3486, %v3791
        %v3799 = vmul.f32 %v3487, %v3791
        %v3800 = vmul.f32 %v3488, %v3791
        %v3801 = vmul.f32 %v3489, %v3791
        %v3802 = vmul.f32 %v3490, %v3791
        %v3803 = vmul.f32 %v3491, %v3791
        %v3804 = vmul.f32 %v3492, %v3791
        %v3805 = vmul.f32 %v3493, %v3791
        %v3806 = vmul.f32 %v3494, %v3791
        %v3807 = vmul.f32 %v3495, %v3791
        %v3808 = vmul.f32 %v3496, %v3791
        %v3809 = vmul.f32 %v3497, %v3791
        %v3810 = vmul.f32 %v3498, %v3791
        %v3811 = vmul.f32 %v3499, %v3791
        %v3812 = vmul.f32 %v3500, %v3791
        %v3813 = vmul.f32 %v3501, %v3791
        %v3814 = vmul.f32 %v3502, %v3791
        %v3815 = vmul.f32 %v3503, %v3791
        %v3840 = vrot.slane %v3792, 3
        %v3841 = vrot.slane %v3793, 3
        %v3842 = vsel %vm608, %v3840, %v3841
        %v3843 = vrot.slane %v3794, 3
        %v3844 = vsel %vm608, %v3841, %v3843
        %v3845 = vrot.slane %v3795, 3
        %v3846 = vrot.slane %v3796, 3
        %v3847 = vsel %vm608, %v3845, %v3846
        %v3848 = vrot.slane %v3797, 3
        %v3849 = vsel %vm608, %v3846, %v3848
        %v3850 = vrot.slane %v3798, 3
        %v3851 = vrot.slane %v3799, 3
        %v3852 = vsel %vm608, %v3850, %v3851
        %v3853 = vrot.slane %v3800, 3
        %v3854 = vsel %vm608, %v3851, %v3853
        %v3855 = vrot.slane %v3801, 3
        %v3856 = vrot.slane %v3802, 3
        %v3857 = vsel %vm608, %v3855, %v3856
        %v3858 = vrot.slane %v3803, 3
        %v3859 = vsel %vm608, %v3856, %v3858
        %v3860 = vrot.slane %v3804, 3
        %v3861 = vrot.slane %v3805, 3
        %v3862 = vsel %vm608, %v3860, %v3861
        %v3863 = vrot.slane %v3806, 3
        %v3864 = vsel %vm608, %v3861, %v3863
        %v3865 = vrot.slane %v3807, 3
        %v3866 = vrot.slane %v3808, 3
        %v3867 = vsel %vm608, %v3865, %v3866
        %v3868 = vrot.slane %v3809, 3
        %v3869 = vsel %vm608, %v3866, %v3868
        %v3870 = vrot.slane %v3810, 3
        %v3871 = vrot.slane %v3811, 3
        %v3872 = vsel %vm608, %v3870, %v3871
        %v3873 = vrot.slane %v3812, 3
        %v3874 = vsel %vm608, %v3871, %v3873
        %v3875 = vrot.slane %v3813, 3
        %v3876 = vrot.slane %v3814, 3
        %v3877 = vsel %vm608, %v3875, %v3876
        %v3878 = vrot.slane %v3815, 3
        %v3879 = vsel %vm608, %v3876, %v3878
        %v3896 = vadd.f32 %v3772, %v3842
        %v3897 = vadd.f32 %v3773, %v3844
        %v3898 = vadd.f32 %v3774, %v3847
        %v3899 = vadd.f32 %v3775, %v3849
        %v3900 = vadd.f32 %v3776, %v3852
        %v3901 = vadd.f32 %v3777, %v3854
        %v3902 = vadd.f32 %v3778, %v3857
        %v3903 = vadd.f32 %v3779, %v3859
        %v3904 = vadd.f32 %v3780, %v3862
        %v3905 = vadd.f32 %v3781, %v3864
        %v3906 = vadd.f32 %v3782, %v3867
        %v3907 = vadd.f32 %v3783, %v3869
        %v3908 = vadd.f32 %v3784, %v3872
        %v3909 = vadd.f32 %v3785, %v3874
        %v3910 = vadd.f32 %v3786, %v3877
        %v3911 = vadd.f32 %v3787, %v3879
        %v3912 = vlaneseq
        %v3913 = vshrl.u32 %v3912, 7
        %v3914 = vsub.s32 4, %v3913
        %v3915 = vrot.slane %v241, %v3914
        %v3916 = vmul.f32 %v3480, %v3915
        %v3917 = vmul.f32 %v3481, %v3915
        %v3918 = vmul.f32 %v3482, %v3915
        %v3919 = vmul.f32 %v3483, %v3915
        %v3920 = vmul.f32 %v3484, %v3915
        %v3921 = vmul.f32 %v3485, %v3915
        %v3922 = vmul.f32 %v3486, %v3915
        %v3923 = vmul.f32 %v3487, %v3915
        %v3924 = vmul.f32 %v3488, %v3915
        %v3925 = vmul.f32 %v3489, %v3915
        %v3926 = vmul.f32 %v3490, %v3915
        %v3927 = vmul.f32 %v3491, %v3915
        %v3928 = vmul.f32 %v3492, %v3915
        %v3929 = vmul.f32 %v3493, %v3915
        %v3930 = vmul.f32 %v3494, %v3915
        %v3931 = vmul.f32 %v3495, %v3915
        %v3932 = vmul.f32 %v3496, %v3915
        %v3933 = vmul.f32 %v3497, %v3915
        %v3934 = vmul.f32 %v3498, %v3915
        %v3935 = vmul.f32 %v3499, %v3915
        %v3936 = vmul.f32 %v3500, %v3915
        %v3937 = vmul.f32 %v3501, %v3915
        %v3938 = vmul.f32 %v3502, %v3915
        %v3939 = vmul.f32 %v3503, %v3915
        %v3964 = vrot.slane %v3916, 4
        %v3965 = vrot.slane %v3917, 4
        %v3966 = vsel %vm733, %v3964, %v3965
        %v3967 = vrot.slane %v3918, 4
        %v3968 = vsel %vm733, %v3965, %v3967
        %v3969 = vrot.slane %v3919, 4
        %v3970 = vrot.slane %v3920, 4
        %v3971 = vsel %vm733, %v3969, %v3970
        %v3972 = vrot.slane %v3921, 4
        %v3973 = vsel %vm733, %v3970, %v3972
        %v3974 = vrot.slane %v3922, 4
        %v3975 = vrot.slane %v3923, 4
        %v3976 = vsel %vm733, %v3974, %v3975
        %v3977 = vrot.slane %v3924, 4
        %v3978 = vsel %vm733, %v3975, %v3977
        %v3979 = vrot.slane %v3925, 4
        %v3980 = vrot.slane %v3926, 4
        %v3981 = vsel %vm733, %v3979, %v3980
        %v3982 = vrot.slane %v3927, 4
        %v3983 = vsel %vm733, %v3980, %v3982
        %v3984 = vrot.slane %v3928, 4
        %v3985 = vrot.slane %v3929, 4
        %v3986 = vsel %vm733, %v3984, %v3985
        %v3987 = vrot.slane %v3930, 4
        %v3988 = vsel %vm733, %v3985, %v3987
        %v3989 = vrot.slane %v3931, 4
        %v3990 = vrot.slane %v3932, 4
        %v3991 = vsel %vm733, %v3989, %v3990
        %v3992 = vrot.slane %v3933, 4
        %v3993 = vsel %vm733, %v3990, %v3992
        %v3994 = vrot.slane %v3934, 4
        %v3995 = vrot.slane %v3935, 4
        %v3996 = vsel %vm733, %v3994, %v3995
        %v3997 = vrot.slane %v3936, 4
        %v3998 = vsel %vm733, %v3995, %v3997
        %v3999 = vrot.slane %v3937, 4
        %v4000 = vrot.slane %v3938, 4
        %v4001 = vsel %vm733, %v3999, %v4000
        %v4002 = vrot.slane %v3939, 4
        %v4003 = vsel %vm733, %v4000, %v4002
        %v4020 = vadd.f32 %v3896, %v3966
        %v4021 = vadd.f32 %v3897, %v3968
        %v4022 = vadd.f32 %v3898, %v3971
        %v4023 = vadd.f32 %v3899, %v3973
        %v4024 = vadd.f32 %v3900, %v3976
        %v4025 = vadd.f32 %v3901, %v3978
        %v4026 = vadd.f32 %v3902, %v3981
        %v4027 = vadd.f32 %v3903, %v3983
        %v4028 = vadd.f32 %v3904, %v3986
        %v4029 = vadd.f32 %v3905, %v3988
        %v4030 = vadd.f32 %v3906, %v3991
        %v4031 = vadd.f32 %v3907, %v3993
        %v4032 = vadd.f32 %v3908, %v3996
        %v4033 = vadd.f32 %v3909, %v3998
        %v4034 = vadd.f32 %v3910, %v4001
        %v4035 = vadd.f32 %v3911, %v4003
        %v4036 = vlaneseq
        %v4037 = vshrl.u32 %v4036, 7
        %v4038 = vsub.s32 5, %v4037
        %v4039 = vrot.slane %v241, %v4038
        %v4040 = vmul.f32 %v3480, %v4039
        %v4041 = vmul.f32 %v3481, %v4039
        %v4042 = vmul.f32 %v3482, %v4039
        %v4043 = vmul.f32 %v3483, %v4039
        %v4044 = vmul.f32 %v3484, %v4039
        %v4045 = vmul.f32 %v3485, %v4039
        %v4046 = vmul.f32 %v3486, %v4039
        %v4047 = vmul.f32 %v3487, %v4039
        %v4048 = vmul.f32 %v3488, %v4039
        %v4049 = vmul.f32 %v3489, %v4039
        %v4050 = vmul.f32 %v3490, %v4039
        %v4051 = vmul.f32 %v3491, %v4039
        %v4052 = vmul.f32 %v3492, %v4039
        %v4053 = vmul.f32 %v3493, %v4039
        %v4054 = vmul.f32 %v3494, %v4039
        %v4055 = vmul.f32 %v3495, %v4039
        %v4056 = vmul.f32 %v3496, %v4039
        %v4057 = vmul.f32 %v3497, %v4039
        %v4058 = vmul.f32 %v3498, %v4039
        %v4059 = vmul.f32 %v3499, %v4039
        %v4060 = vmul.f32 %v3500, %v4039
        %v4061 = vmul.f32 %v3501, %v4039
        %v4062 = vmul.f32 %v3502, %v4039
        %v4063 = vmul.f32 %v3503, %v4039
        %v4088 = vrot.slane %v4040, 5
        %v4089 = vrot.slane %v4041, 5
        %v4090 = vsel %vm858, %v4088, %v4089
        %v4091 = vrot.slane %v4042, 5
        %v4092 = vsel %vm858, %v4089, %v4091
        %v4093 = vrot.slane %v4043, 5
        %v4094 = vrot.slane %v4044, 5
        %v4095 = vsel %vm858, %v4093, %v4094
        %v4096 = vrot.slane %v4045, 5
        %v4097 = vsel %vm858, %v4094, %v4096
        %v4098 = vrot.slane %v4046, 5
        %v4099 = vrot.slane %v4047, 5
        %v4100 = vsel %vm858, %v4098, %v4099
        %v4101 = vrot.slane %v4048, 5
        %v4102 = vsel %vm858, %v4099, %v4101
        %v4103 = vrot.slane %v4049, 5
        %v4104 = vrot.slane %v4050, 5
        %v4105 = vsel %vm858, %v4103, %v4104
        %v4106 = vrot.slane %v4051, 5
        %v4107 = vsel %vm858, %v4104, %v4106
        %v4108 = vrot.slane %v4052, 5
        %v4109 = vrot.slane %v4053, 5
        %v4110 = vsel %vm858, %v4108, %v4109
        %v4111 = vrot.slane %v4054, 5
        %v4112 = vsel %vm858, %v4109, %v4111
        %v4113 = vrot.slane %v4055, 5
        %v4114 = vrot.slane %v4056, 5
        %v4115 = vsel %vm858, %v4113, %v4114
        %v4116 = vrot.slane %v4057, 5
        %v4117 = vsel %vm858, %v4114, %v4116
        %v4118 = vrot.slane %v4058, 5
        %v4119 = vrot.slane %v4059, 5
        %v4120 = vsel %vm858, %v4118, %v4119
        %v4121 = vrot.slane %v4060, 5
        %v4122 = vsel %vm858, %v4119, %v4121
        %v4123 = vrot.slane %v4061, 5
        %v4124 = vrot.slane %v4062, 5
        %v4125 = vsel %vm858, %v4123, %v4124
        %v4126 = vrot.slane %v4063, 5
        %v4127 = vsel %vm858, %v4124, %v4126
        %v4144 = vadd.f32 %v4020, %v4090
        %v4145 = vadd.f32 %v4021, %v4092
        %v4146 = vadd.f32 %v4022, %v4095
        %v4147 = vadd.f32 %v4023, %v4097
        %v4148 = vadd.f32 %v4024, %v4100
        %v4149 = vadd.f32 %v4025, %v4102
        %v4150 = vadd.f32 %v4026, %v4105
        %v4151 = vadd.f32 %v4027, %v4107
        %v4152 = vadd.f32 %v4028, %v4110
        %v4153 = vadd.f32 %v4029, %v4112
        %v4154 = vadd.f32 %v4030, %v4115
        %v4155 = vadd.f32 %v4031, %v4117
        %v4156 = vadd.f32 %v4032, %v4120
        %v4157 = vadd.f32 %v4033, %v4122
        %v4158 = vadd.f32 %v4034, %v4125
        %v4159 = vadd.f32 %v4035, %v4127
        %v4160 = vlaneseq
        %v4161 = vshrl.u32 %v4160, 7
        %v4162 = vsub.s32 6, %v4161
        %v4163 = vrot.slane %v241, %v4162
        %v4164 = vmul.f32 %v3480, %v4163
        %v4165 = vmul.f32 %v3481, %v4163
        %v4166 = vmul.f32 %v3482, %v4163
        %v4167 = vmul.f32 %v3483, %v4163
        %v4168 = vmul.f32 %v3484, %v4163
        %v4169 = vmul.f32 %v3485, %v4163
        %v4170 = vmul.f32 %v3486, %v4163
        %v4171 = vmul.f32 %v3487, %v4163
        %v4172 = vmul.f32 %v3488, %v4163
        %v4173 = vmul.f32 %v3489, %v4163
        %v4174 = vmul.f32 %v3490, %v4163
        %v4175 = vmul.f32 %v3491, %v4163
        %v4176 = vmul.f32 %v3492, %v4163
        %v4177 = vmul.f32 %v3493, %v4163
        %v4178 = vmul.f32 %v3494, %v4163
        %v4179 = vmul.f32 %v3495, %v4163
        %v4180 = vmul.f32 %v3496, %v4163
        %v4181 = vmul.f32 %v3497, %v4163
        %v4182 = vmul.f32 %v3498, %v4163
        %v4183 = vmul.f32 %v3499, %v4163
        %v4184 = vmul.f32 %v3500, %v4163
        %v4185 = vmul.f32 %v3501, %v4163
        %v4186 = vmul.f32 %v3502, %v4163
        %v4187 = vmul.f32 %v3503, %v4163
        %v4212 = vrot.slane %v4164, 6
        %v4213 = vrot.slane %v4165, 6
        %v4214 = vsel %vm983, %v4212, %v4213
        %v4215 = vrot.slane %v4166, 6
        %v4216 = vsel %vm983, %v4213, %v4215
        %v4217 = vrot.slane %v4167, 6
        %v4218 = vrot.slane %v4168, 6
        %v4219 = vsel %vm983, %v4217, %v4218
        %v4220 = vrot.slane %v4169, 6
        %v4221 = vsel %vm983, %v4218, %v4220
        %v4222 = vrot.slane %v4170, 6
        %v4223 = vrot.slane %v4171, 6
        %v4224 = vsel %vm983, %v4222, %v4223
        %v4225 = vrot.slane %v4172, 6
        %v4226 = vsel %vm983, %v4223, %v4225
        %v4227 = vrot.slane %v4173, 6
        %v4228 = vrot.slane %v4174, 6
        %v4229 = vsel %vm983, %v4227, %v4228
        %v4230 = vrot.slane %v4175, 6
        %v4231 = vsel %vm983, %v4228, %v4230
        %v4232 = vrot.slane %v4176, 6
        %v4233 = vrot.slane %v4177, 6
        %v4234 = vsel %vm983, %v4232, %v4233
        %v4235 = vrot.slane %v4178, 6
        %v4236 = vsel %vm983, %v4233, %v4235
        %v4237 = vrot.slane %v4179, 6
        %v4238 = vrot.slane %v4180, 6
        %v4239 = vsel %vm983, %v4237, %v4238
        %v4240 = vrot.slane %v4181, 6
        %v4241 = vsel %vm983, %v4238, %v4240
        %v4242 = vrot.slane %v4182, 6
        %v4243 = vrot.slane %v4183, 6
        %v4244 = vsel %vm983, %v4242, %v4243
        %v4245 = vrot.slane %v4184, 6
        %v4246 = vsel %vm983, %v4243, %v4245
        %v4247 = vrot.slane %v4185, 6
        %v4248 = vrot.slane %v4186, 6
        %v4249 = vsel %vm983, %v4247, %v4248
        %v4250 = vrot.slane %v4187, 6
        %v4251 = vsel %vm983, %v4248, %v4250
        %v4268 = vadd.f32 %v4144, %v4214
        %v4269 = vadd.f32 %v4145, %v4216
        %v4270 = vadd.f32 %v4146, %v4219
        %v4271 = vadd.f32 %v4147, %v4221
        %v4272 = vadd.f32 %v4148, %v4224
        %v4273 = vadd.f32 %v4149, %v4226
        %v4274 = vadd.f32 %v4150, %v4229
        %v4275 = vadd.f32 %v4151, %v4231
        %v4276 = vadd.f32 %v4152, %v4234
        %v4277 = vadd.f32 %v4153, %v4236
        %v4278 = vadd.f32 %v4154, %v4239
        %v4279 = vadd.f32 %v4155, %v4241
        %v4280 = vadd.f32 %v4156, %v4244
        %v4281 = vadd.f32 %v4157, %v4246
        %v4282 = vadd.f32 %v4158, %v4249
        %v4283 = vadd.f32 %v4159, %v4251
        %s4284 = sadd.s32 %s235, 5
        %s4285 = smul.u32 %s4284, 24
        %s4286 = scalar_lea.vmem %s226, %s4285
        %v4287 = vld [vmem:[%s4286] sm:$0xff]
        %v4288 = vld [vmem:[%s4286 + $0x8] sm:$0xff]
        %v4289 = vld [vmem:[%s4286 + $0x10] sm:$0x3f]
        %v4290 = vld [vmem:[%s4286 + $0x18] sm:$0xff]
        %v4291 = vld [vmem:[%s4286 + $0x20] sm:$0xff]
        %v4292 = vld [vmem:[%s4286 + $0x28] sm:$0x3f]
        %v4293 = vld [vmem:[%s4286 + $0x30] sm:$0xff]
        %v4294 = vld [vmem:[%s4286 + $0x38] sm:$0xff]
        %v4295 = vld [vmem:[%s4286 + $0x40] sm:$0x3f]
        %v4296 = vld [vmem:[%s4286 + $0x48] sm:$0xff]
        %v4297 = vld [vmem:[%s4286 + $0x50] sm:$0xff]
        %v4298 = vld [vmem:[%s4286 + $0x58] sm:$0x3f]
        %v4299 = vld [vmem:[%s4286 + $0x60] sm:$0xff]
        %v4300 = vld [vmem:[%s4286 + $0x68] sm:$0xff]
        %v4301 = vld [vmem:[%s4286 + $0x70] sm:$0x3f]
        %v4302 = vld [vmem:[%s4286 + $0x78] sm:$0xff]
        %v4303 = vld [vmem:[%s4286 + $0x80] sm:$0xff]
        %v4304 = vld [vmem:[%s4286 + $0x88] sm:$0x3f]
        %v4305 = vld [vmem:[%s4286 + $0x90] sm:$0xff]
        %v4306 = vld [vmem:[%s4286 + $0x98] sm:$0xff]
        %v4307 = vld [vmem:[%s4286 + $0xa0] sm:$0x3f]
        %v4308 = vld [vmem:[%s4286 + $0xa8] sm:$0xff]
        %v4309 = vld [vmem:[%s4286 + $0xb0] sm:$0xff]
        %v4310 = vld [vmem:[%s4286 + $0xb8] sm:$0x3f]
        %v4311 = vlaneseq
        %v4312 = vshrl.u32 %v4311, 7
        %v4313 = vsub.s32 0, %v4312
        %v4314 = vrot.slane %v242, %v4313
        %v4315 = vmul.f32 %v4287, %v4314
        %v4316 = vmul.f32 %v4288, %v4314
        %v4317 = vmul.f32 %v4290, %v4314
        %v4318 = vmul.f32 %v4291, %v4314
        %v4319 = vmul.f32 %v4293, %v4314
        %v4320 = vmul.f32 %v4294, %v4314
        %v4321 = vmul.f32 %v4296, %v4314
        %v4322 = vmul.f32 %v4297, %v4314
        %v4323 = vmul.f32 %v4299, %v4314
        %v4324 = vmul.f32 %v4300, %v4314
        %v4325 = vmul.f32 %v4302, %v4314
        %v4326 = vmul.f32 %v4303, %v4314
        %v4327 = vmul.f32 %v4305, %v4314
        %v4328 = vmul.f32 %v4306, %v4314
        %v4329 = vmul.f32 %v4308, %v4314
        %v4330 = vmul.f32 %v4309, %v4314
        %v4331 = vadd.f32 %v4268, %v4315
        %v4332 = vadd.f32 %v4269, %v4316
        %v4333 = vadd.f32 %v4270, %v4317
        %v4334 = vadd.f32 %v4271, %v4318
        %v4335 = vadd.f32 %v4272, %v4319
        %v4336 = vadd.f32 %v4273, %v4320
        %v4337 = vadd.f32 %v4274, %v4321
        %v4338 = vadd.f32 %v4275, %v4322
        %v4339 = vadd.f32 %v4276, %v4323
        %v4340 = vadd.f32 %v4277, %v4324
        %v4341 = vadd.f32 %v4278, %v4325
        %v4342 = vadd.f32 %v4279, %v4326
        %v4343 = vadd.f32 %v4280, %v4327
        %v4344 = vadd.f32 %v4281, %v4328
        %v4345 = vadd.f32 %v4282, %v4329
        %v4346 = vadd.f32 %v4283, %v4330
        %v4347 = vlaneseq
        %v4348 = vshrl.u32 %v4347, 7
        %v4349 = vsub.s32 1, %v4348
        %v4350 = vrot.slane %v242, %v4349
        %v4351 = vmul.f32 %v4287, %v4350
        %v4352 = vmul.f32 %v4288, %v4350
        %v4353 = vmul.f32 %v4289, %v4350
        %v4354 = vmul.f32 %v4290, %v4350
        %v4355 = vmul.f32 %v4291, %v4350
        %v4356 = vmul.f32 %v4292, %v4350
        %v4357 = vmul.f32 %v4293, %v4350
        %v4358 = vmul.f32 %v4294, %v4350
        %v4359 = vmul.f32 %v4295, %v4350
        %v4360 = vmul.f32 %v4296, %v4350
        %v4361 = vmul.f32 %v4297, %v4350
        %v4362 = vmul.f32 %v4298, %v4350
        %v4363 = vmul.f32 %v4299, %v4350
        %v4364 = vmul.f32 %v4300, %v4350
        %v4365 = vmul.f32 %v4301, %v4350
        %v4366 = vmul.f32 %v4302, %v4350
        %v4367 = vmul.f32 %v4303, %v4350
        %v4368 = vmul.f32 %v4304, %v4350
        %v4369 = vmul.f32 %v4305, %v4350
        %v4370 = vmul.f32 %v4306, %v4350
        %v4371 = vmul.f32 %v4307, %v4350
        %v4372 = vmul.f32 %v4308, %v4350
        %v4373 = vmul.f32 %v4309, %v4350
        %v4374 = vmul.f32 %v4310, %v4350
        %v4399 = vrot.slane %v4351, 1
        %v4400 = vrot.slane %v4352, 1
        %v4401 = vsel %vm358, %v4399, %v4400
        %v4402 = vrot.slane %v4353, 1
        %v4403 = vsel %vm358, %v4400, %v4402
        %v4404 = vrot.slane %v4354, 1
        %v4405 = vrot.slane %v4355, 1
        %v4406 = vsel %vm358, %v4404, %v4405
        %v4407 = vrot.slane %v4356, 1
        %v4408 = vsel %vm358, %v4405, %v4407
        %v4409 = vrot.slane %v4357, 1
        %v4410 = vrot.slane %v4358, 1
        %v4411 = vsel %vm358, %v4409, %v4410
        %v4412 = vrot.slane %v4359, 1
        %v4413 = vsel %vm358, %v4410, %v4412
        %v4414 = vrot.slane %v4360, 1
        %v4415 = vrot.slane %v4361, 1
        %v4416 = vsel %vm358, %v4414, %v4415
        %v4417 = vrot.slane %v4362, 1
        %v4418 = vsel %vm358, %v4415, %v4417
        %v4419 = vrot.slane %v4363, 1
        %v4420 = vrot.slane %v4364, 1
        %v4421 = vsel %vm358, %v4419, %v4420
        %v4422 = vrot.slane %v4365, 1
        %v4423 = vsel %vm358, %v4420, %v4422
        %v4424 = vrot.slane %v4366, 1
        %v4425 = vrot.slane %v4367, 1
        %v4426 = vsel %vm358, %v4424, %v4425
        %v4427 = vrot.slane %v4368, 1
        %v4428 = vsel %vm358, %v4425, %v4427
        %v4429 = vrot.slane %v4369, 1
        %v4430 = vrot.slane %v4370, 1
        %v4431 = vsel %vm358, %v4429, %v4430
        %v4432 = vrot.slane %v4371, 1
        %v4433 = vsel %vm358, %v4430, %v4432
        %v4434 = vrot.slane %v4372, 1
        %v4435 = vrot.slane %v4373, 1
        %v4436 = vsel %vm358, %v4434, %v4435
        %v4437 = vrot.slane %v4374, 1
        %v4438 = vsel %vm358, %v4435, %v4437
        %v4455 = vadd.f32 %v4331, %v4401
        %v4456 = vadd.f32 %v4332, %v4403
        %v4457 = vadd.f32 %v4333, %v4406
        %v4458 = vadd.f32 %v4334, %v4408
        %v4459 = vadd.f32 %v4335, %v4411
        %v4460 = vadd.f32 %v4336, %v4413
        %v4461 = vadd.f32 %v4337, %v4416
        %v4462 = vadd.f32 %v4338, %v4418
        %v4463 = vadd.f32 %v4339, %v4421
        %v4464 = vadd.f32 %v4340, %v4423
        %v4465 = vadd.f32 %v4341, %v4426
        %v4466 = vadd.f32 %v4342, %v4428
        %v4467 = vadd.f32 %v4343, %v4431
        %v4468 = vadd.f32 %v4344, %v4433
        %v4469 = vadd.f32 %v4345, %v4436
        %v4470 = vadd.f32 %v4346, %v4438
        %v4471 = vlaneseq
        %v4472 = vshrl.u32 %v4471, 7
        %v4473 = vsub.s32 2, %v4472
        %v4474 = vrot.slane %v242, %v4473
        %v4475 = vmul.f32 %v4287, %v4474
        %v4476 = vmul.f32 %v4288, %v4474
        %v4477 = vmul.f32 %v4289, %v4474
        %v4478 = vmul.f32 %v4290, %v4474
        %v4479 = vmul.f32 %v4291, %v4474
        %v4480 = vmul.f32 %v4292, %v4474
        %v4481 = vmul.f32 %v4293, %v4474
        %v4482 = vmul.f32 %v4294, %v4474
        %v4483 = vmul.f32 %v4295, %v4474
        %v4484 = vmul.f32 %v4296, %v4474
        %v4485 = vmul.f32 %v4297, %v4474
        %v4486 = vmul.f32 %v4298, %v4474
        %v4487 = vmul.f32 %v4299, %v4474
        %v4488 = vmul.f32 %v4300, %v4474
        %v4489 = vmul.f32 %v4301, %v4474
        %v4490 = vmul.f32 %v4302, %v4474
        %v4491 = vmul.f32 %v4303, %v4474
        %v4492 = vmul.f32 %v4304, %v4474
        %v4493 = vmul.f32 %v4305, %v4474
        %v4494 = vmul.f32 %v4306, %v4474
        %v4495 = vmul.f32 %v4307, %v4474
        %v4496 = vmul.f32 %v4308, %v4474
        %v4497 = vmul.f32 %v4309, %v4474
        %v4498 = vmul.f32 %v4310, %v4474
        %v4523 = vrot.slane %v4475, 2
        %v4524 = vrot.slane %v4476, 2
        %v4525 = vsel %vm483, %v4523, %v4524
        %v4526 = vrot.slane %v4477, 2
        %v4527 = vsel %vm483, %v4524, %v4526
        %v4528 = vrot.slane %v4478, 2
        %v4529 = vrot.slane %v4479, 2
        %v4530 = vsel %vm483, %v4528, %v4529
        %v4531 = vrot.slane %v4480, 2
        %v4532 = vsel %vm483, %v4529, %v4531
        %v4533 = vrot.slane %v4481, 2
        %v4534 = vrot.slane %v4482, 2
        %v4535 = vsel %vm483, %v4533, %v4534
        %v4536 = vrot.slane %v4483, 2
        %v4537 = vsel %vm483, %v4534, %v4536
        %v4538 = vrot.slane %v4484, 2
        %v4539 = vrot.slane %v4485, 2
        %v4540 = vsel %vm483, %v4538, %v4539
        %v4541 = vrot.slane %v4486, 2
        %v4542 = vsel %vm483, %v4539, %v4541
        %v4543 = vrot.slane %v4487, 2
        %v4544 = vrot.slane %v4488, 2
        %v4545 = vsel %vm483, %v4543, %v4544
        %v4546 = vrot.slane %v4489, 2
        %v4547 = vsel %vm483, %v4544, %v4546
        %v4548 = vrot.slane %v4490, 2
        %v4549 = vrot.slane %v4491, 2
        %v4550 = vsel %vm483, %v4548, %v4549
        %v4551 = vrot.slane %v4492, 2
        %v4552 = vsel %vm483, %v4549, %v4551
        %v4553 = vrot.slane %v4493, 2
        %v4554 = vrot.slane %v4494, 2
        %v4555 = vsel %vm483, %v4553, %v4554
        %v4556 = vrot.slane %v4495, 2
        %v4557 = vsel %vm483, %v4554, %v4556
        %v4558 = vrot.slane %v4496, 2
        %v4559 = vrot.slane %v4497, 2
        %v4560 = vsel %vm483, %v4558, %v4559
        %v4561 = vrot.slane %v4498, 2
        %v4562 = vsel %vm483, %v4559, %v4561
        %v4579 = vadd.f32 %v4455, %v4525
        %v4580 = vadd.f32 %v4456, %v4527
        %v4581 = vadd.f32 %v4457, %v4530
        %v4582 = vadd.f32 %v4458, %v4532
        %v4583 = vadd.f32 %v4459, %v4535
        %v4584 = vadd.f32 %v4460, %v4537
        %v4585 = vadd.f32 %v4461, %v4540
        %v4586 = vadd.f32 %v4462, %v4542
        %v4587 = vadd.f32 %v4463, %v4545
        %v4588 = vadd.f32 %v4464, %v4547
        %v4589 = vadd.f32 %v4465, %v4550
        %v4590 = vadd.f32 %v4466, %v4552
        %v4591 = vadd.f32 %v4467, %v4555
        %v4592 = vadd.f32 %v4468, %v4557
        %v4593 = vadd.f32 %v4469, %v4560
        %v4594 = vadd.f32 %v4470, %v4562
        %v4595 = vlaneseq
        %v4596 = vshrl.u32 %v4595, 7
        %v4597 = vsub.s32 3, %v4596
        %v4598 = vrot.slane %v242, %v4597
        %v4599 = vmul.f32 %v4287, %v4598
        %v4600 = vmul.f32 %v4288, %v4598
        %v4601 = vmul.f32 %v4289, %v4598
        %v4602 = vmul.f32 %v4290, %v4598
        %v4603 = vmul.f32 %v4291, %v4598
        %v4604 = vmul.f32 %v4292, %v4598
        %v4605 = vmul.f32 %v4293, %v4598
        %v4606 = vmul.f32 %v4294, %v4598
        %v4607 = vmul.f32 %v4295, %v4598
        %v4608 = vmul.f32 %v4296, %v4598
        %v4609 = vmul.f32 %v4297, %v4598
        %v4610 = vmul.f32 %v4298, %v4598
        %v4611 = vmul.f32 %v4299, %v4598
        %v4612 = vmul.f32 %v4300, %v4598
        %v4613 = vmul.f32 %v4301, %v4598
        %v4614 = vmul.f32 %v4302, %v4598
        %v4615 = vmul.f32 %v4303, %v4598
        %v4616 = vmul.f32 %v4304, %v4598
        %v4617 = vmul.f32 %v4305, %v4598
        %v4618 = vmul.f32 %v4306, %v4598
        %v4619 = vmul.f32 %v4307, %v4598
        %v4620 = vmul.f32 %v4308, %v4598
        %v4621 = vmul.f32 %v4309, %v4598
        %v4622 = vmul.f32 %v4310, %v4598
        %v4647 = vrot.slane %v4599, 3
        %v4648 = vrot.slane %v4600, 3
        %v4649 = vsel %vm608, %v4647, %v4648
        %v4650 = vrot.slane %v4601, 3
        %v4651 = vsel %vm608, %v4648, %v4650
        %v4652 = vrot.slane %v4602, 3
        %v4653 = vrot.slane %v4603, 3
        %v4654 = vsel %vm608, %v4652, %v4653
        %v4655 = vrot.slane %v4604, 3
        %v4656 = vsel %vm608, %v4653, %v4655
        %v4657 = vrot.slane %v4605, 3
        %v4658 = vrot.slane %v4606, 3
        %v4659 = vsel %vm608, %v4657, %v4658
        %v4660 = vrot.slane %v4607, 3
        %v4661 = vsel %vm608, %v4658, %v4660
        %v4662 = vrot.slane %v4608, 3
        %v4663 = vrot.slane %v4609, 3
        %v4664 = vsel %vm608, %v4662, %v4663
        %v4665 = vrot.slane %v4610, 3
        %v4666 = vsel %vm608, %v4663, %v4665
        %v4667 = vrot.slane %v4611, 3
        %v4668 = vrot.slane %v4612, 3
        %v4669 = vsel %vm608, %v4667, %v4668
        %v4670 = vrot.slane %v4613, 3
        %v4671 = vsel %vm608, %v4668, %v4670
        %v4672 = vrot.slane %v4614, 3
        %v4673 = vrot.slane %v4615, 3
        %v4674 = vsel %vm608, %v4672, %v4673
        %v4675 = vrot.slane %v4616, 3
        %v4676 = vsel %vm608, %v4673, %v4675
        %v4677 = vrot.slane %v4617, 3
        %v4678 = vrot.slane %v4618, 3
        %v4679 = vsel %vm608, %v4677, %v4678
        %v4680 = vrot.slane %v4619, 3
        %v4681 = vsel %vm608, %v4678, %v4680
        %v4682 = vrot.slane %v4620, 3
        %v4683 = vrot.slane %v4621, 3
        %v4684 = vsel %vm608, %v4682, %v4683
        %v4685 = vrot.slane %v4622, 3
        %v4686 = vsel %vm608, %v4683, %v4685
        %v4703 = vadd.f32 %v4579, %v4649
        %v4704 = vadd.f32 %v4580, %v4651
        %v4705 = vadd.f32 %v4581, %v4654
        %v4706 = vadd.f32 %v4582, %v4656
        %v4707 = vadd.f32 %v4583, %v4659
        %v4708 = vadd.f32 %v4584, %v4661
        %v4709 = vadd.f32 %v4585, %v4664
        %v4710 = vadd.f32 %v4586, %v4666
        %v4711 = vadd.f32 %v4587, %v4669
        %v4712 = vadd.f32 %v4588, %v4671
        %v4713 = vadd.f32 %v4589, %v4674
        %v4714 = vadd.f32 %v4590, %v4676
        %v4715 = vadd.f32 %v4591, %v4679
        %v4716 = vadd.f32 %v4592, %v4681
        %v4717 = vadd.f32 %v4593, %v4684
        %v4718 = vadd.f32 %v4594, %v4686
        %v4719 = vlaneseq
        %v4720 = vshrl.u32 %v4719, 7
        %v4721 = vsub.s32 4, %v4720
        %v4722 = vrot.slane %v242, %v4721
        %v4723 = vmul.f32 %v4287, %v4722
        %v4724 = vmul.f32 %v4288, %v4722
        %v4725 = vmul.f32 %v4289, %v4722
        %v4726 = vmul.f32 %v4290, %v4722
        %v4727 = vmul.f32 %v4291, %v4722
        %v4728 = vmul.f32 %v4292, %v4722
        %v4729 = vmul.f32 %v4293, %v4722
        %v4730 = vmul.f32 %v4294, %v4722
        %v4731 = vmul.f32 %v4295, %v4722
        %v4732 = vmul.f32 %v4296, %v4722
        %v4733 = vmul.f32 %v4297, %v4722
        %v4734 = vmul.f32 %v4298, %v4722
        %v4735 = vmul.f32 %v4299, %v4722
        %v4736 = vmul.f32 %v4300, %v4722
        %v4737 = vmul.f32 %v4301, %v4722
        %v4738 = vmul.f32 %v4302, %v4722
        %v4739 = vmul.f32 %v4303, %v4722
        %v4740 = vmul.f32 %v4304, %v4722
        %v4741 = vmul.f32 %v4305, %v4722
        %v4742 = vmul.f32 %v4306, %v4722
        %v4743 = vmul.f32 %v4307, %v4722
        %v4744 = vmul.f32 %v4308, %v4722
        %v4745 = vmul.f32 %v4309, %v4722
        %v4746 = vmul.f32 %v4310, %v4722
        %v4771 = vrot.slane %v4723, 4
        %v4772 = vrot.slane %v4724, 4
        %v4773 = vsel %vm733, %v4771, %v4772
        %v4774 = vrot.slane %v4725, 4
        %v4775 = vsel %vm733, %v4772, %v4774
        %v4776 = vrot.slane %v4726, 4
        %v4777 = vrot.slane %v4727, 4
        %v4778 = vsel %vm733, %v4776, %v4777
        %v4779 = vrot.slane %v4728, 4
        %v4780 = vsel %vm733, %v4777, %v4779
        %v4781 = vrot.slane %v4729, 4
        %v4782 = vrot.slane %v4730, 4
        %v4783 = vsel %vm733, %v4781, %v4782
        %v4784 = vrot.slane %v4731, 4
        %v4785 = vsel %vm733, %v4782, %v4784
        %v4786 = vrot.slane %v4732, 4
        %v4787 = vrot.slane %v4733, 4
        %v4788 = vsel %vm733, %v4786, %v4787
        %v4789 = vrot.slane %v4734, 4
        %v4790 = vsel %vm733, %v4787, %v4789
        %v4791 = vrot.slane %v4735, 4
        %v4792 = vrot.slane %v4736, 4
        %v4793 = vsel %vm733, %v4791, %v4792
        %v4794 = vrot.slane %v4737, 4
        %v4795 = vsel %vm733, %v4792, %v4794
        %v4796 = vrot.slane %v4738, 4
        %v4797 = vrot.slane %v4739, 4
        %v4798 = vsel %vm733, %v4796, %v4797
        %v4799 = vrot.slane %v4740, 4
        %v4800 = vsel %vm733, %v4797, %v4799
        %v4801 = vrot.slane %v4741, 4
        %v4802 = vrot.slane %v4742, 4
        %v4803 = vsel %vm733, %v4801, %v4802
        %v4804 = vrot.slane %v4743, 4
        %v4805 = vsel %vm733, %v4802, %v4804
        %v4806 = vrot.slane %v4744, 4
        %v4807 = vrot.slane %v4745, 4
        %v4808 = vsel %vm733, %v4806, %v4807
        %v4809 = vrot.slane %v4746, 4
        %v4810 = vsel %vm733, %v4807, %v4809
        %v4827 = vadd.f32 %v4703, %v4773
        %v4828 = vadd.f32 %v4704, %v4775
        %v4829 = vadd.f32 %v4705, %v4778
        %v4830 = vadd.f32 %v4706, %v4780
        %v4831 = vadd.f32 %v4707, %v4783
        %v4832 = vadd.f32 %v4708, %v4785
        %v4833 = vadd.f32 %v4709, %v4788
        %v4834 = vadd.f32 %v4710, %v4790
        %v4835 = vadd.f32 %v4711, %v4793
        %v4836 = vadd.f32 %v4712, %v4795
        %v4837 = vadd.f32 %v4713, %v4798
        %v4838 = vadd.f32 %v4714, %v4800
        %v4839 = vadd.f32 %v4715, %v4803
        %v4840 = vadd.f32 %v4716, %v4805
        %v4841 = vadd.f32 %v4717, %v4808
        %v4842 = vadd.f32 %v4718, %v4810
        %v4843 = vlaneseq
        %v4844 = vshrl.u32 %v4843, 7
        %v4845 = vsub.s32 5, %v4844
        %v4846 = vrot.slane %v242, %v4845
        %v4847 = vmul.f32 %v4287, %v4846
        %v4848 = vmul.f32 %v4288, %v4846
        %v4849 = vmul.f32 %v4289, %v4846
        %v4850 = vmul.f32 %v4290, %v4846
        %v4851 = vmul.f32 %v4291, %v4846
        %v4852 = vmul.f32 %v4292, %v4846
        %v4853 = vmul.f32 %v4293, %v4846
        %v4854 = vmul.f32 %v4294, %v4846
        %v4855 = vmul.f32 %v4295, %v4846
        %v4856 = vmul.f32 %v4296, %v4846
        %v4857 = vmul.f32 %v4297, %v4846
        %v4858 = vmul.f32 %v4298, %v4846
        %v4859 = vmul.f32 %v4299, %v4846
        %v4860 = vmul.f32 %v4300, %v4846
        %v4861 = vmul.f32 %v4301, %v4846
        %v4862 = vmul.f32 %v4302, %v4846
        %v4863 = vmul.f32 %v4303, %v4846
        %v4864 = vmul.f32 %v4304, %v4846
        %v4865 = vmul.f32 %v4305, %v4846
        %v4866 = vmul.f32 %v4306, %v4846
        %v4867 = vmul.f32 %v4307, %v4846
        %v4868 = vmul.f32 %v4308, %v4846
        %v4869 = vmul.f32 %v4309, %v4846
        %v4870 = vmul.f32 %v4310, %v4846
        %v4895 = vrot.slane %v4847, 5
        %v4896 = vrot.slane %v4848, 5
        %v4897 = vsel %vm858, %v4895, %v4896
        %v4898 = vrot.slane %v4849, 5
        %v4899 = vsel %vm858, %v4896, %v4898
        %v4900 = vrot.slane %v4850, 5
        %v4901 = vrot.slane %v4851, 5
        %v4902 = vsel %vm858, %v4900, %v4901
        %v4903 = vrot.slane %v4852, 5
        %v4904 = vsel %vm858, %v4901, %v4903
        %v4905 = vrot.slane %v4853, 5
        %v4906 = vrot.slane %v4854, 5
        %v4907 = vsel %vm858, %v4905, %v4906
        %v4908 = vrot.slane %v4855, 5
        %v4909 = vsel %vm858, %v4906, %v4908
        %v4910 = vrot.slane %v4856, 5
        %v4911 = vrot.slane %v4857, 5
        %v4912 = vsel %vm858, %v4910, %v4911
        %v4913 = vrot.slane %v4858, 5
        %v4914 = vsel %vm858, %v4911, %v4913
        %v4915 = vrot.slane %v4859, 5
        %v4916 = vrot.slane %v4860, 5
        %v4917 = vsel %vm858, %v4915, %v4916
        %v4918 = vrot.slane %v4861, 5
        %v4919 = vsel %vm858, %v4916, %v4918
        %v4920 = vrot.slane %v4862, 5
        %v4921 = vrot.slane %v4863, 5
        %v4922 = vsel %vm858, %v4920, %v4921
        %v4923 = vrot.slane %v4864, 5
        %v4924 = vsel %vm858, %v4921, %v4923
        %v4925 = vrot.slane %v4865, 5
        %v4926 = vrot.slane %v4866, 5
        %v4927 = vsel %vm858, %v4925, %v4926
        %v4928 = vrot.slane %v4867, 5
        %v4929 = vsel %vm858, %v4926, %v4928
        %v4930 = vrot.slane %v4868, 5
        %v4931 = vrot.slane %v4869, 5
        %v4932 = vsel %vm858, %v4930, %v4931
        %v4933 = vrot.slane %v4870, 5
        %v4934 = vsel %vm858, %v4931, %v4933
        %v4951 = vadd.f32 %v4827, %v4897
        %v4952 = vadd.f32 %v4828, %v4899
        %v4953 = vadd.f32 %v4829, %v4902
        %v4954 = vadd.f32 %v4830, %v4904
        %v4955 = vadd.f32 %v4831, %v4907
        %v4956 = vadd.f32 %v4832, %v4909
        %v4957 = vadd.f32 %v4833, %v4912
        %v4958 = vadd.f32 %v4834, %v4914
        %v4959 = vadd.f32 %v4835, %v4917
        %v4960 = vadd.f32 %v4836, %v4919
        %v4961 = vadd.f32 %v4837, %v4922
        %v4962 = vadd.f32 %v4838, %v4924
        %v4963 = vadd.f32 %v4839, %v4927
        %v4964 = vadd.f32 %v4840, %v4929
        %v4965 = vadd.f32 %v4841, %v4932
        %v4966 = vadd.f32 %v4842, %v4934
        %v4967 = vlaneseq
        %v4968 = vshrl.u32 %v4967, 7
        %v4969 = vsub.s32 6, %v4968
        %v4970 = vrot.slane %v242, %v4969
        %v4971 = vmul.f32 %v4287, %v4970
        %v4972 = vmul.f32 %v4288, %v4970
        %v4973 = vmul.f32 %v4289, %v4970
        %v4974 = vmul.f32 %v4290, %v4970
        %v4975 = vmul.f32 %v4291, %v4970
        %v4976 = vmul.f32 %v4292, %v4970
        %v4977 = vmul.f32 %v4293, %v4970
        %v4978 = vmul.f32 %v4294, %v4970
        %v4979 = vmul.f32 %v4295, %v4970
        %v4980 = vmul.f32 %v4296, %v4970
        %v4981 = vmul.f32 %v4297, %v4970
        %v4982 = vmul.f32 %v4298, %v4970
        %v4983 = vmul.f32 %v4299, %v4970
        %v4984 = vmul.f32 %v4300, %v4970
        %v4985 = vmul.f32 %v4301, %v4970
        %v4986 = vmul.f32 %v4302, %v4970
        %v4987 = vmul.f32 %v4303, %v4970
        %v4988 = vmul.f32 %v4304, %v4970
        %v4989 = vmul.f32 %v4305, %v4970
        %v4990 = vmul.f32 %v4306, %v4970
        %v4991 = vmul.f32 %v4307, %v4970
        %v4992 = vmul.f32 %v4308, %v4970
        %v4993 = vmul.f32 %v4309, %v4970
        %v4994 = vmul.f32 %v4310, %v4970
        %v5019 = vrot.slane %v4971, 6
        %v5020 = vrot.slane %v4972, 6
        %v5021 = vsel %vm983, %v5019, %v5020
        %v5022 = vrot.slane %v4973, 6
        %v5023 = vsel %vm983, %v5020, %v5022
        %v5024 = vrot.slane %v4974, 6
        %v5025 = vrot.slane %v4975, 6
        %v5026 = vsel %vm983, %v5024, %v5025
        %v5027 = vrot.slane %v4976, 6
        %v5028 = vsel %vm983, %v5025, %v5027
        %v5029 = vrot.slane %v4977, 6
        %v5030 = vrot.slane %v4978, 6
        %v5031 = vsel %vm983, %v5029, %v5030
        %v5032 = vrot.slane %v4979, 6
        %v5033 = vsel %vm983, %v5030, %v5032
        %v5034 = vrot.slane %v4980, 6
        %v5035 = vrot.slane %v4981, 6
        %v5036 = vsel %vm983, %v5034, %v5035
        %v5037 = vrot.slane %v4982, 6
        %v5038 = vsel %vm983, %v5035, %v5037
        %v5039 = vrot.slane %v4983, 6
        %v5040 = vrot.slane %v4984, 6
        %v5041 = vsel %vm983, %v5039, %v5040
        %v5042 = vrot.slane %v4985, 6
        %v5043 = vsel %vm983, %v5040, %v5042
        %v5044 = vrot.slane %v4986, 6
        %v5045 = vrot.slane %v4987, 6
        %v5046 = vsel %vm983, %v5044, %v5045
        %v5047 = vrot.slane %v4988, 6
        %v5048 = vsel %vm983, %v5045, %v5047
        %v5049 = vrot.slane %v4989, 6
        %v5050 = vrot.slane %v4990, 6
        %v5051 = vsel %vm983, %v5049, %v5050
        %v5052 = vrot.slane %v4991, 6
        %v5053 = vsel %vm983, %v5050, %v5052
        %v5054 = vrot.slane %v4992, 6
        %v5055 = vrot.slane %v4993, 6
        %v5056 = vsel %vm983, %v5054, %v5055
        %v5057 = vrot.slane %v4994, 6
        %v5058 = vsel %vm983, %v5055, %v5057
        %v5075 = vadd.f32 %v4951, %v5021
        %v5076 = vadd.f32 %v4952, %v5023
        %v5077 = vadd.f32 %v4953, %v5026
        %v5078 = vadd.f32 %v4954, %v5028
        %v5079 = vadd.f32 %v4955, %v5031
        %v5080 = vadd.f32 %v4956, %v5033
        %v5081 = vadd.f32 %v4957, %v5036
        %v5082 = vadd.f32 %v4958, %v5038
        %v5083 = vadd.f32 %v4959, %v5041
        %v5084 = vadd.f32 %v4960, %v5043
        %v5085 = vadd.f32 %v4961, %v5046
        %v5086 = vadd.f32 %v4962, %v5048
        %v5087 = vadd.f32 %v4963, %v5051
        %v5088 = vadd.f32 %v4964, %v5053
        %v5089 = vadd.f32 %v4965, %v5056
        %v5090 = vadd.f32 %v4966, %v5058
        %s5091 = sadd.s32 %s235, 6
        %s5092 = smul.u32 %s5091, 24
        %s5093 = scalar_lea.vmem %s226, %s5092
        %v5094 = vld [vmem:[%s5093] sm:$0xff]
        %v5095 = vld [vmem:[%s5093 + $0x8] sm:$0xff]
        %v5096 = vld [vmem:[%s5093 + $0x10] sm:$0x3f]
        %v5097 = vld [vmem:[%s5093 + $0x18] sm:$0xff]
        %v5098 = vld [vmem:[%s5093 + $0x20] sm:$0xff]
        %v5099 = vld [vmem:[%s5093 + $0x28] sm:$0x3f]
        %v5100 = vld [vmem:[%s5093 + $0x30] sm:$0xff]
        %v5101 = vld [vmem:[%s5093 + $0x38] sm:$0xff]
        %v5102 = vld [vmem:[%s5093 + $0x40] sm:$0x3f]
        %v5103 = vld [vmem:[%s5093 + $0x48] sm:$0xff]
        %v5104 = vld [vmem:[%s5093 + $0x50] sm:$0xff]
        %v5105 = vld [vmem:[%s5093 + $0x58] sm:$0x3f]
        %v5106 = vld [vmem:[%s5093 + $0x60] sm:$0xff]
        %v5107 = vld [vmem:[%s5093 + $0x68] sm:$0xff]
        %v5108 = vld [vmem:[%s5093 + $0x70] sm:$0x3f]
        %v5109 = vld [vmem:[%s5093 + $0x78] sm:$0xff]
        %v5110 = vld [vmem:[%s5093 + $0x80] sm:$0xff]
        %v5111 = vld [vmem:[%s5093 + $0x88] sm:$0x3f]
        %v5112 = vld [vmem:[%s5093 + $0x90] sm:$0xff]
        %v5113 = vld [vmem:[%s5093 + $0x98] sm:$0xff]
        %v5114 = vld [vmem:[%s5093 + $0xa0] sm:$0x3f]
        %v5115 = vld [vmem:[%s5093 + $0xa8] sm:$0xff]
        %v5116 = vld [vmem:[%s5093 + $0xb0] sm:$0xff]
        %v5117 = vld [vmem:[%s5093 + $0xb8] sm:$0x3f]
        %v5118 = vlaneseq
        %v5119 = vshrl.u32 %v5118, 7
        %v5120 = vsub.s32 0, %v5119
        %v5121 = vrot.slane %v243, %v5120
        %v5122 = vmul.f32 %v5094, %v5121
        %v5123 = vmul.f32 %v5095, %v5121
        %v5124 = vmul.f32 %v5097, %v5121
        %v5125 = vmul.f32 %v5098, %v5121
        %v5126 = vmul.f32 %v5100, %v5121
        %v5127 = vmul.f32 %v5101, %v5121
        %v5128 = vmul.f32 %v5103, %v5121
        %v5129 = vmul.f32 %v5104, %v5121
        %v5130 = vmul.f32 %v5106, %v5121
        %v5131 = vmul.f32 %v5107, %v5121
        %v5132 = vmul.f32 %v5109, %v5121
        %v5133 = vmul.f32 %v5110, %v5121
        %v5134 = vmul.f32 %v5112, %v5121
        %v5135 = vmul.f32 %v5113, %v5121
        %v5136 = vmul.f32 %v5115, %v5121
        %v5137 = vmul.f32 %v5116, %v5121
        %v5138 = vadd.f32 %v5075, %v5122
        %v5139 = vadd.f32 %v5076, %v5123
        %v5140 = vadd.f32 %v5077, %v5124
        %v5141 = vadd.f32 %v5078, %v5125
        %v5142 = vadd.f32 %v5079, %v5126
        %v5143 = vadd.f32 %v5080, %v5127
        %v5144 = vadd.f32 %v5081, %v5128
        %v5145 = vadd.f32 %v5082, %v5129
        %v5146 = vadd.f32 %v5083, %v5130
        %v5147 = vadd.f32 %v5084, %v5131
        %v5148 = vadd.f32 %v5085, %v5132
        %v5149 = vadd.f32 %v5086, %v5133
        %v5150 = vadd.f32 %v5087, %v5134
        %v5151 = vadd.f32 %v5088, %v5135
        %v5152 = vadd.f32 %v5089, %v5136
        %v5153 = vadd.f32 %v5090, %v5137
        %v5154 = vlaneseq
        %v5155 = vshrl.u32 %v5154, 7
        %v5156 = vsub.s32 1, %v5155
        %v5157 = vrot.slane %v243, %v5156
        %v5158 = vmul.f32 %v5094, %v5157
        %v5159 = vmul.f32 %v5095, %v5157
        %v5160 = vmul.f32 %v5096, %v5157
        %v5161 = vmul.f32 %v5097, %v5157
        %v5162 = vmul.f32 %v5098, %v5157
        %v5163 = vmul.f32 %v5099, %v5157
        %v5164 = vmul.f32 %v5100, %v5157
        %v5165 = vmul.f32 %v5101, %v5157
        %v5166 = vmul.f32 %v5102, %v5157
        %v5167 = vmul.f32 %v5103, %v5157
        %v5168 = vmul.f32 %v5104, %v5157
        %v5169 = vmul.f32 %v5105, %v5157
        %v5170 = vmul.f32 %v5106, %v5157
        %v5171 = vmul.f32 %v5107, %v5157
        %v5172 = vmul.f32 %v5108, %v5157
        %v5173 = vmul.f32 %v5109, %v5157
        %v5174 = vmul.f32 %v5110, %v5157
        %v5175 = vmul.f32 %v5111, %v5157
        %v5176 = vmul.f32 %v5112, %v5157
        %v5177 = vmul.f32 %v5113, %v5157
        %v5178 = vmul.f32 %v5114, %v5157
        %v5179 = vmul.f32 %v5115, %v5157
        %v5180 = vmul.f32 %v5116, %v5157
        %v5181 = vmul.f32 %v5117, %v5157
        %v5206 = vrot.slane %v5158, 1
        %v5207 = vrot.slane %v5159, 1
        %v5208 = vsel %vm358, %v5206, %v5207
        %v5209 = vrot.slane %v5160, 1
        %v5210 = vsel %vm358, %v5207, %v5209
        %v5211 = vrot.slane %v5161, 1
        %v5212 = vrot.slane %v5162, 1
        %v5213 = vsel %vm358, %v5211, %v5212
        %v5214 = vrot.slane %v5163, 1
        %v5215 = vsel %vm358, %v5212, %v5214
        %v5216 = vrot.slane %v5164, 1
        %v5217 = vrot.slane %v5165, 1
        %v5218 = vsel %vm358, %v5216, %v5217
        %v5219 = vrot.slane %v5166, 1
        %v5220 = vsel %vm358, %v5217, %v5219
        %v5221 = vrot.slane %v5167, 1
        %v5222 = vrot.slane %v5168, 1
        %v5223 = vsel %vm358, %v5221, %v5222
        %v5224 = vrot.slane %v5169, 1
        %v5225 = vsel %vm358, %v5222, %v5224
        %v5226 = vrot.slane %v5170, 1
        %v5227 = vrot.slane %v5171, 1
        %v5228 = vsel %vm358, %v5226, %v5227
        %v5229 = vrot.slane %v5172, 1
        %v5230 = vsel %vm358, %v5227, %v5229
        %v5231 = vrot.slane %v5173, 1
        %v5232 = vrot.slane %v5174, 1
        %v5233 = vsel %vm358, %v5231, %v5232
        %v5234 = vrot.slane %v5175, 1
        %v5235 = vsel %vm358, %v5232, %v5234
        %v5236 = vrot.slane %v5176, 1
        %v5237 = vrot.slane %v5177, 1
        %v5238 = vsel %vm358, %v5236, %v5237
        %v5239 = vrot.slane %v5178, 1
        %v5240 = vsel %vm358, %v5237, %v5239
        %v5241 = vrot.slane %v5179, 1
        %v5242 = vrot.slane %v5180, 1
        %v5243 = vsel %vm358, %v5241, %v5242
        %v5244 = vrot.slane %v5181, 1
        %v5245 = vsel %vm358, %v5242, %v5244
        %v5262 = vadd.f32 %v5138, %v5208
        %v5263 = vadd.f32 %v5139, %v5210
        %v5264 = vadd.f32 %v5140, %v5213
        %v5265 = vadd.f32 %v5141, %v5215
        %v5266 = vadd.f32 %v5142, %v5218
        %v5267 = vadd.f32 %v5143, %v5220
        %v5268 = vadd.f32 %v5144, %v5223
        %v5269 = vadd.f32 %v5145, %v5225
        %v5270 = vadd.f32 %v5146, %v5228
        %v5271 = vadd.f32 %v5147, %v5230
        %v5272 = vadd.f32 %v5148, %v5233
        %v5273 = vadd.f32 %v5149, %v5235
        %v5274 = vadd.f32 %v5150, %v5238
        %v5275 = vadd.f32 %v5151, %v5240
        %v5276 = vadd.f32 %v5152, %v5243
        %v5277 = vadd.f32 %v5153, %v5245
        %v5278 = vlaneseq
        %v5279 = vshrl.u32 %v5278, 7
        %v5280 = vsub.s32 2, %v5279
        %v5281 = vrot.slane %v243, %v5280
        %v5282 = vmul.f32 %v5094, %v5281
        %v5283 = vmul.f32 %v5095, %v5281
        %v5284 = vmul.f32 %v5096, %v5281
        %v5285 = vmul.f32 %v5097, %v5281
        %v5286 = vmul.f32 %v5098, %v5281
        %v5287 = vmul.f32 %v5099, %v5281
        %v5288 = vmul.f32 %v5100, %v5281
        %v5289 = vmul.f32 %v5101, %v5281
        %v5290 = vmul.f32 %v5102, %v5281
        %v5291 = vmul.f32 %v5103, %v5281
        %v5292 = vmul.f32 %v5104, %v5281
        %v5293 = vmul.f32 %v5105, %v5281
        %v5294 = vmul.f32 %v5106, %v5281
        %v5295 = vmul.f32 %v5107, %v5281
        %v5296 = vmul.f32 %v5108, %v5281
        %v5297 = vmul.f32 %v5109, %v5281
        %v5298 = vmul.f32 %v5110, %v5281
        %v5299 = vmul.f32 %v5111, %v5281
        %v5300 = vmul.f32 %v5112, %v5281
        %v5301 = vmul.f32 %v5113, %v5281
        %v5302 = vmul.f32 %v5114, %v5281
        %v5303 = vmul.f32 %v5115, %v5281
        %v5304 = vmul.f32 %v5116, %v5281
        %v5305 = vmul.f32 %v5117, %v5281
        %v5330 = vrot.slane %v5282, 2
        %v5331 = vrot.slane %v5283, 2
        %v5332 = vsel %vm483, %v5330, %v5331
        %v5333 = vrot.slane %v5284, 2
        %v5334 = vsel %vm483, %v5331, %v5333
        %v5335 = vrot.slane %v5285, 2
        %v5336 = vrot.slane %v5286, 2
        %v5337 = vsel %vm483, %v5335, %v5336
        %v5338 = vrot.slane %v5287, 2
        %v5339 = vsel %vm483, %v5336, %v5338
        %v5340 = vrot.slane %v5288, 2
        %v5341 = vrot.slane %v5289, 2
        %v5342 = vsel %vm483, %v5340, %v5341
        %v5343 = vrot.slane %v5290, 2
        %v5344 = vsel %vm483, %v5341, %v5343
        %v5345 = vrot.slane %v5291, 2
        %v5346 = vrot.slane %v5292, 2
        %v5347 = vsel %vm483, %v5345, %v5346
        %v5348 = vrot.slane %v5293, 2
        %v5349 = vsel %vm483, %v5346, %v5348
        %v5350 = vrot.slane %v5294, 2
        %v5351 = vrot.slane %v5295, 2
        %v5352 = vsel %vm483, %v5350, %v5351
        %v5353 = vrot.slane %v5296, 2
        %v5354 = vsel %vm483, %v5351, %v5353
        %v5355 = vrot.slane %v5297, 2
        %v5356 = vrot.slane %v5298, 2
        %v5357 = vsel %vm483, %v5355, %v5356
        %v5358 = vrot.slane %v5299, 2
        %v5359 = vsel %vm483, %v5356, %v5358
        %v5360 = vrot.slane %v5300, 2
        %v5361 = vrot.slane %v5301, 2
        %v5362 = vsel %vm483, %v5360, %v5361
        %v5363 = vrot.slane %v5302, 2
        %v5364 = vsel %vm483, %v5361, %v5363
        %v5365 = vrot.slane %v5303, 2
        %v5366 = vrot.slane %v5304, 2
        %v5367 = vsel %vm483, %v5365, %v5366
        %v5368 = vrot.slane %v5305, 2
        %v5369 = vsel %vm483, %v5366, %v5368
        %v5386 = vadd.f32 %v5262, %v5332
        %v5387 = vadd.f32 %v5263, %v5334
        %v5388 = vadd.f32 %v5264, %v5337
        %v5389 = vadd.f32 %v5265, %v5339
        %v5390 = vadd.f32 %v5266, %v5342
        %v5391 = vadd.f32 %v5267, %v5344
        %v5392 = vadd.f32 %v5268, %v5347
        %v5393 = vadd.f32 %v5269, %v5349
        %v5394 = vadd.f32 %v5270, %v5352
        %v5395 = vadd.f32 %v5271, %v5354
        %v5396 = vadd.f32 %v5272, %v5357
        %v5397 = vadd.f32 %v5273, %v5359
        %v5398 = vadd.f32 %v5274, %v5362
        %v5399 = vadd.f32 %v5275, %v5364
        %v5400 = vadd.f32 %v5276, %v5367
        %v5401 = vadd.f32 %v5277, %v5369
        %v5402 = vlaneseq
        %v5403 = vshrl.u32 %v5402, 7
        %v5404 = vsub.s32 3, %v5403
        %v5405 = vrot.slane %v243, %v5404
        %v5406 = vmul.f32 %v5094, %v5405
        %v5407 = vmul.f32 %v5095, %v5405
        %v5408 = vmul.f32 %v5096, %v5405
        %v5409 = vmul.f32 %v5097, %v5405
        %v5410 = vmul.f32 %v5098, %v5405
        %v5411 = vmul.f32 %v5099, %v5405
        %v5412 = vmul.f32 %v5100, %v5405
        %v5413 = vmul.f32 %v5101, %v5405
        %v5414 = vmul.f32 %v5102, %v5405
        %v5415 = vmul.f32 %v5103, %v5405
        %v5416 = vmul.f32 %v5104, %v5405
        %v5417 = vmul.f32 %v5105, %v5405
        %v5418 = vmul.f32 %v5106, %v5405
        %v5419 = vmul.f32 %v5107, %v5405
        %v5420 = vmul.f32 %v5108, %v5405
        %v5421 = vmul.f32 %v5109, %v5405
        %v5422 = vmul.f32 %v5110, %v5405
        %v5423 = vmul.f32 %v5111, %v5405
        %v5424 = vmul.f32 %v5112, %v5405
        %v5425 = vmul.f32 %v5113, %v5405
        %v5426 = vmul.f32 %v5114, %v5405
        %v5427 = vmul.f32 %v5115, %v5405
        %v5428 = vmul.f32 %v5116, %v5405
        %v5429 = vmul.f32 %v5117, %v5405
        %v5454 = vrot.slane %v5406, 3
        %v5455 = vrot.slane %v5407, 3
        %v5456 = vsel %vm608, %v5454, %v5455
        %v5457 = vrot.slane %v5408, 3
        %v5458 = vsel %vm608, %v5455, %v5457
        %v5459 = vrot.slane %v5409, 3
        %v5460 = vrot.slane %v5410, 3
        %v5461 = vsel %vm608, %v5459, %v5460
        %v5462 = vrot.slane %v5411, 3
        %v5463 = vsel %vm608, %v5460, %v5462
        %v5464 = vrot.slane %v5412, 3
        %v5465 = vrot.slane %v5413, 3
        %v5466 = vsel %vm608, %v5464, %v5465
        %v5467 = vrot.slane %v5414, 3
        %v5468 = vsel %vm608, %v5465, %v5467
        %v5469 = vrot.slane %v5415, 3
        %v5470 = vrot.slane %v5416, 3
        %v5471 = vsel %vm608, %v5469, %v5470
        %v5472 = vrot.slane %v5417, 3
        %v5473 = vsel %vm608, %v5470, %v5472
        %v5474 = vrot.slane %v5418, 3
        %v5475 = vrot.slane %v5419, 3
        %v5476 = vsel %vm608, %v5474, %v5475
        %v5477 = vrot.slane %v5420, 3
        %v5478 = vsel %vm608, %v5475, %v5477
        %v5479 = vrot.slane %v5421, 3
        %v5480 = vrot.slane %v5422, 3
        %v5481 = vsel %vm608, %v5479, %v5480
        %v5482 = vrot.slane %v5423, 3
        %v5483 = vsel %vm608, %v5480, %v5482
        %v5484 = vrot.slane %v5424, 3
        %v5485 = vrot.slane %v5425, 3
        %v5486 = vsel %vm608, %v5484, %v5485
        %v5487 = vrot.slane %v5426, 3
        %v5488 = vsel %vm608, %v5485, %v5487
        %v5489 = vrot.slane %v5427, 3
        %v5490 = vrot.slane %v5428, 3
        %v5491 = vsel %vm608, %v5489, %v5490
        %v5492 = vrot.slane %v5429, 3
        %v5493 = vsel %vm608, %v5490, %v5492
        %v5510 = vadd.f32 %v5386, %v5456
        %v5511 = vadd.f32 %v5387, %v5458
        %v5512 = vadd.f32 %v5388, %v5461
        %v5513 = vadd.f32 %v5389, %v5463
        %v5514 = vadd.f32 %v5390, %v5466
        %v5515 = vadd.f32 %v5391, %v5468
        %v5516 = vadd.f32 %v5392, %v5471
        %v5517 = vadd.f32 %v5393, %v5473
        %v5518 = vadd.f32 %v5394, %v5476
        %v5519 = vadd.f32 %v5395, %v5478
        %v5520 = vadd.f32 %v5396, %v5481
        %v5521 = vadd.f32 %v5397, %v5483
        %v5522 = vadd.f32 %v5398, %v5486
        %v5523 = vadd.f32 %v5399, %v5488
        %v5524 = vadd.f32 %v5400, %v5491
        %v5525 = vadd.f32 %v5401, %v5493
        %v5526 = vlaneseq
        %v5527 = vshrl.u32 %v5526, 7
        %v5528 = vsub.s32 4, %v5527
        %v5529 = vrot.slane %v243, %v5528
        %v5530 = vmul.f32 %v5094, %v5529
        %v5531 = vmul.f32 %v5095, %v5529
        %v5532 = vmul.f32 %v5096, %v5529
        %v5533 = vmul.f32 %v5097, %v5529
        %v5534 = vmul.f32 %v5098, %v5529
        %v5535 = vmul.f32 %v5099, %v5529
        %v5536 = vmul.f32 %v5100, %v5529
        %v5537 = vmul.f32 %v5101, %v5529
        %v5538 = vmul.f32 %v5102, %v5529
        %v5539 = vmul.f32 %v5103, %v5529
        %v5540 = vmul.f32 %v5104, %v5529
        %v5541 = vmul.f32 %v5105, %v5529
        %v5542 = vmul.f32 %v5106, %v5529
        %v5543 = vmul.f32 %v5107, %v5529
        %v5544 = vmul.f32 %v5108, %v5529
        %v5545 = vmul.f32 %v5109, %v5529
        %v5546 = vmul.f32 %v5110, %v5529
        %v5547 = vmul.f32 %v5111, %v5529
        %v5548 = vmul.f32 %v5112, %v5529
        %v5549 = vmul.f32 %v5113, %v5529
        %v5550 = vmul.f32 %v5114, %v5529
        %v5551 = vmul.f32 %v5115, %v5529
        %v5552 = vmul.f32 %v5116, %v5529
        %v5553 = vmul.f32 %v5117, %v5529
        %v5578 = vrot.slane %v5530, 4
        %v5579 = vrot.slane %v5531, 4
        %v5580 = vsel %vm733, %v5578, %v5579
        %v5581 = vrot.slane %v5532, 4
        %v5582 = vsel %vm733, %v5579, %v5581
        %v5583 = vrot.slane %v5533, 4
        %v5584 = vrot.slane %v5534, 4
        %v5585 = vsel %vm733, %v5583, %v5584
        %v5586 = vrot.slane %v5535, 4
        %v5587 = vsel %vm733, %v5584, %v5586
        %v5588 = vrot.slane %v5536, 4
        %v5589 = vrot.slane %v5537, 4
        %v5590 = vsel %vm733, %v5588, %v5589
        %v5591 = vrot.slane %v5538, 4
        %v5592 = vsel %vm733, %v5589, %v5591
        %v5593 = vrot.slane %v5539, 4
        %v5594 = vrot.slane %v5540, 4
        %v5595 = vsel %vm733, %v5593, %v5594
        %v5596 = vrot.slane %v5541, 4
        %v5597 = vsel %vm733, %v5594, %v5596
        %v5598 = vrot.slane %v5542, 4
        %v5599 = vrot.slane %v5543, 4
        %v5600 = vsel %vm733, %v5598, %v5599
        %v5601 = vrot.slane %v5544, 4
        %v5602 = vsel %vm733, %v5599, %v5601
        %v5603 = vrot.slane %v5545, 4
        %v5604 = vrot.slane %v5546, 4
        %v5605 = vsel %vm733, %v5603, %v5604
        %v5606 = vrot.slane %v5547, 4
        %v5607 = vsel %vm733, %v5604, %v5606
        %v5608 = vrot.slane %v5548, 4
        %v5609 = vrot.slane %v5549, 4
        %v5610 = vsel %vm733, %v5608, %v5609
        %v5611 = vrot.slane %v5550, 4
        %v5612 = vsel %vm733, %v5609, %v5611
        %v5613 = vrot.slane %v5551, 4
        %v5614 = vrot.slane %v5552, 4
        %v5615 = vsel %vm733, %v5613, %v5614
        %v5616 = vrot.slane %v5553, 4
        %v5617 = vsel %vm733, %v5614, %v5616
        %v5634 = vadd.f32 %v5510, %v5580
        %v5635 = vadd.f32 %v5511, %v5582
        %v5636 = vadd.f32 %v5512, %v5585
        %v5637 = vadd.f32 %v5513, %v5587
        %v5638 = vadd.f32 %v5514, %v5590
        %v5639 = vadd.f32 %v5515, %v5592
        %v5640 = vadd.f32 %v5516, %v5595
        %v5641 = vadd.f32 %v5517, %v5597
        %v5642 = vadd.f32 %v5518, %v5600
        %v5643 = vadd.f32 %v5519, %v5602
        %v5644 = vadd.f32 %v5520, %v5605
        %v5645 = vadd.f32 %v5521, %v5607
        %v5646 = vadd.f32 %v5522, %v5610
        %v5647 = vadd.f32 %v5523, %v5612
        %v5648 = vadd.f32 %v5524, %v5615
        %v5649 = vadd.f32 %v5525, %v5617
        %v5650 = vlaneseq
        %v5651 = vshrl.u32 %v5650, 7
        %v5652 = vsub.s32 5, %v5651
        %v5653 = vrot.slane %v243, %v5652
        %v5654 = vmul.f32 %v5094, %v5653
        %v5655 = vmul.f32 %v5095, %v5653
        %v5656 = vmul.f32 %v5096, %v5653
        %v5657 = vmul.f32 %v5097, %v5653
        %v5658 = vmul.f32 %v5098, %v5653
        %v5659 = vmul.f32 %v5099, %v5653
        %v5660 = vmul.f32 %v5100, %v5653
        %v5661 = vmul.f32 %v5101, %v5653
        %v5662 = vmul.f32 %v5102, %v5653
        %v5663 = vmul.f32 %v5103, %v5653
        %v5664 = vmul.f32 %v5104, %v5653
        %v5665 = vmul.f32 %v5105, %v5653
        %v5666 = vmul.f32 %v5106, %v5653
        %v5667 = vmul.f32 %v5107, %v5653
        %v5668 = vmul.f32 %v5108, %v5653
        %v5669 = vmul.f32 %v5109, %v5653
        %v5670 = vmul.f32 %v5110, %v5653
        %v5671 = vmul.f32 %v5111, %v5653
        %v5672 = vmul.f32 %v5112, %v5653
        %v5673 = vmul.f32 %v5113, %v5653
        %v5674 = vmul.f32 %v5114, %v5653
        %v5675 = vmul.f32 %v5115, %v5653
        %v5676 = vmul.f32 %v5116, %v5653
        %v5677 = vmul.f32 %v5117, %v5653
        %v5702 = vrot.slane %v5654, 5
        %v5703 = vrot.slane %v5655, 5
        %v5704 = vsel %vm858, %v5702, %v5703
        %v5705 = vrot.slane %v5656, 5
        %v5706 = vsel %vm858, %v5703, %v5705
        %v5707 = vrot.slane %v5657, 5
        %v5708 = vrot.slane %v5658, 5
        %v5709 = vsel %vm858, %v5707, %v5708
        %v5710 = vrot.slane %v5659, 5
        %v5711 = vsel %vm858, %v5708, %v5710
        %v5712 = vrot.slane %v5660, 5
        %v5713 = vrot.slane %v5661, 5
        %v5714 = vsel %vm858, %v5712, %v5713
        %v5715 = vrot.slane %v5662, 5
        %v5716 = vsel %vm858, %v5713, %v5715
        %v5717 = vrot.slane %v5663, 5
        %v5718 = vrot.slane %v5664, 5
        %v5719 = vsel %vm858, %v5717, %v5718
        %v5720 = vrot.slane %v5665, 5
        %v5721 = vsel %vm858, %v5718, %v5720
        %v5722 = vrot.slane %v5666, 5
        %v5723 = vrot.slane %v5667, 5
        %v5724 = vsel %vm858, %v5722, %v5723
        %v5725 = vrot.slane %v5668, 5
        %v5726 = vsel %vm858, %v5723, %v5725
        %v5727 = vrot.slane %v5669, 5
        %v5728 = vrot.slane %v5670, 5
        %v5729 = vsel %vm858, %v5727, %v5728
        %v5730 = vrot.slane %v5671, 5
        %v5731 = vsel %vm858, %v5728, %v5730
        %v5732 = vrot.slane %v5672, 5
        %v5733 = vrot.slane %v5673, 5
        %v5734 = vsel %vm858, %v5732, %v5733
        %v5735 = vrot.slane %v5674, 5
        %v5736 = vsel %vm858, %v5733, %v5735
        %v5737 = vrot.slane %v5675, 5
        %v5738 = vrot.slane %v5676, 5
        %v5739 = vsel %vm858, %v5737, %v5738
        %v5740 = vrot.slane %v5677, 5
        %v5741 = vsel %vm858, %v5738, %v5740
        %v5758 = vadd.f32 %v5634, %v5704
        %v5759 = vadd.f32 %v5635, %v5706
        %v5760 = vadd.f32 %v5636, %v5709
        %v5761 = vadd.f32 %v5637, %v5711
        %v5762 = vadd.f32 %v5638, %v5714
        %v5763 = vadd.f32 %v5639, %v5716
        %v5764 = vadd.f32 %v5640, %v5719
        %v5765 = vadd.f32 %v5641, %v5721
        %v5766 = vadd.f32 %v5642, %v5724
        %v5767 = vadd.f32 %v5643, %v5726
        %v5768 = vadd.f32 %v5644, %v5729
        %v5769 = vadd.f32 %v5645, %v5731
        %v5770 = vadd.f32 %v5646, %v5734
        %v5771 = vadd.f32 %v5647, %v5736
        %v5772 = vadd.f32 %v5648, %v5739
        %v5773 = vadd.f32 %v5649, %v5741
        %v5774 = vlaneseq
        %v5775 = vshrl.u32 %v5774, 7
        %v5776 = vsub.s32 6, %v5775
        %v5777 = vrot.slane %v243, %v5776
        %v5778 = vmul.f32 %v5094, %v5777
        %v5779 = vmul.f32 %v5095, %v5777
        %v5780 = vmul.f32 %v5096, %v5777
        %v5781 = vmul.f32 %v5097, %v5777
        %v5782 = vmul.f32 %v5098, %v5777
        %v5783 = vmul.f32 %v5099, %v5777
        %v5784 = vmul.f32 %v5100, %v5777
        %v5785 = vmul.f32 %v5101, %v5777
        %v5786 = vmul.f32 %v5102, %v5777
        %v5787 = vmul.f32 %v5103, %v5777
        %v5788 = vmul.f32 %v5104, %v5777
        %v5789 = vmul.f32 %v5105, %v5777
        %v5790 = vmul.f32 %v5106, %v5777
        %v5791 = vmul.f32 %v5107, %v5777
        %v5792 = vmul.f32 %v5108, %v5777
        %v5793 = vmul.f32 %v5109, %v5777
        %v5794 = vmul.f32 %v5110, %v5777
        %v5795 = vmul.f32 %v5111, %v5777
        %v5796 = vmul.f32 %v5112, %v5777
        %v5797 = vmul.f32 %v5113, %v5777
        %v5798 = vmul.f32 %v5114, %v5777
        %v5799 = vmul.f32 %v5115, %v5777
        %v5800 = vmul.f32 %v5116, %v5777
        %v5801 = vmul.f32 %v5117, %v5777
        %v5826 = vrot.slane %v5778, 6
        %v5827 = vrot.slane %v5779, 6
        %v5828 = vsel %vm983, %v5826, %v5827
        %v5829 = vrot.slane %v5780, 6
        %v5830 = vsel %vm983, %v5827, %v5829
        %v5831 = vrot.slane %v5781, 6
        %v5832 = vrot.slane %v5782, 6
        %v5833 = vsel %vm983, %v5831, %v5832
        %v5834 = vrot.slane %v5783, 6
        %v5835 = vsel %vm983, %v5832, %v5834
        %v5836 = vrot.slane %v5784, 6
        %v5837 = vrot.slane %v5785, 6
        %v5838 = vsel %vm983, %v5836, %v5837
        %v5839 = vrot.slane %v5786, 6
        %v5840 = vsel %vm983, %v5837, %v5839
        %v5841 = vrot.slane %v5787, 6
        %v5842 = vrot.slane %v5788, 6
        %v5843 = vsel %vm983, %v5841, %v5842
        %v5844 = vrot.slane %v5789, 6
        %v5845 = vsel %vm983, %v5842, %v5844
        %v5846 = vrot.slane %v5790, 6
        %v5847 = vrot.slane %v5791, 6
        %v5848 = vsel %vm983, %v5846, %v5847
        %v5849 = vrot.slane %v5792, 6
        %v5850 = vsel %vm983, %v5847, %v5849
        %v5851 = vrot.slane %v5793, 6
        %v5852 = vrot.slane %v5794, 6
        %v5853 = vsel %vm983, %v5851, %v5852
        %v5854 = vrot.slane %v5795, 6
        %v5855 = vsel %vm983, %v5852, %v5854
        %v5856 = vrot.slane %v5796, 6
        %v5857 = vrot.slane %v5797, 6
        %v5858 = vsel %vm983, %v5856, %v5857
        %v5859 = vrot.slane %v5798, 6
        %v5860 = vsel %vm983, %v5857, %v5859
        %v5861 = vrot.slane %v5799, 6
        %v5862 = vrot.slane %v5800, 6
        %v5863 = vsel %vm983, %v5861, %v5862
        %v5864 = vrot.slane %v5801, 6
        %v5865 = vsel %vm983, %v5862, %v5864
        %v5882 = vadd.f32 %v5758, %v5828
        %v5883 = vadd.f32 %v5759, %v5830
        %v5884 = vadd.f32 %v5760, %v5833
        %v5885 = vadd.f32 %v5761, %v5835
        %v5886 = vadd.f32 %v5762, %v5838
        %v5887 = vadd.f32 %v5763, %v5840
        %v5888 = vadd.f32 %v5764, %v5843
        %v5889 = vadd.f32 %v5765, %v5845
        %v5890 = vadd.f32 %v5766, %v5848
        %v5891 = vadd.f32 %v5767, %v5850
        %v5892 = vadd.f32 %v5768, %v5853
        %v5893 = vadd.f32 %v5769, %v5855
        %v5894 = vadd.f32 %v5770, %v5858
        %v5895 = vadd.f32 %v5771, %v5860
        %v5896 = vadd.f32 %v5772, %v5863
        %v5897 = vadd.f32 %v5773, %v5865
        %v5899 = vlaneseq
        %v5900 = vshrl.u32 %v5899, 7
        %v5901 = vsub.s32 0, %v5900
        %v5902 = vrot.slane %v236, %v5901
        %v5904 = vadd.f32 %v5882, %v5902
        %v5905 = vadd.f32 %v5883, %v5902
        %v5906 = vadd.f32 %v5884, %v5902
        %v5907 = vadd.f32 %v5885, %v5902
        %v5908 = vadd.f32 %v5886, %v5902
        %v5909 = vadd.f32 %v5887, %v5902
        %v5910 = vadd.f32 %v5888, %v5902
        %v5911 = vadd.f32 %v5889, %v5902
        %v5912 = vadd.f32 %v5890, %v5902
        %v5913 = vadd.f32 %v5891, %v5902
        %v5914 = vadd.f32 %v5892, %v5902
        %v5915 = vadd.f32 %v5893, %v5902
        %v5916 = vadd.f32 %v5894, %v5902
        %v5917 = vadd.f32 %v5895, %v5902
        %v5918 = vadd.f32 %v5896, %v5902
        %v5919 = vadd.f32 %v5897, %v5902
        %5920 = vst [vmem:[%s218] sm:$0xff] %v5904
        %5921 = vst [vmem:[%s218 + $0x8] sm:$0xff] %v5905
        %5922 = vst [vmem:[%s218 + $0x10] sm:$0xff] %v5906
        %5923 = vst [vmem:[%s218 + $0x18] sm:$0xff] %v5907
        %5924 = vst [vmem:[%s218 + $0x20] sm:$0xff] %v5908
        %5925 = vst [vmem:[%s218 + $0x28] sm:$0xff] %v5909
        %5926 = vst [vmem:[%s218 + $0x30] sm:$0xff] %v5910
        %5927 = vst [vmem:[%s218 + $0x38] sm:$0xff] %v5911
        %5928 = vst [vmem:[%s218 + $0x40] sm:$0xff] %v5912
        %5929 = vst [vmem:[%s218 + $0x48] sm:$0xff] %v5913
        %5930 = vst [vmem:[%s218 + $0x50] sm:$0xff] %v5914
        %5931 = vst [vmem:[%s218 + $0x58] sm:$0xff] %v5915
        %5932 = vst [vmem:[%s218 + $0x60] sm:$0xff] %v5916
        %5933 = vst [vmem:[%s218 + $0x68] sm:$0xff] %v5917
        %5934 = vst [vmem:[%s218 + $0x70] sm:$0xff] %v5918
        %5935 = vst [vmem:[%s218 + $0x78] sm:$0xff] %v5919
        %s5936 = sand.u32 %s128, 1
        %s5937 = scalar_lea.sflag [#allocation3], %s5936
        %s5938 = sand.u32 %s128, 1
        %s5939 = smul.addr %s5938, 128
        %s5940 = scalar_lea.vmem [#allocation2], %s5939
        // Predicated region
        $region33: #{tpu_custom_call.1} parent=31 // pred_check
          %p5941 = pneg %p138
        $region34: #{tpu_custom_call.1} parent=31 // pred_check_branch
          %5943 = sbr.rel (%p5941) target = $region36
        $region35: #{tpu_custom_call.1} parent=31 // pred_region
          %s5944 = smul.u32 8, %s24
          %s5946 = ssub.s32 2048, 2048
          %5947 = vsyncadd %s5937, %s5946
          %s5948 = smul.addr %s5944, 2
          %s5949 = sadd.s32 %s23, %s5948
          %s5950 = smul.addr %s22, 32
          %s5951 = sadd.s32 %s5949, %s5950
          %s5952 = smul.addr %s5951, 128
          %s5953 = scalar_lea.hbm %s3, %s5952
          %s5954 = sshll.u32 %s5940, 4
          %s5955 = int_to_ptr.vmem [resolvable:$true] %s5954
          %5960 = dma.vmem_to_hbm [thread:$0]  %s5955, 2048, %s5953, %s5937, 128, 128, 8
        $region36: #{tpu_custom_call.1} parent=31 // pred_fallthru
          _
      $region32: #{tpu_custom_call.1} parent=5 // pred_fallthru
        _
      %p5961 = scmp.le.s32.totalorder 2, %s12
      // Predicated region
      $region37: #{tpu_custom_call.1} parent=5 // pred_check
        %p5962 = pneg %p5961
      $region38: #{tpu_custom_call.1} parent=5 // pred_check_branch
        %5964 = sbr.rel (%p5962) target = $region40
      $region39: #{tpu_custom_call.1} parent=5 // pred_region
        %s5965 = ssub.s32 %s12, 2
        // Predicated region
        $region41: #{tpu_custom_call.1} parent=39 // pred_check
          %p5966 = pneg %p144
        $region42: #{tpu_custom_call.1} parent=39 // pred_check_branch
          %5968 = sbr.rel (%p5966) target = $region44
        $region43: #{tpu_custom_call.1} parent=39 // pred_region
          %s5969 = sand.u32 %s129, 1
          %s5970 = scalar_lea.sflag [#allocation3], %s5969
          %s5971 = sand.u32 %s129, 1
          %s5972 = smul.addr %s5971, 128
          %s5973 = scalar_lea.vmem [#allocation2], %s5972
          %5974 = dma.done %s5970, 2048
        $region44: #{tpu_custom_call.1} parent=39 // pred_fallthru
          _
      $region40: #{tpu_custom_call.1} parent=5 // pred_fallthru
        _
    $region6: #{tpu_custom_call.1} parent=1 // loop_footer
      %s16 = sadd.s32 1, %s12
    $region7: #{tpu_custom_call.1} parent=1 // loop_footer_branch
      %11 = sbr.rel target = $region3
    $region8: #{tpu_custom_call.1} parent=1 // loop_exit
      _
    %5975 = vsyncpa [#allocation3], 1
    %s5976 = scalar_lea.sflag [#allocation3], 1
    %5977 = vsyncpa %s5976, 1

</llo_original>
